<compile_context>
chip_gen: v7x
topology: tpu7x:2x2x1
jax: 0.10.0
libtpu: 0.0.40
codegen_flags: <defaults>
</compile_context>

<pallas_src>
import jax
import jax.numpy as jnp
from jax.experimental import pallas as pl
from jax.experimental.pallas import tpu as pltpu

EPS = 1e-5  # torch.nn.GroupNorm default eps


# ---------------------------------------------------------------------------
# In-kernel building block
# ---------------------------------------------------------------------------
def _gn1(x, gamma, beta):
    """GroupNorm(num_groups=1) on a 2-D [N, C] tensor + affine (all f32)."""
    mu = jnp.mean(x, axis=-1, keepdims=True)
    var = jnp.mean((x - mu) ** 2, axis=-1, keepdims=True)
    return (x - mu) * jax.lax.rsqrt(var + EPS) * gamma + beta


# ---------------------------------------------------------------------------
# Fused PredNet kernel (one grid step = TM actor rows):
#   K regression heads + ctr add + AttDest + cls head + per-row descending
#   mode sort, lane-dense packed output.
# ---------------------------------------------------------------------------
def prednet_kernel(actors_ref, ctrs_ref,
                   wx_ref, pw2_ref, pw3_ref, pvec_ref, pb3_ref,
                   wd2_ref, wad_ref, attvec_ref,
                   wc1_ref, wc2_ref, clsvec_ref,
                   out_ref):
    TM, D = actors_ref.shape
    K = pw2_ref.shape[0]
    P2 = pw3_ref.shape[-1]            # 2 * num_preds
    W = out_ref.shape[-1]             # K*P2 + K rounded up to a multiple of 128

    x = actors_ref[...]               # [TM, D] f32
    xb = x.astype(jnp.bfloat16)
    ctr = ctrs_ref[...]               # [TM, 2]
    ctr_x = ctr[:, 0:1]
    ctr_y = ctr[:, 1:2]

    # (x, y, x, y, ...) lane pattern: add the actor centre to every timestep.
    lane = jax.lax.broadcasted_iota(jnp.int32, (TM, P2), 1)
    ctr_add = jnp.where((lane % 2) == 0,
                        jnp.broadcast_to(ctr_x, (TM, P2)),
                        jnp.broadcast_to(ctr_y, (TM, P2)))

    # ONE wide MXU pass for every matmul that consumes x:
    #   wx = [pw1_0 | pw1_1 | ... | pw1_{K-1} | waa]    -> [D, (K+1)*D]
    xw = jnp.dot(xb, wx_ref[...], preferred_element_type=jnp.float32)  # [TM,(K+1)*D]
    agt_pre = xw[:, K * D:(K + 1) * D]          # actors @ waa (AttDest agts half)

    # AttDest packed vectors: [wd1_row_x, wd1_row_y, bd1, gd2, bed2, ga, bea]
    wd1_x = attvec_ref[0:1, :]
    wd1_y = attvec_ref[1:2, :]
    bd1 = attvec_ref[2:3, :]
    gd2 = attvec_ref[3:4, :]
    bed2 = attvec_ref[4:5, :]
    ga = attvec_ref[5:6, :]
    bea = attvec_ref[6:7, :]

    # cls-head packed vectors: [b1, g1, be1, b2, g2, be2, wc3^T, bc3(lane0)]
    cb1 = clsvec_ref[0:1, :]
    cg1 = clsvec_ref[1:2, :]
    cbe1 = clsvec_ref[2:3, :]
    cb2 = clsvec_ref[3:4, :]
    cg2 = clsvec_ref[4:5, :]
    cbe2 = clsvec_ref[5:6, :]
    wc3 = clsvec_ref[6:7, :]
    bc3 = clsvec_ref[7:8, 0:1]

    regs, dists = [], []
    for k in range(K):                # K is static -> fully unrolled
        r0 = 6 * k
        b1 = pvec_ref[r0 + 0:r0 + 1, :]
        g1 = pvec_ref[r0 + 1:r0 + 2, :]
        be1 = pvec_ref[r0 + 2:r0 + 3, :]
        b2 = pvec_ref[r0 + 3:r0 + 4, :]
        g2 = pvec_ref[r0 + 4:r0 + 5, :]
        be2 = pvec_ref[r0 + 5:r0 + 6, :]

        # pred head k: LinearRes (linear1 already folded into the wide x pass)
        h = jnp.maximum(_gn1(xw[:, k * D:(k + 1) * D] + b1, g1, be1), 0.0)
        h = jnp.dot(h.astype(jnp.bfloat16), pw2_ref[k],
                    preferred_element_type=jnp.float32) + b2
        h = jnp.maximum(_gn1(h, g2, be2) + x, 0.0)
        # Linear(D, 2*num_preds), then + ctr
        reg_k = (jnp.dot(h.astype(jnp.bfloat16), pw3_ref[k],
                         preferred_element_type=jnp.float32)
                 + pb3_ref[k:k + 1, :]) + ctr_add                      # [TM, P2]

        # destination = last predicted frame; dist = ctr - dest
        dist_x = ctr_x - reg_k[:, P2 - 2:P2 - 1]
        dist_y = ctr_y - reg_k[:, P2 - 1:P2]
        # AttDest.dist Linear(2, D)+ReLU on the VPU (depth-2 contraction
        # would waste a whole MXU pass).
        d_k = jnp.maximum(dist_x * wd1_x + dist_y * wd1_y + bd1, 0.0)   # [TM, D]

        regs.append(reg_k)
        dists.append(d_k)

    # ----- K modes stacked along the sublane axis: every remaining layer has
    # mode-independent weights, so run each matmul / GN exactly once. --------
    d = jnp.concatenate(dists, axis=0)                                  # [K*TM, D]
    d = jnp.dot(d.astype(jnp.bfloat16), wd2_ref[...],
                preferred_element_type=jnp.float32)
    d = jnp.maximum(_gn1(d, gd2, bed2), 0.0)

    # AttDest.agt: Linear(2D, D, no bias)(cat(dist, agts)) as split matmul.
    feats = (jnp.dot(d.astype(jnp.bfloat16), wad_ref[...],
                     preferred_element_type=jnp.float32)
             + jnp.concatenate([agt_pre] * K, axis=0))
    feats = jnp.maximum(_gn1(feats, ga, bea), 0.0)                      # [K*TM, D]

    # cls head: LinearRes -> Linear(D, 1) (VPU mul + lane reduce).
    hc = jnp.dot(feats.astype(jnp.bfloat16), wc1_ref[...],
                 preferred_element_type=jnp.float32) + cb1
    hc = jnp.maximum(_gn1(hc, cg1, cbe1), 0.0)
    hc = jnp.dot(hc.astype(jnp.bfloat16), wc2_ref[...],
                 preferred_element_type=jnp.float32) + cb2
    hc = jnp.maximum(_gn1(hc, cg2, cbe2) + feats, 0.0)
    cls_all = jnp.sum(hc * wc3, axis=-1, keepdims=True) + bc3           # [K*TM, 1]

    clss = [cls_all[k * TM:(k + 1) * TM, :] for k in range(K)]

    # Per-row stable descending sort of the K modes: bubble compare/select
    # network (swap only when strictly greater -> stable, like argsort(-cls)).
    for p in range(K - 1):
        for q in range(K - 1 - p):
            swap = clss[q + 1] > clss[q]                                # [TM, 1]
            cq, cn = clss[q], clss[q + 1]
            rq, rn = regs[q], regs[q + 1]
            clss[q] = jnp.where(swap, cn, cq)
            clss[q + 1] = jnp.where(swap, cq, cn)
            regs[q] = jnp.where(swap, rn, rq)
            regs[q + 1] = jnp.where(swap, rq, rn)

    # Single lane-dense store of the whole output block:
    # [reg_0 | ... | reg_{K-1} | cls_0..cls_{K-1} | zero pad to W]
    pieces = regs + clss
    pad = W - (K * P2 + K)
    if pad:
        pieces.append(jnp.zeros((TM, pad), jnp.float32))
    out_ref[...] = jnp.concatenate(pieces, axis=-1)


# ---------------------------------------------------------------------------
# Full PredNet forward (wrapper: one pallas_call + cheap reshape/slice glue)
# ---------------------------------------------------------------------------
def prednet_forward(params, actors, actor_idcs, actor_ctrs, num_mods, num_preds):
    M, D = actors.shape
    K, P2 = num_mods, 2 * num_preds

    ctrs = jnp.concatenate(actor_ctrs, axis=0)                # [M, 2]

    # Lane-dense output width (multiple of 128); rows tiled in TM blocks.
    W = ((K * P2 + K + 127) // 128) * 128
    TM = min(256, ((M + 7) // 8) * 8)
    grid = (pl.cdiv(M, TM),)

    const2 = lambda i: (0, 0)
    const3 = lambda i: (0, 0, 0)

    flops = 2 * M * (D * (K + 1) * D + K * (D * D + D * P2) + 4 * K * D * D)
    bytes_accessed = ((actors.size + ctrs.size) * 4 + M * W * 4
                      + sum(int(v.size) * v.dtype.itemsize for v in params.values()))
    cost = pl.CostEstimate(flops=int(flops), transcendentals=int(6 * K * M),
                           bytes_accessed=int(bytes_accessed))

    packed = pl.pallas_call(
        prednet_kernel,
        out_shape=jax.ShapeDtypeStruct((M, W), jnp.float32),
        grid=grid,
        in_specs=[
            pl.BlockSpec((TM, D), lambda i: (i, 0)),          # actors (tiled rows)
            pl.BlockSpec((TM, 2), lambda i: (i, 0)),          # ctrs   (tiled rows)
            pl.BlockSpec(params["wx"].shape, const2),         # resident weights
            pl.BlockSpec(params["pw2"].shape, const3),
            pl.BlockSpec(params["pw3"].shape, const3),
            pl.BlockSpec(params["pvec"].shape, const2),
            pl.BlockSpec(params["pb3"].shape, const2),
            pl.BlockSpec(params["wd2"].shape, const2),
            pl.BlockSpec(params["wad"].shape, const2),
            pl.BlockSpec(params["attvec"].shape, const2),
            pl.BlockSpec(params["wc1"].shape, const2),
            pl.BlockSpec(params["wc2"].shape, const2),
            pl.BlockSpec(params["clsvec"].shape, const2),
        ],
        out_specs=pl.BlockSpec((TM, W), lambda i: (i, 0)),
        compiler_params=pltpu.CompilerParams(
            dimension_semantics=("parallel",)),
        cost_estimate=cost,
    )(actors, ctrs,
      params["wx"], params["pw2"], params["pw3"], params["pvec"], params["pb3"],
      params["wd2"], params["wad"], params["attvec"],
      params["wc1"], params["wc2"], params["clsvec"])

    reg = packed[:, :K * P2].reshape(M, K, num_preds, 2)      # already +ctr, sorted
    cls = packed[:, K * P2:K * P2 + K]                        # [M, K], descending

    # TODO(synk): ragged per-sample split stays in plain JAX (list outputs).
    out = {"cls": [], "reg": []}
    for idcs in actor_idcs:
        out["cls"].append(cls[idcs])
        out["reg"].append(reg[idcs])
    return out


# ---------------------------------------------------------------------------
# Deterministic parameter construction (synthetic; shapes follow __init__),
# packed into the layouts the fused kernel expects.  MXU-facing weights are
# stored in bf16; GN/bias/VPU vectors stay f32.
# ---------------------------------------------------------------------------
def make_params(key, n_actor, num_mods, num_preds):
    D, K, P2 = n_actor, num_mods, 2 * num_preds
    keys = iter(jax.random.split(key, 64))

    def lin(n_in, n_out, scale=None):
        s = scale if scale is not None else float(n_in) ** -0.5
        return jax.random.normal(next(keys), (n_in, n_out), jnp.float32) * s

    def vec(n, mean=0.0, scale=0.02):
        return mean + jax.random.normal(next(keys), (n,), jnp.float32) * scale

    # --- K prediction heads -------------------------------------------------
    pw1 = [lin(D, D) for _ in range(K)]                       # K x [D, D]
    pw2 = jnp.stack([lin(D, D) for _ in range(K)])            # [K, D, D]
    pw3 = jnp.stack([lin(D, P2) for _ in range(K)])           # [K, D, P2]
    pvec_rows = []
    for _ in range(K):                                        # b1,g1,be1,b2,g2,be2
        pvec_rows += [vec(D), vec(D, mean=1.0), vec(D),
                      vec(D), vec(D, mean=1.0), vec(D)]
    pvec = jnp.stack(pvec_rows)                               # [K*6, D]
    pb3 = jnp.stack([vec(P2) for _ in range(K)])              # [K, P2]

    # --- AttDest -------------------------------------------------------------
    wd1 = lin(2, D)                                           # Linear(2, D) weight
    bd1 = vec(D)
    wd2 = lin(D, D)                                           # Linear(D, D, no bias)
    gd2, bed2 = vec(D, mean=1.0), vec(D)
    wad = lin(D, D, scale=float(2 * D) ** -0.5)               # cat-Linear, dist half
    waa = lin(D, D, scale=float(2 * D) ** -0.5)               # cat-Linear, agts half
    ga, bea = vec(D, mean=1.0), vec(D)
    attvec = jnp.stack([wd1[0], wd1[1], bd1, gd2, bed2, ga, bea])   # [7, D]

    # --- cls head ------------------------------------------------------------
    wc1 = lin(D, D)
    cb1, cg1, cbe1 = vec(D), vec(D, mean=1.0), vec(D)
    wc2 = lin(D, D)
    cb2, cg2, cbe2 = vec(D), vec(D, mean=1.0), vec(D)
    wc3 = lin(D, 1)[:, 0]                                     # [D]
    bc3 = vec(1)                                              # [1]
    bc3_row = jnp.zeros((D,), jnp.float32).at[0].set(bc3[0])
    clsvec = jnp.stack([cb1, cg1, cbe1, cb2, cg2, cbe2, wc3, bc3_row])  # [8, D]

    # Fused x-consuming weight: [pw1_0 | ... | pw1_{K-1} | waa]  -> [D, (K+1)*D]
    wx = jnp.concatenate(pw1 + [waa], axis=1)

    bf = jnp.bfloat16
    return {"wx": wx.astype(bf),
            "pw2": pw2.astype(bf), "pw3": pw3.astype(bf),
            "pvec": pvec, "pb3": pb3,
            "wd2": wd2.astype(bf), "wad": wad.astype(bf), "attvec": attvec,
            "wc1": wc1.astype(bf), "wc2": wc2.astype(bf), "clsvec": clsvec}


# ---------------------------------------------------------------------------
if __name__ == "__main__":
    n_actor = 128    # feature width of each actor node (LaneGCN default, lane-full)
    num_mods = 3     # K predicted trajectories
    num_preds = 6    # predicted future frames
    batch_sizes = [6, 4]
    M = sum(batch_sizes)

    key = jax.random.PRNGKey(0)
    k_par, k_act, k_ctr = jax.random.split(key, 3)

    params = make_params(k_par, n_actor, num_mods, num_preds)
    actors = jax.random.normal(k_act, (M, n_actor), jnp.float32)

    ctr_keys = jax.random.split(k_ctr, len(batch_sizes))
    actor_ctrs, actor_idcs, off = [], [], 0
    for bs, ck in zip(batch_sizes, ctr_keys):
        actor_ctrs.append(jax.random.normal(ck, (bs, 2), jnp.float32) * 5.0)
        actor_idcs.append(jnp.arange(off, off + bs, dtype=jnp.int32))
        off += bs

    out = prednet_forward(params, actors, actor_idcs, actor_ctrs,
                          num_mods, num_preds)

    for c, r in zip(out["cls"], out["reg"]):
        c = jax.block_until_ready(c)
        r = jax.block_until_ready(r)
        assert r.shape[1:] == (num_mods, num_preds, 2)
        assert c.shape[1] == num_mods
        # confidences must come out sorted descending per actor
        assert bool(jnp.all(c[:, :-1] >= c[:, 1:]))

    print("KERNEL_OK")
</pallas_src>

<mosaic_0001>
module attributes {stable_mosaic.version = 11 : i64} {
  func.func @prednet_kernel(%arg0: i32, %arg1: memref<16x128xf32, #tpu.memory_space<vmem>>, %arg2: memref<16x2xf32, #tpu.memory_space<vmem>>, %arg3: memref<128x512xbf16, #tpu.memory_space<vmem>>, %arg4: memref<3x128x128xbf16, #tpu.memory_space<vmem>>, %arg5: memref<3x128x12xbf16, #tpu.memory_space<vmem>>, %arg6: memref<18x128xf32, #tpu.memory_space<vmem>>, %arg7: memref<3x12xf32, #tpu.memory_space<vmem>>, %arg8: memref<128x128xbf16, #tpu.memory_space<vmem>>, %arg9: memref<128x128xbf16, #tpu.memory_space<vmem>>, %arg10: memref<7x128xf32, #tpu.memory_space<vmem>>, %arg11: memref<128x128xbf16, #tpu.memory_space<vmem>>, %arg12: memref<128x128xbf16, #tpu.memory_space<vmem>>, %arg13: memref<8x128xf32, #tpu.memory_space<vmem>>, %arg14: memref<16x128xf32, #tpu.memory_space<vmem>>) attributes {dimension_semantics = [#tpu.dimension_semantics<parallel>], iteration_bounds = array<i64: 1>, scalar_prefetch = 0 : i64, scratch_operands = 0 : i64, tpu.core_type = #tpu.core_type<tc>, window_params = [{transform_indices = @transform_0, window_bounds = array<i64: 16, 128>}, {transform_indices = @transform_1, window_bounds = array<i64: 16, 2>}, {pipeline_mode = #tpu.pipeline_mode<synchronous>, transform_indices = @transform_2, window_bounds = array<i64: 128, 512>}, {pipeline_mode = #tpu.pipeline_mode<synchronous>, transform_indices = @transform_3, window_bounds = array<i64: 3, 128, 128>}, {pipeline_mode = #tpu.pipeline_mode<synchronous>, transform_indices = @transform_4, window_bounds = array<i64: 3, 128, 12>}, {pipeline_mode = #tpu.pipeline_mode<synchronous>, transform_indices = @transform_5, window_bounds = array<i64: 18, 128>}, {pipeline_mode = #tpu.pipeline_mode<synchronous>, transform_indices = @transform_6, window_bounds = array<i64: 3, 12>}, {pipeline_mode = #tpu.pipeline_mode<synchronous>, transform_indices = @transform_7, window_bounds = array<i64: 128, 128>}, {pipeline_mode = #tpu.pipeline_mode<synchronous>, transform_indices = @transform_8, window_bounds = array<i64: 128, 128>}, {pipeline_mode = #tpu.pipeline_mode<synchronous>, transform_indices = @transform_9, window_bounds = array<i64: 7, 128>}, {pipeline_mode = #tpu.pipeline_mode<synchronous>, transform_indices = @transform_10, window_bounds = array<i64: 128, 128>}, {pipeline_mode = #tpu.pipeline_mode<synchronous>, transform_indices = @transform_11, window_bounds = array<i64: 128, 128>}, {pipeline_mode = #tpu.pipeline_mode<synchronous>, transform_indices = @transform_12, window_bounds = array<i64: 8, 128>}, {transform_indices = @transform_13, window_bounds = array<i64: 16, 128>}]} {
    %c0 = arith.constant 0 : index
    %c0_0 = arith.constant 0 : index
    %0 = vector.load %arg1[%c0, %c0_0] : memref<16x128xf32, #tpu.memory_space<vmem>>, vector<16x128xf32>
    %1 = arith.truncf %0 : vector<16x128xf32> to vector<16x128xbf16>
    %c0_1 = arith.constant 0 : index
    %c0_2 = arith.constant 0 : index
    %2 = vector.load %arg2[%c0_1, %c0_2] : memref<16x2xf32, #tpu.memory_space<vmem>>, vector<16x2xf32>
    %3 = vector.extract_strided_slice %2 {offsets = [0, 0], sizes = [16, 1], strides = [1, 1]} : vector<16x2xf32> to vector<16x1xf32>
    %4 = vector.extract_strided_slice %2 {offsets = [0, 1], sizes = [16, 1], strides = [1, 1]} : vector<16x2xf32> to vector<16x1xf32>
    %5 = tpu.iota {dimensions = array<i32: 1>} : vector<16x12xi32>
    %c2_i32 = arith.constant 2 : i32
    %c0_i32 = arith.constant 0 : i32
    %6 = arith.cmpi eq, %c2_i32, %c0_i32 : i32
    %c1_i32 = arith.constant 1 : i32
    %7 = arith.select %6, %c1_i32, %c2_i32 : i32
    %8 = vector.broadcast %7 : i32 to vector<16x12xi32>
    %9 = arith.remsi %5, %8 : vector<16x12xi32>
    %c0_i32_3 = arith.constant 0 : i32
    %10 = vector.broadcast %c0_i32_3 : i32 to vector<16x12xi32>
    %11 = arith.cmpi ne, %9, %10 : vector<16x12xi32>
    %c0_i32_4 = arith.constant 0 : i32
    %12 = vector.broadcast %c0_i32_4 : i32 to vector<16x12xi32>
    %13 = arith.cmpi slt, %9, %12 : vector<16x12xi32>
    %c0_i32_5 = arith.constant 0 : i32
    %14 = arith.cmpi slt, %7, %c0_i32_5 : i32
    %15 = vector.broadcast %14 : i1 to vector<16x12xi1>
    %16 = vector.broadcast %15 : vector<16x12xi1> to vector<16x12xi1>
    %17 = arith.xori %13, %16 : vector<16x12xi1>
    %18 = arith.andi %17, %11 : vector<16x12xi1>
    %19 = vector.broadcast %7 : i32 to vector<16x12xi32>
    %20 = arith.addi %9, %19 : vector<16x12xi32>
    %21 = arith.select %18, %20, %9 : vector<16x12xi1>, vector<16x12xi32>
    %c0_i32_6 = arith.constant 0 : i32
    %22 = vector.broadcast %c0_i32_6 : i32 to vector<16x12xi32>
    %23 = arith.cmpi eq, %21, %22 : vector<16x12xi32>
    %24 = vector.shape_cast %3 : vector<16x1xf32> to vector<16x1xf32>
    %25 = vector.broadcast %24 : vector<16x1xf32> to vector<16x12xf32>
    %26 = vector.shape_cast %4 : vector<16x1xf32> to vector<16x1xf32>
    %27 = vector.broadcast %26 : vector<16x1xf32> to vector<16x12xf32>
    %28 = arith.select %23, %25, %27 : vector<16x12xi1>, vector<16x12xf32>
    %c0_7 = arith.constant 0 : index
    %c0_8 = arith.constant 0 : index
    %29 = vector.load %arg3[%c0_7, %c0_8] : memref<128x512xbf16, #tpu.memory_space<vmem>>, vector<128x512xbf16>
    %cst = arith.constant dense<0.000000e+00> : vector<16x512xf32>
    %30 = tpu.matmul %1, %29, %cst {dimension_numbers = #tpu.dot_dimension_numbers<[1], [0], [0], [1], [0, 0, 1, 1], [], []>} : vector<16x128xbf16>, vector<128x512xbf16>, vector<16x512xf32> -> vector<16x512xf32>
    %31 = vector.extract_strided_slice %30 {offsets = [0, 384], sizes = [16, 128], strides = [1, 1]} : vector<16x512xf32> to vector<16x128xf32>
    %c0_9 = arith.constant 0 : index
    %c0_10 = arith.constant 0 : index
    %32 = vector.load %arg10[%c0_9, %c0_10] : memref<7x128xf32, #tpu.memory_space<vmem>>, vector<1x128xf32>
    %c1 = arith.constant 1 : index
    %c0_11 = arith.constant 0 : index
    %33 = vector.load %arg10[%c1, %c0_11] : memref<7x128xf32, #tpu.memory_space<vmem>>, vector<1x128xf32>
    %c2 = arith.constant 2 : index
    %c0_12 = arith.constant 0 : index
    %34 = vector.load %arg10[%c2, %c0_12] : memref<7x128xf32, #tpu.memory_space<vmem>>, vector<1x128xf32>
    %c3 = arith.constant 3 : index
    %c0_13 = arith.constant 0 : index
    %35 = vector.load %arg10[%c3, %c0_13] : memref<7x128xf32, #tpu.memory_space<vmem>>, vector<1x128xf32>
    %c4 = arith.constant 4 : index
    %c0_14 = arith.constant 0 : index
    %36 = vector.load %arg10[%c4, %c0_14] : memref<7x128xf32, #tpu.memory_space<vmem>>, vector<1x128xf32>
    %c5 = arith.constant 5 : index
    %c0_15 = arith.constant 0 : index
    %37 = vector.load %arg10[%c5, %c0_15] : memref<7x128xf32, #tpu.memory_space<vmem>>, vector<1x128xf32>
    %c6 = arith.constant 6 : index
    %c0_16 = arith.constant 0 : index
    %38 = vector.load %arg10[%c6, %c0_16] : memref<7x128xf32, #tpu.memory_space<vmem>>, vector<1x128xf32>
    %c0_17 = arith.constant 0 : index
    %c0_18 = arith.constant 0 : index
    %39 = vector.load %arg13[%c0_17, %c0_18] : memref<8x128xf32, #tpu.memory_space<vmem>>, vector<1x128xf32>
    %c1_19 = arith.constant 1 : index
    %c0_20 = arith.constant 0 : index
    %40 = vector.load %arg13[%c1_19, %c0_20] : memref<8x128xf32, #tpu.memory_space<vmem>>, vector<1x128xf32>
    %c2_21 = arith.constant 2 : index
    %c0_22 = arith.constant 0 : index
    %41 = vector.load %arg13[%c2_21, %c0_22] : memref<8x128xf32, #tpu.memory_space<vmem>>, vector<1x128xf32>
    %c3_23 = arith.constant 3 : index
    %c0_24 = arith.constant 0 : index
    %42 = vector.load %arg13[%c3_23, %c0_24] : memref<8x128xf32, #tpu.memory_space<vmem>>, vector<1x128xf32>
    %c4_25 = arith.constant 4 : index
    %c0_26 = arith.constant 0 : index
    %43 = vector.load %arg13[%c4_25, %c0_26] : memref<8x128xf32, #tpu.memory_space<vmem>>, vector<1x128xf32>
    %c5_27 = arith.constant 5 : index
    %c0_28 = arith.constant 0 : index
    %44 = vector.load %arg13[%c5_27, %c0_28] : memref<8x128xf32, #tpu.memory_space<vmem>>, vector<1x128xf32>
    %c6_29 = arith.constant 6 : index
    %c0_30 = arith.constant 0 : index
    %45 = vector.load %arg13[%c6_29, %c0_30] : memref<8x128xf32, #tpu.memory_space<vmem>>, vector<1x128xf32>
    %c7 = arith.constant 7 : index
    %c0_31 = arith.constant 0 : index
    %46 = vector.load %arg13[%c7, %c0_31] : memref<8x128xf32, #tpu.memory_space<vmem>>, vector<1x1xf32>
    %c0_32 = arith.constant 0 : index
    %c0_33 = arith.constant 0 : index
    %47 = vector.load %arg6[%c0_32, %c0_33] : memref<18x128xf32, #tpu.memory_space<vmem>>, vector<1x128xf32>
    %c1_34 = arith.constant 1 : index
    %c0_35 = arith.constant 0 : index
    %48 = vector.load %arg6[%c1_34, %c0_35] : memref<18x128xf32, #tpu.memory_space<vmem>>, vector<1x128xf32>
    %c2_36 = arith.constant 2 : index
    %c0_37 = arith.constant 0 : index
    %49 = vector.load %arg6[%c2_36, %c0_37] : memref<18x128xf32, #tpu.memory_space<vmem>>, vector<1x128xf32>
    %c3_38 = arith.constant 3 : index
    %c0_39 = arith.constant 0 : index
    %50 = vector.load %arg6[%c3_38, %c0_39] : memref<18x128xf32, #tpu.memory_space<vmem>>, vector<1x128xf32>
    %c4_40 = arith.constant 4 : index
    %c0_41 = arith.constant 0 : index
    %51 = vector.load %arg6[%c4_40, %c0_41] : memref<18x128xf32, #tpu.memory_space<vmem>>, vector<1x128xf32>
    %c5_42 = arith.constant 5 : index
    %c0_43 = arith.constant 0 : index
    %52 = vector.load %arg6[%c5_42, %c0_43] : memref<18x128xf32, #tpu.memory_space<vmem>>, vector<1x128xf32>
    %53 = vector.extract_strided_slice %30 {offsets = [0, 0], sizes = [16, 128], strides = [1, 1]} : vector<16x512xf32> to vector<16x128xf32>
    %54 = vector.broadcast %47 : vector<1x128xf32> to vector<16x128xf32>
    %55 = arith.addf %53, %54 : vector<16x128xf32>
    %cst_44 = arith.constant dense<0.000000e+00> : vector<16xf32>
    %56 = vector.multi_reduction <add>, %55, %cst_44 [1] : vector<16x128xf32> to vector<16xf32>
    %57 = vector.shape_cast %56 : vector<16xf32> to vector<16x1xf32>
    %cst_45 = arith.constant 1.280000e+02 : f32
    %58 = vector.broadcast %cst_45 : f32 to vector<16x1xf32>
    %59 = arith.divf %57, %58 : vector<16x1xf32>
    %60 = vector.broadcast %59 : vector<16x1xf32> to vector<16x128xf32>
    %61 = arith.subf %55, %60 : vector<16x128xf32>
    %62 = arith.mulf %61, %61 : vector<16x128xf32>
    %cst_46 = arith.constant dense<0.000000e+00> : vector<16xf32>
    %63 = vector.multi_reduction <add>, %62, %cst_46 [1] : vector<16x128xf32> to vector<16xf32>
    %64 = vector.shape_cast %63 : vector<16xf32> to vector<16x1xf32>
    %cst_47 = arith.constant 1.280000e+02 : f32
    %65 = vector.broadcast %cst_47 : f32 to vector<16x1xf32>
    %66 = arith.divf %64, %65 : vector<16x1xf32>
    %67 = vector.broadcast %59 : vector<16x1xf32> to vector<16x128xf32>
    %68 = arith.subf %55, %67 : vector<16x128xf32>
    %cst_48 = arith.constant 9.99999974E-6 : f32
    %69 = vector.broadcast %cst_48 : f32 to vector<16x1xf32>
    %70 = arith.addf %66, %69 : vector<16x1xf32>
    %71 = math.rsqrt %70 : vector<16x1xf32>
    %72 = vector.broadcast %71 : vector<16x1xf32> to vector<16x128xf32>
    %73 = arith.mulf %68, %72 : vector<16x128xf32>
    %74 = vector.broadcast %48 : vector<1x128xf32> to vector<16x128xf32>
    %75 = arith.mulf %73, %74 : vector<16x128xf32>
    %76 = vector.broadcast %49 : vector<1x128xf32> to vector<16x128xf32>
    %77 = arith.addf %75, %76 : vector<16x128xf32>
    %cst_49 = arith.constant 0.000000e+00 : f32
    %78 = vector.broadcast %cst_49 : f32 to vector<16x128xf32>
    %79 = arith.maximumf %77, %78 : vector<16x128xf32>
    %80 = arith.truncf %79 : vector<16x128xf32> to vector<16x128xbf16>
    %c0_50 = arith.constant 0 : index
    %c0_51 = arith.constant 0 : index
    %c0_52 = arith.constant 0 : index
    %81 = vector.load %arg4[%c0_50, %c0_51, %c0_52] : memref<3x128x128xbf16, #tpu.memory_space<vmem>>, vector<1x128x128xbf16>
    %82 = vector.shape_cast %81 : vector<1x128x128xbf16> to vector<128x128xbf16>
    %cst_53 = arith.constant dense<0.000000e+00> : vector<16x128xf32>
    %83 = tpu.matmul %80, %82, %cst_53 {dimension_numbers = #tpu.dot_dimension_numbers<[1], [0], [0], [1], [0, 0, 1, 1], [], []>} : vector<16x128xbf16>, vector<128x128xbf16>, vector<16x128xf32> -> vector<16x128xf32>
    %84 = vector.broadcast %50 : vector<1x128xf32> to vector<16x128xf32>
    %85 = arith.addf %83, %84 : vector<16x128xf32>
    %cst_54 = arith.constant dense<0.000000e+00> : vector<16xf32>
    %86 = vector.multi_reduction <add>, %85, %cst_54 [1] : vector<16x128xf32> to vector<16xf32>
    %87 = vector.shape_cast %86 : vector<16xf32> to vector<16x1xf32>
    %cst_55 = arith.constant 1.280000e+02 : f32
    %88 = vector.broadcast %cst_55 : f32 to vector<16x1xf32>
    %89 = arith.divf %87, %88 : vector<16x1xf32>
    %90 = vector.broadcast %89 : vector<16x1xf32> to vector<16x128xf32>
    %91 = arith.subf %85, %90 : vector<16x128xf32>
    %92 = arith.mulf %91, %91 : vector<16x128xf32>
    %cst_56 = arith.constant dense<0.000000e+00> : vector<16xf32>
    %93 = vector.multi_reduction <add>, %92, %cst_56 [1] : vector<16x128xf32> to vector<16xf32>
    %94 = vector.shape_cast %93 : vector<16xf32> to vector<16x1xf32>
    %cst_57 = arith.constant 1.280000e+02 : f32
    %95 = vector.broadcast %cst_57 : f32 to vector<16x1xf32>
    %96 = arith.divf %94, %95 : vector<16x1xf32>
    %97 = vector.broadcast %89 : vector<16x1xf32> to vector<16x128xf32>
    %98 = arith.subf %85, %97 : vector<16x128xf32>
    %cst_58 = arith.constant 9.99999974E-6 : f32
    %99 = vector.broadcast %cst_58 : f32 to vector<16x1xf32>
    %100 = arith.addf %96, %99 : vector<16x1xf32>
    %101 = math.rsqrt %100 : vector<16x1xf32>
    %102 = vector.broadcast %101 : vector<16x1xf32> to vector<16x128xf32>
    %103 = arith.mulf %98, %102 : vector<16x128xf32>
    %104 = vector.broadcast %51 : vector<1x128xf32> to vector<16x128xf32>
    %105 = arith.mulf %103, %104 : vector<16x128xf32>
    %106 = vector.broadcast %52 : vector<1x128xf32> to vector<16x128xf32>
    %107 = arith.addf %105, %106 : vector<16x128xf32>
    %108 = arith.addf %107, %0 : vector<16x128xf32>
    %cst_59 = arith.constant 0.000000e+00 : f32
    %109 = vector.broadcast %cst_59 : f32 to vector<16x128xf32>
    %110 = arith.maximumf %108, %109 : vector<16x128xf32>
    %111 = arith.truncf %110 : vector<16x128xf32> to vector<16x128xbf16>
    %c0_60 = arith.constant 0 : index
    %c0_61 = arith.constant 0 : index
    %c0_62 = arith.constant 0 : index
    %112 = vector.load %arg5[%c0_60, %c0_61, %c0_62] : memref<3x128x12xbf16, #tpu.memory_space<vmem>>, vector<1x128x12xbf16>
    %113 = vector.shape_cast %112 : vector<1x128x12xbf16> to vector<128x12xbf16>
    %cst_63 = arith.constant dense<0.000000e+00> : vector<16x12xf32>
    %114 = tpu.matmul %111, %113, %cst_63 {dimension_numbers = #tpu.dot_dimension_numbers<[1], [0], [0], [1], [0, 0, 1, 1], [], []>} : vector<16x128xbf16>, vector<128x12xbf16>, vector<16x12xf32> -> vector<16x12xf32>
    %c0_64 = arith.constant 0 : index
    %c0_65 = arith.constant 0 : index
    %115 = vector.load %arg7[%c0_64, %c0_65] : memref<3x12xf32, #tpu.memory_space<vmem>>, vector<1x12xf32>
    %116 = vector.broadcast %115 : vector<1x12xf32> to vector<16x12xf32>
    %117 = arith.addf %114, %116 : vector<16x12xf32>
    %118 = arith.addf %117, %28 : vector<16x12xf32>
    %119 = vector.extract_strided_slice %118 {offsets = [0, 10], sizes = [16, 1], strides = [1, 1]} : vector<16x12xf32> to vector<16x1xf32>
    %120 = arith.subf %3, %119 : vector<16x1xf32>
    %121 = vector.extract_strided_slice %118 {offsets = [0, 11], sizes = [16, 1], strides = [1, 1]} : vector<16x12xf32> to vector<16x1xf32>
    %122 = arith.subf %4, %121 : vector<16x1xf32>
    %123 = vector.broadcast %120 : vector<16x1xf32> to vector<16x128xf32>
    %124 = vector.broadcast %32 : vector<1x128xf32> to vector<16x128xf32>
    %125 = arith.mulf %123, %124 : vector<16x128xf32>
    %126 = vector.broadcast %122 : vector<16x1xf32> to vector<16x128xf32>
    %127 = vector.broadcast %33 : vector<1x128xf32> to vector<16x128xf32>
    %128 = arith.mulf %126, %127 : vector<16x128xf32>
    %129 = arith.addf %125, %128 : vector<16x128xf32>
    %130 = vector.broadcast %34 : vector<1x128xf32> to vector<16x128xf32>
    %131 = arith.addf %129, %130 : vector<16x128xf32>
    %cst_66 = arith.constant 0.000000e+00 : f32
    %132 = vector.broadcast %cst_66 : f32 to vector<16x128xf32>
    %133 = arith.maximumf %131, %132 : vector<16x128xf32>
    %c6_67 = arith.constant 6 : index
    %c0_68 = arith.constant 0 : index
    %134 = vector.load %arg6[%c6_67, %c0_68] : memref<18x128xf32, #tpu.memory_space<vmem>>, vector<1x128xf32>
    %c7_69 = arith.constant 7 : index
    %c0_70 = arith.constant 0 : index
    %135 = vector.load %arg6[%c7_69, %c0_70] : memref<18x128xf32, #tpu.memory_space<vmem>>, vector<1x128xf32>
    %c8 = arith.constant 8 : index
    %c0_71 = arith.constant 0 : index
    %136 = vector.load %arg6[%c8, %c0_71] : memref<18x128xf32, #tpu.memory_space<vmem>>, vector<1x128xf32>
    %c9 = arith.constant 9 : index
    %c0_72 = arith.constant 0 : index
    %137 = vector.load %arg6[%c9, %c0_72] : memref<18x128xf32, #tpu.memory_space<vmem>>, vector<1x128xf32>
    %c10 = arith.constant 10 : index
    %c0_73 = arith.constant 0 : index
    %138 = vector.load %arg6[%c10, %c0_73] : memref<18x128xf32, #tpu.memory_space<vmem>>, vector<1x128xf32>
    %c11 = arith.constant 11 : index
    %c0_74 = arith.constant 0 : index
    %139 = vector.load %arg6[%c11, %c0_74] : memref<18x128xf32, #tpu.memory_space<vmem>>, vector<1x128xf32>
    %140 = vector.extract_strided_slice %30 {offsets = [0, 128], sizes = [16, 128], strides = [1, 1]} : vector<16x512xf32> to vector<16x128xf32>
    %141 = vector.broadcast %134 : vector<1x128xf32> to vector<16x128xf32>
    %142 = arith.addf %140, %141 : vector<16x128xf32>
    %cst_75 = arith.constant dense<0.000000e+00> : vector<16xf32>
    %143 = vector.multi_reduction <add>, %142, %cst_75 [1] : vector<16x128xf32> to vector<16xf32>
    %144 = vector.shape_cast %143 : vector<16xf32> to vector<16x1xf32>
    %cst_76 = arith.constant 1.280000e+02 : f32
    %145 = vector.broadcast %cst_76 : f32 to vector<16x1xf32>
    %146 = arith.divf %144, %145 : vector<16x1xf32>
    %147 = vector.broadcast %146 : vector<16x1xf32> to vector<16x128xf32>
    %148 = arith.subf %142, %147 : vector<16x128xf32>
    %149 = arith.mulf %148, %148 : vector<16x128xf32>
    %cst_77 = arith.constant dense<0.000000e+00> : vector<16xf32>
    %150 = vector.multi_reduction <add>, %149, %cst_77 [1] : vector<16x128xf32> to vector<16xf32>
    %151 = vector.shape_cast %150 : vector<16xf32> to vector<16x1xf32>
    %cst_78 = arith.constant 1.280000e+02 : f32
    %152 = vector.broadcast %cst_78 : f32 to vector<16x1xf32>
    %153 = arith.divf %151, %152 : vector<16x1xf32>
    %154 = vector.broadcast %146 : vector<16x1xf32> to vector<16x128xf32>
    %155 = arith.subf %142, %154 : vector<16x128xf32>
    %cst_79 = arith.constant 9.99999974E-6 : f32
    %156 = vector.broadcast %cst_79 : f32 to vector<16x1xf32>
    %157 = arith.addf %153, %156 : vector<16x1xf32>
    %158 = math.rsqrt %157 : vector<16x1xf32>
    %159 = vector.broadcast %158 : vector<16x1xf32> to vector<16x128xf32>
    %160 = arith.mulf %155, %159 : vector<16x128xf32>
    %161 = vector.broadcast %135 : vector<1x128xf32> to vector<16x128xf32>
    %162 = arith.mulf %160, %161 : vector<16x128xf32>
    %163 = vector.broadcast %136 : vector<1x128xf32> to vector<16x128xf32>
    %164 = arith.addf %162, %163 : vector<16x128xf32>
    %cst_80 = arith.constant 0.000000e+00 : f32
    %165 = vector.broadcast %cst_80 : f32 to vector<16x128xf32>
    %166 = arith.maximumf %164, %165 : vector<16x128xf32>
    %167 = arith.truncf %166 : vector<16x128xf32> to vector<16x128xbf16>
    %c1_81 = arith.constant 1 : index
    %c0_82 = arith.constant 0 : index
    %c0_83 = arith.constant 0 : index
    %168 = vector.load %arg4[%c1_81, %c0_82, %c0_83] : memref<3x128x128xbf16, #tpu.memory_space<vmem>>, vector<1x128x128xbf16>
    %169 = vector.shape_cast %168 : vector<1x128x128xbf16> to vector<128x128xbf16>
    %cst_84 = arith.constant dense<0.000000e+00> : vector<16x128xf32>
    %170 = tpu.matmul %167, %169, %cst_84 {dimension_numbers = #tpu.dot_dimension_numbers<[1], [0], [0], [1], [0, 0, 1, 1], [], []>} : vector<16x128xbf16>, vector<128x128xbf16>, vector<16x128xf32> -> vector<16x128xf32>
    %171 = vector.broadcast %137 : vector<1x128xf32> to vector<16x128xf32>
    %172 = arith.addf %170, %171 : vector<16x128xf32>
    %cst_85 = arith.constant dense<0.000000e+00> : vector<16xf32>
    %173 = vector.multi_reduction <add>, %172, %cst_85 [1] : vector<16x128xf32> to vector<16xf32>
    %174 = vector.shape_cast %173 : vector<16xf32> to vector<16x1xf32>
    %cst_86 = arith.constant 1.280000e+02 : f32
    %175 = vector.broadcast %cst_86 : f32 to vector<16x1xf32>
    %176 = arith.divf %174, %175 : vector<16x1xf32>
    %177 = vector.broadcast %176 : vector<16x1xf32> to vector<16x128xf32>
    %178 = arith.subf %172, %177 : vector<16x128xf32>
    %179 = arith.mulf %178, %178 : vector<16x128xf32>
    %cst_87 = arith.constant dense<0.000000e+00> : vector<16xf32>
    %180 = vector.multi_reduction <add>, %179, %cst_87 [1] : vector<16x128xf32> to vector<16xf32>
    %181 = vector.shape_cast %180 : vector<16xf32> to vector<16x1xf32>
    %cst_88 = arith.constant 1.280000e+02 : f32
    %182 = vector.broadcast %cst_88 : f32 to vector<16x1xf32>
    %183 = arith.divf %181, %182 : vector<16x1xf32>
    %184 = vector.broadcast %176 : vector<16x1xf32> to vector<16x128xf32>
    %185 = arith.subf %172, %184 : vector<16x128xf32>
    %cst_89 = arith.constant 9.99999974E-6 : f32
    %186 = vector.broadcast %cst_89 : f32 to vector<16x1xf32>
    %187 = arith.addf %183, %186 : vector<16x1xf32>
    %188 = math.rsqrt %187 : vector<16x1xf32>
    %189 = vector.broadcast %188 : vector<16x1xf32> to vector<16x128xf32>
    %190 = arith.mulf %185, %189 : vector<16x128xf32>
    %191 = vector.broadcast %138 : vector<1x128xf32> to vector<16x128xf32>
    %192 = arith.mulf %190, %191 : vector<16x128xf32>
    %193 = vector.broadcast %139 : vector<1x128xf32> to vector<16x128xf32>
    %194 = arith.addf %192, %193 : vector<16x128xf32>
    %195 = arith.addf %194, %0 : vector<16x128xf32>
    %cst_90 = arith.constant 0.000000e+00 : f32
    %196 = vector.broadcast %cst_90 : f32 to vector<16x128xf32>
    %197 = arith.maximumf %195, %196 : vector<16x128xf32>
    %198 = arith.truncf %197 : vector<16x128xf32> to vector<16x128xbf16>
    %c1_91 = arith.constant 1 : index
    %c0_92 = arith.constant 0 : index
    %c0_93 = arith.constant 0 : index
    %199 = vector.load %arg5[%c1_91, %c0_92, %c0_93] : memref<3x128x12xbf16, #tpu.memory_space<vmem>>, vector<1x128x12xbf16>
    %200 = vector.shape_cast %199 : vector<1x128x12xbf16> to vector<128x12xbf16>
    %cst_94 = arith.constant dense<0.000000e+00> : vector<16x12xf32>
    %201 = tpu.matmul %198, %200, %cst_94 {dimension_numbers = #tpu.dot_dimension_numbers<[1], [0], [0], [1], [0, 0, 1, 1], [], []>} : vector<16x128xbf16>, vector<128x12xbf16>, vector<16x12xf32> -> vector<16x12xf32>
    %c1_95 = arith.constant 1 : index
    %c0_96 = arith.constant 0 : index
    %202 = vector.load %arg7[%c1_95, %c0_96] : memref<3x12xf32, #tpu.memory_space<vmem>>, vector<1x12xf32>
    %203 = vector.broadcast %202 : vector<1x12xf32> to vector<16x12xf32>
    %204 = arith.addf %201, %203 : vector<16x12xf32>
    %205 = arith.addf %204, %28 : vector<16x12xf32>
    %206 = vector.extract_strided_slice %205 {offsets = [0, 10], sizes = [16, 1], strides = [1, 1]} : vector<16x12xf32> to vector<16x1xf32>
    %207 = arith.subf %3, %206 : vector<16x1xf32>
    %208 = vector.extract_strided_slice %205 {offsets = [0, 11], sizes = [16, 1], strides = [1, 1]} : vector<16x12xf32> to vector<16x1xf32>
    %209 = arith.subf %4, %208 : vector<16x1xf32>
    %210 = vector.broadcast %207 : vector<16x1xf32> to vector<16x128xf32>
    %211 = vector.broadcast %32 : vector<1x128xf32> to vector<16x128xf32>
    %212 = arith.mulf %210, %211 : vector<16x128xf32>
    %213 = vector.broadcast %209 : vector<16x1xf32> to vector<16x128xf32>
    %214 = vector.broadcast %33 : vector<1x128xf32> to vector<16x128xf32>
    %215 = arith.mulf %213, %214 : vector<16x128xf32>
    %216 = arith.addf %212, %215 : vector<16x128xf32>
    %217 = vector.broadcast %34 : vector<1x128xf32> to vector<16x128xf32>
    %218 = arith.addf %216, %217 : vector<16x128xf32>
    %cst_97 = arith.constant 0.000000e+00 : f32
    %219 = vector.broadcast %cst_97 : f32 to vector<16x128xf32>
    %220 = arith.maximumf %218, %219 : vector<16x128xf32>
    %c12 = arith.constant 12 : index
    %c0_98 = arith.constant 0 : index
    %221 = vector.load %arg6[%c12, %c0_98] : memref<18x128xf32, #tpu.memory_space<vmem>>, vector<1x128xf32>
    %c13 = arith.constant 13 : index
    %c0_99 = arith.constant 0 : index
    %222 = vector.load %arg6[%c13, %c0_99] : memref<18x128xf32, #tpu.memory_space<vmem>>, vector<1x128xf32>
    %c14 = arith.constant 14 : index
    %c0_100 = arith.constant 0 : index
    %223 = vector.load %arg6[%c14, %c0_100] : memref<18x128xf32, #tpu.memory_space<vmem>>, vector<1x128xf32>
    %c15 = arith.constant 15 : index
    %c0_101 = arith.constant 0 : index
    %224 = vector.load %arg6[%c15, %c0_101] : memref<18x128xf32, #tpu.memory_space<vmem>>, vector<1x128xf32>
    %c16 = arith.constant 16 : index
    %c0_102 = arith.constant 0 : index
    %225 = vector.load %arg6[%c16, %c0_102] : memref<18x128xf32, #tpu.memory_space<vmem>>, vector<1x128xf32>
    %c17 = arith.constant 17 : index
    %c0_103 = arith.constant 0 : index
    %226 = vector.load %arg6[%c17, %c0_103] : memref<18x128xf32, #tpu.memory_space<vmem>>, vector<1x128xf32>
    %227 = vector.extract_strided_slice %30 {offsets = [0, 256], sizes = [16, 128], strides = [1, 1]} : vector<16x512xf32> to vector<16x128xf32>
    %228 = vector.broadcast %221 : vector<1x128xf32> to vector<16x128xf32>
    %229 = arith.addf %227, %228 : vector<16x128xf32>
    %cst_104 = arith.constant dense<0.000000e+00> : vector<16xf32>
    %230 = vector.multi_reduction <add>, %229, %cst_104 [1] : vector<16x128xf32> to vector<16xf32>
    %231 = vector.shape_cast %230 : vector<16xf32> to vector<16x1xf32>
    %cst_105 = arith.constant 1.280000e+02 : f32
    %232 = vector.broadcast %cst_105 : f32 to vector<16x1xf32>
    %233 = arith.divf %231, %232 : vector<16x1xf32>
    %234 = vector.broadcast %233 : vector<16x1xf32> to vector<16x128xf32>
    %235 = arith.subf %229, %234 : vector<16x128xf32>
    %236 = arith.mulf %235, %235 : vector<16x128xf32>
    %cst_106 = arith.constant dense<0.000000e+00> : vector<16xf32>
    %237 = vector.multi_reduction <add>, %236, %cst_106 [1] : vector<16x128xf32> to vector<16xf32>
    %238 = vector.shape_cast %237 : vector<16xf32> to vector<16x1xf32>
    %cst_107 = arith.constant 1.280000e+02 : f32
    %239 = vector.broadcast %cst_107 : f32 to vector<16x1xf32>
    %240 = arith.divf %238, %239 : vector<16x1xf32>
    %241 = vector.broadcast %233 : vector<16x1xf32> to vector<16x128xf32>
    %242 = arith.subf %229, %241 : vector<16x128xf32>
    %cst_108 = arith.constant 9.99999974E-6 : f32
    %243 = vector.broadcast %cst_108 : f32 to vector<16x1xf32>
    %244 = arith.addf %240, %243 : vector<16x1xf32>
    %245 = math.rsqrt %244 : vector<16x1xf32>
    %246 = vector.broadcast %245 : vector<16x1xf32> to vector<16x128xf32>
    %247 = arith.mulf %242, %246 : vector<16x128xf32>
    %248 = vector.broadcast %222 : vector<1x128xf32> to vector<16x128xf32>
    %249 = arith.mulf %247, %248 : vector<16x128xf32>
    %250 = vector.broadcast %223 : vector<1x128xf32> to vector<16x128xf32>
    %251 = arith.addf %249, %250 : vector<16x128xf32>
    %cst_109 = arith.constant 0.000000e+00 : f32
    %252 = vector.broadcast %cst_109 : f32 to vector<16x128xf32>
    %253 = arith.maximumf %251, %252 : vector<16x128xf32>
    %254 = arith.truncf %253 : vector<16x128xf32> to vector<16x128xbf16>
    %c2_110 = arith.constant 2 : index
    %c0_111 = arith.constant 0 : index
    %c0_112 = arith.constant 0 : index
    %255 = vector.load %arg4[%c2_110, %c0_111, %c0_112] : memref<3x128x128xbf16, #tpu.memory_space<vmem>>, vector<1x128x128xbf16>
    %256 = vector.shape_cast %255 : vector<1x128x128xbf16> to vector<128x128xbf16>
    %cst_113 = arith.constant dense<0.000000e+00> : vector<16x128xf32>
    %257 = tpu.matmul %254, %256, %cst_113 {dimension_numbers = #tpu.dot_dimension_numbers<[1], [0], [0], [1], [0, 0, 1, 1], [], []>} : vector<16x128xbf16>, vector<128x128xbf16>, vector<16x128xf32> -> vector<16x128xf32>
    %258 = vector.broadcast %224 : vector<1x128xf32> to vector<16x128xf32>
    %259 = arith.addf %257, %258 : vector<16x128xf32>
    %cst_114 = arith.constant dense<0.000000e+00> : vector<16xf32>
    %260 = vector.multi_reduction <add>, %259, %cst_114 [1] : vector<16x128xf32> to vector<16xf32>
    %261 = vector.shape_cast %260 : vector<16xf32> to vector<16x1xf32>
    %cst_115 = arith.constant 1.280000e+02 : f32
    %262 = vector.broadcast %cst_115 : f32 to vector<16x1xf32>
    %263 = arith.divf %261, %262 : vector<16x1xf32>
    %264 = vector.broadcast %263 : vector<16x1xf32> to vector<16x128xf32>
    %265 = arith.subf %259, %264 : vector<16x128xf32>
    %266 = arith.mulf %265, %265 : vector<16x128xf32>
    %cst_116 = arith.constant dense<0.000000e+00> : vector<16xf32>
    %267 = vector.multi_reduction <add>, %266, %cst_116 [1] : vector<16x128xf32> to vector<16xf32>
    %268 = vector.shape_cast %267 : vector<16xf32> to vector<16x1xf32>
    %cst_117 = arith.constant 1.280000e+02 : f32
    %269 = vector.broadcast %cst_117 : f32 to vector<16x1xf32>
    %270 = arith.divf %268, %269 : vector<16x1xf32>
    %271 = vector.broadcast %263 : vector<16x1xf32> to vector<16x128xf32>
    %272 = arith.subf %259, %271 : vector<16x128xf32>
    %cst_118 = arith.constant 9.99999974E-6 : f32
    %273 = vector.broadcast %cst_118 : f32 to vector<16x1xf32>
    %274 = arith.addf %270, %273 : vector<16x1xf32>
    %275 = math.rsqrt %274 : vector<16x1xf32>
    %276 = vector.broadcast %275 : vector<16x1xf32> to vector<16x128xf32>
    %277 = arith.mulf %272, %276 : vector<16x128xf32>
    %278 = vector.broadcast %225 : vector<1x128xf32> to vector<16x128xf32>
    %279 = arith.mulf %277, %278 : vector<16x128xf32>
    %280 = vector.broadcast %226 : vector<1x128xf32> to vector<16x128xf32>
    %281 = arith.addf %279, %280 : vector<16x128xf32>
    %282 = arith.addf %281, %0 : vector<16x128xf32>
    %cst_119 = arith.constant 0.000000e+00 : f32
    %283 = vector.broadcast %cst_119 : f32 to vector<16x128xf32>
    %284 = arith.maximumf %282, %283 : vector<16x128xf32>
    %285 = arith.truncf %284 : vector<16x128xf32> to vector<16x128xbf16>
    %c2_120 = arith.constant 2 : index
    %c0_121 = arith.constant 0 : index
    %c0_122 = arith.constant 0 : index
    %286 = vector.load %arg5[%c2_120, %c0_121, %c0_122] : memref<3x128x12xbf16, #tpu.memory_space<vmem>>, vector<1x128x12xbf16>
    %287 = vector.shape_cast %286 : vector<1x128x12xbf16> to vector<128x12xbf16>
    %cst_123 = arith.constant dense<0.000000e+00> : vector<16x12xf32>
    %288 = tpu.matmul %285, %287, %cst_123 {dimension_numbers = #tpu.dot_dimension_numbers<[1], [0], [0], [1], [0, 0, 1, 1], [], []>} : vector<16x128xbf16>, vector<128x12xbf16>, vector<16x12xf32> -> vector<16x12xf32>
    %c2_124 = arith.constant 2 : index
    %c0_125 = arith.constant 0 : index
    %289 = vector.load %arg7[%c2_124, %c0_125] : memref<3x12xf32, #tpu.memory_space<vmem>>, vector<1x12xf32>
    %290 = vector.broadcast %289 : vector<1x12xf32> to vector<16x12xf32>
    %291 = arith.addf %288, %290 : vector<16x12xf32>
    %292 = arith.addf %291, %28 : vector<16x12xf32>
    %293 = vector.extract_strided_slice %292 {offsets = [0, 10], sizes = [16, 1], strides = [1, 1]} : vector<16x12xf32> to vector<16x1xf32>
    %294 = arith.subf %3, %293 : vector<16x1xf32>
    %295 = vector.extract_strided_slice %292 {offsets = [0, 11], sizes = [16, 1], strides = [1, 1]} : vector<16x12xf32> to vector<16x1xf32>
    %296 = arith.subf %4, %295 : vector<16x1xf32>
    %297 = vector.broadcast %294 : vector<16x1xf32> to vector<16x128xf32>
    %298 = vector.broadcast %32 : vector<1x128xf32> to vector<16x128xf32>
    %299 = arith.mulf %297, %298 : vector<16x128xf32>
    %300 = vector.broadcast %296 : vector<16x1xf32> to vector<16x128xf32>
    %301 = vector.broadcast %33 : vector<1x128xf32> to vector<16x128xf32>
    %302 = arith.mulf %300, %301 : vector<16x128xf32>
    %303 = arith.addf %299, %302 : vector<16x128xf32>
    %304 = vector.broadcast %34 : vector<1x128xf32> to vector<16x128xf32>
    %305 = arith.addf %303, %304 : vector<16x128xf32>
    %cst_126 = arith.constant 0.000000e+00 : f32
    %306 = vector.broadcast %cst_126 : f32 to vector<16x128xf32>
    %307 = arith.maximumf %305, %306 : vector<16x128xf32>
    %308 = tpu.concatenate %133, %220, %307 in 0 : vector<16x128xf32>, vector<16x128xf32>, vector<16x128xf32> -> vector<48x128xf32>
    %309 = arith.truncf %308 : vector<48x128xf32> to vector<48x128xbf16>
    %c0_127 = arith.constant 0 : index
    %c0_128 = arith.constant 0 : index
    %310 = vector.load %arg8[%c0_127, %c0_128] : memref<128x128xbf16, #tpu.memory_space<vmem>>, vector<128x128xbf16>
    %cst_129 = arith.constant dense<0.000000e+00> : vector<48x128xf32>
    %311 = tpu.matmul %309, %310, %cst_129 {dimension_numbers = #tpu.dot_dimension_numbers<[1], [0], [0], [1], [0, 0, 1, 1], [], []>} : vector<48x128xbf16>, vector<128x128xbf16>, vector<48x128xf32> -> vector<48x128xf32>
    %cst_130 = arith.constant dense<0.000000e+00> : vector<48xf32>
    %312 = vector.multi_reduction <add>, %311, %cst_130 [1] : vector<48x128xf32> to vector<48xf32>
    %313 = vector.shape_cast %312 : vector<48xf32> to vector<48x1xf32>
    %cst_131 = arith.constant 1.280000e+02 : f32
    %314 = vector.broadcast %cst_131 : f32 to vector<48x1xf32>
    %315 = arith.divf %313, %314 : vector<48x1xf32>
    %316 = vector.broadcast %315 : vector<48x1xf32> to vector<48x128xf32>
    %317 = arith.subf %311, %316 : vector<48x128xf32>
    %318 = arith.mulf %317, %317 : vector<48x128xf32>
    %cst_132 = arith.constant dense<0.000000e+00> : vector<48xf32>
    %319 = vector.multi_reduction <add>, %318, %cst_132 [1] : vector<48x128xf32> to vector<48xf32>
    %320 = vector.shape_cast %319 : vector<48xf32> to vector<48x1xf32>
    %cst_133 = arith.constant 1.280000e+02 : f32
    %321 = vector.broadcast %cst_133 : f32 to vector<48x1xf32>
    %322 = arith.divf %320, %321 : vector<48x1xf32>
    %323 = vector.broadcast %315 : vector<48x1xf32> to vector<48x128xf32>
    %324 = arith.subf %311, %323 : vector<48x128xf32>
    %cst_134 = arith.constant 9.99999974E-6 : f32
    %325 = vector.broadcast %cst_134 : f32 to vector<48x1xf32>
    %326 = arith.addf %322, %325 : vector<48x1xf32>
    %327 = math.rsqrt %326 : vector<48x1xf32>
    %328 = vector.broadcast %327 : vector<48x1xf32> to vector<48x128xf32>
    %329 = arith.mulf %324, %328 : vector<48x128xf32>
    %330 = vector.broadcast %35 : vector<1x128xf32> to vector<48x128xf32>
    %331 = arith.mulf %329, %330 : vector<48x128xf32>
    %332 = vector.broadcast %36 : vector<1x128xf32> to vector<48x128xf32>
    %333 = arith.addf %331, %332 : vector<48x128xf32>
    %cst_135 = arith.constant 0.000000e+00 : f32
    %334 = vector.broadcast %cst_135 : f32 to vector<48x128xf32>
    %335 = arith.maximumf %333, %334 : vector<48x128xf32>
    %336 = arith.truncf %335 : vector<48x128xf32> to vector<48x128xbf16>
    %c0_136 = arith.constant 0 : index
    %c0_137 = arith.constant 0 : index
    %337 = vector.load %arg9[%c0_136, %c0_137] : memref<128x128xbf16, #tpu.memory_space<vmem>>, vector<128x128xbf16>
    %cst_138 = arith.constant dense<0.000000e+00> : vector<48x128xf32>
    %338 = tpu.matmul %336, %337, %cst_138 {dimension_numbers = #tpu.dot_dimension_numbers<[1], [0], [0], [1], [0, 0, 1, 1], [], []>} : vector<48x128xbf16>, vector<128x128xbf16>, vector<48x128xf32> -> vector<48x128xf32>
    %339 = tpu.concatenate %31, %31, %31 in 0 : vector<16x128xf32>, vector<16x128xf32>, vector<16x128xf32> -> vector<48x128xf32>
    %340 = arith.addf %338, %339 : vector<48x128xf32>
    %cst_139 = arith.constant dense<0.000000e+00> : vector<48xf32>
    %341 = vector.multi_reduction <add>, %340, %cst_139 [1] : vector<48x128xf32> to vector<48xf32>
    %342 = vector.shape_cast %341 : vector<48xf32> to vector<48x1xf32>
    %cst_140 = arith.constant 1.280000e+02 : f32
    %343 = vector.broadcast %cst_140 : f32 to vector<48x1xf32>
    %344 = arith.divf %342, %343 : vector<48x1xf32>
    %345 = vector.broadcast %344 : vector<48x1xf32> to vector<48x128xf32>
    %346 = arith.subf %340, %345 : vector<48x128xf32>
    %347 = arith.mulf %346, %346 : vector<48x128xf32>
    %cst_141 = arith.constant dense<0.000000e+00> : vector<48xf32>
    %348 = vector.multi_reduction <add>, %347, %cst_141 [1] : vector<48x128xf32> to vector<48xf32>
    %349 = vector.shape_cast %348 : vector<48xf32> to vector<48x1xf32>
    %cst_142 = arith.constant 1.280000e+02 : f32
    %350 = vector.broadcast %cst_142 : f32 to vector<48x1xf32>
    %351 = arith.divf %349, %350 : vector<48x1xf32>
    %352 = vector.broadcast %344 : vector<48x1xf32> to vector<48x128xf32>
    %353 = arith.subf %340, %352 : vector<48x128xf32>
    %cst_143 = arith.constant 9.99999974E-6 : f32
    %354 = vector.broadcast %cst_143 : f32 to vector<48x1xf32>
    %355 = arith.addf %351, %354 : vector<48x1xf32>
    %356 = math.rsqrt %355 : vector<48x1xf32>
    %357 = vector.broadcast %356 : vector<48x1xf32> to vector<48x128xf32>
    %358 = arith.mulf %353, %357 : vector<48x128xf32>
    %359 = vector.broadcast %37 : vector<1x128xf32> to vector<48x128xf32>
    %360 = arith.mulf %358, %359 : vector<48x128xf32>
    %361 = vector.broadcast %38 : vector<1x128xf32> to vector<48x128xf32>
    %362 = arith.addf %360, %361 : vector<48x128xf32>
    %cst_144 = arith.constant 0.000000e+00 : f32
    %363 = vector.broadcast %cst_144 : f32 to vector<48x128xf32>
    %364 = arith.maximumf %362, %363 : vector<48x128xf32>
    %365 = arith.truncf %364 : vector<48x128xf32> to vector<48x128xbf16>
    %c0_145 = arith.constant 0 : index
    %c0_146 = arith.constant 0 : index
    %366 = vector.load %arg11[%c0_145, %c0_146] : memref<128x128xbf16, #tpu.memory_space<vmem>>, vector<128x128xbf16>
    %cst_147 = arith.constant dense<0.000000e+00> : vector<48x128xf32>
    %367 = tpu.matmul %365, %366, %cst_147 {dimension_numbers = #tpu.dot_dimension_numbers<[1], [0], [0], [1], [0, 0, 1, 1], [], []>} : vector<48x128xbf16>, vector<128x128xbf16>, vector<48x128xf32> -> vector<48x128xf32>
    %368 = vector.broadcast %39 : vector<1x128xf32> to vector<48x128xf32>
    %369 = arith.addf %367, %368 : vector<48x128xf32>
    %cst_148 = arith.constant dense<0.000000e+00> : vector<48xf32>
    %370 = vector.multi_reduction <add>, %369, %cst_148 [1] : vector<48x128xf32> to vector<48xf32>
    %371 = vector.shape_cast %370 : vector<48xf32> to vector<48x1xf32>
    %cst_149 = arith.constant 1.280000e+02 : f32
    %372 = vector.broadcast %cst_149 : f32 to vector<48x1xf32>
    %373 = arith.divf %371, %372 : vector<48x1xf32>
    %374 = vector.broadcast %373 : vector<48x1xf32> to vector<48x128xf32>
    %375 = arith.subf %369, %374 : vector<48x128xf32>
    %376 = arith.mulf %375, %375 : vector<48x128xf32>
    %cst_150 = arith.constant dense<0.000000e+00> : vector<48xf32>
    %377 = vector.multi_reduction <add>, %376, %cst_150 [1] : vector<48x128xf32> to vector<48xf32>
    %378 = vector.shape_cast %377 : vector<48xf32> to vector<48x1xf32>
    %cst_151 = arith.constant 1.280000e+02 : f32
    %379 = vector.broadcast %cst_151 : f32 to vector<48x1xf32>
    %380 = arith.divf %378, %379 : vector<48x1xf32>
    %381 = vector.broadcast %373 : vector<48x1xf32> to vector<48x128xf32>
    %382 = arith.subf %369, %381 : vector<48x128xf32>
    %cst_152 = arith.constant 9.99999974E-6 : f32
    %383 = vector.broadcast %cst_152 : f32 to vector<48x1xf32>
    %384 = arith.addf %380, %383 : vector<48x1xf32>
    %385 = math.rsqrt %384 : vector<48x1xf32>
    %386 = vector.broadcast %385 : vector<48x1xf32> to vector<48x128xf32>
    %387 = arith.mulf %382, %386 : vector<48x128xf32>
    %388 = vector.broadcast %40 : vector<1x128xf32> to vector<48x128xf32>
    %389 = arith.mulf %387, %388 : vector<48x128xf32>
    %390 = vector.broadcast %41 : vector<1x128xf32> to vector<48x128xf32>
    %391 = arith.addf %389, %390 : vector<48x128xf32>
    %cst_153 = arith.constant 0.000000e+00 : f32
    %392 = vector.broadcast %cst_153 : f32 to vector<48x128xf32>
    %393 = arith.maximumf %391, %392 : vector<48x128xf32>
    %394 = arith.truncf %393 : vector<48x128xf32> to vector<48x128xbf16>
    %c0_154 = arith.constant 0 : index
    %c0_155 = arith.constant 0 : index
    %395 = vector.load %arg12[%c0_154, %c0_155] : memref<128x128xbf16, #tpu.memory_space<vmem>>, vector<128x128xbf16>
    %cst_156 = arith.constant dense<0.000000e+00> : vector<48x128xf32>
    %396 = tpu.matmul %394, %395, %cst_156 {dimension_numbers = #tpu.dot_dimension_numbers<[1], [0], [0], [1], [0, 0, 1, 1], [], []>} : vector<48x128xbf16>, vector<128x128xbf16>, vector<48x128xf32> -> vector<48x128xf32>
    %397 = vector.broadcast %42 : vector<1x128xf32> to vector<48x128xf32>
    %398 = arith.addf %396, %397 : vector<48x128xf32>
    %cst_157 = arith.constant dense<0.000000e+00> : vector<48xf32>
    %399 = vector.multi_reduction <add>, %398, %cst_157 [1] : vector<48x128xf32> to vector<48xf32>
    %400 = vector.shape_cast %399 : vector<48xf32> to vector<48x1xf32>
    %cst_158 = arith.constant 1.280000e+02 : f32
    %401 = vector.broadcast %cst_158 : f32 to vector<48x1xf32>
    %402 = arith.divf %400, %401 : vector<48x1xf32>
    %403 = vector.broadcast %402 : vector<48x1xf32> to vector<48x128xf32>
    %404 = arith.subf %398, %403 : vector<48x128xf32>
    %405 = arith.mulf %404, %404 : vector<48x128xf32>
    %cst_159 = arith.constant dense<0.000000e+00> : vector<48xf32>
    %406 = vector.multi_reduction <add>, %405, %cst_159 [1] : vector<48x128xf32> to vector<48xf32>
    %407 = vector.shape_cast %406 : vector<48xf32> to vector<48x1xf32>
    %cst_160 = arith.constant 1.280000e+02 : f32
    %408 = vector.broadcast %cst_160 : f32 to vector<48x1xf32>
    %409 = arith.divf %407, %408 : vector<48x1xf32>
    %410 = vector.broadcast %402 : vector<48x1xf32> to vector<48x128xf32>
    %411 = arith.subf %398, %410 : vector<48x128xf32>
    %cst_161 = arith.constant 9.99999974E-6 : f32
    %412 = vector.broadcast %cst_161 : f32 to vector<48x1xf32>
    %413 = arith.addf %409, %412 : vector<48x1xf32>
    %414 = math.rsqrt %413 : vector<48x1xf32>
    %415 = vector.broadcast %414 : vector<48x1xf32> to vector<48x128xf32>
    %416 = arith.mulf %411, %415 : vector<48x128xf32>
    %417 = vector.broadcast %43 : vector<1x128xf32> to vector<48x128xf32>
    %418 = arith.mulf %416, %417 : vector<48x128xf32>
    %419 = vector.broadcast %44 : vector<1x128xf32> to vector<48x128xf32>
    %420 = arith.addf %418, %419 : vector<48x128xf32>
    %421 = arith.addf %420, %364 : vector<48x128xf32>
    %cst_162 = arith.constant 0.000000e+00 : f32
    %422 = vector.broadcast %cst_162 : f32 to vector<48x128xf32>
    %423 = arith.maximumf %421, %422 : vector<48x128xf32>
    %424 = vector.broadcast %45 : vector<1x128xf32> to vector<48x128xf32>
    %425 = arith.mulf %423, %424 : vector<48x128xf32>
    %cst_163 = arith.constant dense<0.000000e+00> : vector<48xf32>
    %426 = vector.multi_reduction <add>, %425, %cst_163 [1] : vector<48x128xf32> to vector<48xf32>
    %427 = vector.shape_cast %426 : vector<48xf32> to vector<48x1xf32>
    %428 = vector.broadcast %46 : vector<1x1xf32> to vector<48x1xf32>
    %429 = arith.addf %427, %428 : vector<48x1xf32>
    %430 = vector.extract_strided_slice %429 {offsets = [0, 0], sizes = [16, 1], strides = [1, 1]} : vector<48x1xf32> to vector<16x1xf32>
    %431 = vector.extract_strided_slice %429 {offsets = [16, 0], sizes = [16, 1], strides = [1, 1]} : vector<48x1xf32> to vector<16x1xf32>
    %432 = vector.extract_strided_slice %429 {offsets = [32, 0], sizes = [16, 1], strides = [1, 1]} : vector<48x1xf32> to vector<16x1xf32>
    %433 = arith.cmpf ogt, %431, %430 : vector<16x1xf32>
    %434 = arith.select %433, %431, %430 : vector<16x1xi1>, vector<16x1xf32>
    %435 = arith.select %433, %430, %431 : vector<16x1xi1>, vector<16x1xf32>
    %436 = vector.shape_cast %433 : vector<16x1xi1> to vector<16x1xi1>
    %437 = vector.broadcast %436 : vector<16x1xi1> to vector<16x12xi1>
    %438 = arith.select %437, %205, %118 : vector<16x12xi1>, vector<16x12xf32>
    %439 = vector.shape_cast %433 : vector<16x1xi1> to vector<16x1xi1>
    %440 = vector.broadcast %439 : vector<16x1xi1> to vector<16x12xi1>
    %441 = arith.select %440, %118, %205 : vector<16x12xi1>, vector<16x12xf32>
    %442 = arith.cmpf ogt, %432, %435 : vector<16x1xf32>
    %443 = arith.select %442, %432, %435 : vector<16x1xi1>, vector<16x1xf32>
    %444 = arith.select %442, %435, %432 : vector<16x1xi1>, vector<16x1xf32>
    %445 = vector.shape_cast %442 : vector<16x1xi1> to vector<16x1xi1>
    %446 = vector.broadcast %445 : vector<16x1xi1> to vector<16x12xi1>
    %447 = arith.select %446, %292, %441 : vector<16x12xi1>, vector<16x12xf32>
    %448 = vector.shape_cast %442 : vector<16x1xi1> to vector<16x1xi1>
    %449 = vector.broadcast %448 : vector<16x1xi1> to vector<16x12xi1>
    %450 = arith.select %449, %441, %292 : vector<16x12xi1>, vector<16x12xf32>
    %451 = arith.cmpf ogt, %443, %434 : vector<16x1xf32>
    %452 = arith.select %451, %443, %434 : vector<16x1xi1>, vector<16x1xf32>
    %453 = arith.select %451, %434, %443 : vector<16x1xi1>, vector<16x1xf32>
    %454 = vector.shape_cast %451 : vector<16x1xi1> to vector<16x1xi1>
    %455 = vector.broadcast %454 : vector<16x1xi1> to vector<16x12xi1>
    %456 = arith.select %455, %447, %438 : vector<16x12xi1>, vector<16x12xf32>
    %457 = vector.shape_cast %451 : vector<16x1xi1> to vector<16x1xi1>
    %458 = vector.broadcast %457 : vector<16x1xi1> to vector<16x12xi1>
    %459 = arith.select %458, %438, %447 : vector<16x12xi1>, vector<16x12xf32>
    %cst_164 = arith.constant 0.000000e+00 : f32
    %460 = vector.broadcast %cst_164 : f32 to vector<16x89xf32>
    %461 = tpu.concatenate %456, %459, %450, %452, %453, %444, %460 in 1 : vector<16x12xf32>, vector<16x12xf32>, vector<16x12xf32>, vector<16x1xf32>, vector<16x1xf32>, vector<16x1xf32>, vector<16x89xf32> -> vector<16x128xf32>
    %c0_165 = arith.constant 0 : index
    %c0_166 = arith.constant 0 : index
    %462 = vector.load %arg14[%c0_165, %c0_166] : memref<16x128xf32, #tpu.memory_space<vmem>>, vector<16x128xf32>
    tpu.vector_store %arg14[%c0_165, %c0_166], %461 {strides = array<i32>} : memref<16x128xf32, #tpu.memory_space<vmem>>, vector<16x128xf32>,
    return
  }
  func.func @transform_0(%arg0: i32) -> (i32, i32) {
    %c0_i32 = arith.constant 0 : i32
    %c0_i32_0 = arith.constant 0 : i32
    return %arg0, %c0_i32 : i32, i32
  }
  func.func @transform_1(%arg0: i32) -> (i32, i32) {
    %c0_i32 = arith.constant 0 : i32
    %c0_i32_0 = arith.constant 0 : i32
    return %arg0, %c0_i32 : i32, i32
  }
  func.func @transform_2(%arg0: i32) -> (i32, i32) {
    %c0_i32 = arith.constant 0 : i32
    %c0_i32_0 = arith.constant 0 : i32
    %c0_i32_1 = arith.constant 0 : i32
    return %c0_i32, %c0_i32_0 : i32, i32
  }
  func.func @transform_3(%arg0: i32) -> (i32, i32, i32) {
    %c0_i32 = arith.constant 0 : i32
    %c0_i32_0 = arith.constant 0 : i32
    %c0_i32_1 = arith.constant 0 : i32
    %c0_i32_2 = arith.constant 0 : i32
    return %c0_i32, %c0_i32_0, %c0_i32_1 : i32, i32, i32
  }
  func.func @transform_4(%arg0: i32) -> (i32, i32, i32) {
    %c0_i32 = arith.constant 0 : i32
    %c0_i32_0 = arith.constant 0 : i32
    %c0_i32_1 = arith.constant 0 : i32
    %c0_i32_2 = arith.constant 0 : i32
    return %c0_i32, %c0_i32_0, %c0_i32_1 : i32, i32, i32
  }
  func.func @transform_5(%arg0: i32) -> (i32, i32) {
    %c0_i32 = arith.constant 0 : i32
    %c0_i32_0 = arith.constant 0 : i32
    %c0_i32_1 = arith.constant 0 : i32
    return %c0_i32, %c0_i32_0 : i32, i32
  }
  func.func @transform_6(%arg0: i32) -> (i32, i32) {
    %c0_i32 = arith.constant 0 : i32
    %c0_i32_0 = arith.constant 0 : i32
    %c0_i32_1 = arith.constant 0 : i32
    return %c0_i32, %c0_i32_0 : i32, i32
  }
  func.func @transform_7(%arg0: i32) -> (i32, i32) {
    %c0_i32 = arith.constant 0 : i32
    %c0_i32_0 = arith.constant 0 : i32
    %c0_i32_1 = arith.constant 0 : i32
    return %c0_i32, %c0_i32_0 : i32, i32
  }
  func.func @transform_8(%arg0: i32) -> (i32, i32) {
    %c0_i32 = arith.constant 0 : i32
    %c0_i32_0 = arith.constant 0 : i32
    %c0_i32_1 = arith.constant 0 : i32
    return %c0_i32, %c0_i32_0 : i32, i32
  }
  func.func @transform_9(%arg0: i32) -> (i32, i32) {
    %c0_i32 = arith.constant 0 : i32
    %c0_i32_0 = arith.constant 0 : i32
    %c0_i32_1 = arith.constant 0 : i32
    return %c0_i32, %c0_i32_0 : i32, i32
  }
  func.func @transform_10(%arg0: i32) -> (i32, i32) {
    %c0_i32 = arith.constant 0 : i32
    %c0_i32_0 = arith.constant 0 : i32
    %c0_i32_1 = arith.constant 0 : i32
    return %c0_i32, %c0_i32_0 : i32, i32
  }
  func.func @transform_11(%arg0: i32) -> (i32, i32) {
    %c0_i32 = arith.constant 0 : i32
    %c0_i32_0 = arith.constant 0 : i32
    %c0_i32_1 = arith.constant 0 : i32
    return %c0_i32, %c0_i32_0 : i32, i32
  }
  func.func @transform_12(%arg0: i32) -> (i32, i32) {
    %c0_i32 = arith.constant 0 : i32
    %c0_i32_0 = arith.constant 0 : i32
    %c0_i32_1 = arith.constant 0 : i32
    return %c0_i32, %c0_i32_0 : i32, i32
  }
  func.func @transform_13(%arg0: i32) -> (i32, i32) {
    %c0_i32 = arith.constant 0 : i32
    %c0_i32_0 = arith.constant 0 : i32
    return %arg0, %c0_i32 : i32, i32
  }
}

</mosaic_0001>

<llo_original>
// kernel: tpu_custom_call.1
$region0: #{tpu_custom_call.1}
  #allocation0 [shape = 'u32[]', space=smem, size = 0x4, offset = 0x4, fixed_abs, tag = 'smem constant byte address 0x4 - core index']
  #allocation1 [shape = 'u32[144,128]{1,0:T(1,128)}', space=vmem, size = 0x12000, scoped, tag = 'internal scratch']
  %s0 = inlined_call_operand.hbm [shape: f32[10,128], index: 0, kind: input, shape index: {}]
  %s1 = inlined_call_operand.vmem [shape: f32[10,2], index: 1, kind: input, shape index: {}]
  %s2 = inlined_call_operand.hbm [shape: bf16[128,512], index: 2, kind: input, shape index: {}]
  %s3 = inlined_call_operand.vmem [shape: bf16[3,128,128], index: 3, kind: input, shape index: {}]
  %s4 = inlined_call_operand.vmem [shape: bf16[3,128,12], index: 4, kind: input, shape index: {}]
  %s5 = inlined_call_operand.hbm [shape: f32[18,128], index: 5, kind: input, shape index: {}]
  %s6 = inlined_call_operand.hbm [shape: f32[3,12], index: 6, kind: input, shape index: {}]
  %s7 = inlined_call_operand.vmem [shape: bf16[128,128], index: 7, kind: input, shape index: {}]
  %s8 = inlined_call_operand.hbm [shape: bf16[128,128], index: 8, kind: input, shape index: {}]
  %s9 = inlined_call_operand.vmem [shape: f32[7,128], index: 9, kind: input, shape index: {}]
  %s10 = inlined_call_operand.hbm [shape: bf16[128,128], index: 10, kind: input, shape index: {}]
  %s11 = inlined_call_operand.hbm [shape: bf16[128,128], index: 11, kind: input, shape index: {}]
  %s12 = inlined_call_operand.vmem [shape: f32[8,128], index: 12, kind: input, shape index: {}]
  %s13 = inlined_call_operand.hbm [shape: f32[10,128], index: 13, kind: output, shape index: {}]
  %s14 = sld [smem:[#allocation0]]
  $region90: #{tpu_custom_call.1} parent=0
    _
  %s16 = ssub.s32 1, %s14
  %s17 = scalar_select 0, %s16, %s14
  $region1: #{tpu_custom_call.1} parent=0
    #allocation2 [shape = 'u8[8192]{0}', space=vmem, size = 0x2000, scoped, tag = 'input window, operand 0, single buffered']
    #allocation3 [shape = 's32[1]{0}', space=sflag, size = 0x4, scoped, tag = 'scoped memory for tpu_custom_call.1']
    #allocation4 [shape = 's32[1]{0}', space=sflag, size = 0x4, scoped, tag = 'scoped memory for tpu_custom_call.1']
    #allocation5 [shape = 'u8[131072]{0}', space=vmem, size = 0x20000, scoped, tag = 'input window, operand 2, single buffered']
    #allocation6 [shape = 's32[1]{0}', space=sflag, size = 0x4, scoped, tag = 'scoped memory for tpu_custom_call.1']
    #allocation7 [shape = 'u8[12288]{0}', space=vmem, size = 0x3000, scoped, tag = 'input window, operand 5, single buffered']
    #allocation8 [shape = 'u8[2048]{0}', space=vmem, size = 0x800, scoped, tag = 'input window, operand 6, single buffered']
    #allocation9 [shape = 's32[1]{0}', space=sflag, size = 0x4, scoped, tag = 'scoped memory for tpu_custom_call.1']
    #allocation10 [shape = 'u8[32768]{0}', space=vmem, size = 0x8000, scoped, tag = 'input window, operand 8, single buffered']
    #allocation11 [shape = 'u8[32768]{0}', space=vmem, size = 0x8000, scoped, tag = 'input window, operand 10, single buffered']
    #allocation12 [shape = 's32[1]{0}', space=sflag, size = 0x4, scoped, tag = 'scoped memory for tpu_custom_call.1']
    #allocation13 [shape = 'u8[32768]{0}', space=vmem, size = 0x8000, scoped, tag = 'input window, operand 11, single buffered']
    #allocation14 [shape = 'u8[8192]{0}', space=vmem, size = 0x2000, scoped, tag = 'output window, operand 0, single buffered']
    %18 = vsyncpa [#allocation3], 0
    %19 = vsyncpa [#allocation6], 0
    %20 = vsyncpa [#allocation9], 0
    %21 = vsyncpa [#allocation12], 0
    %22 = vsyncpa [#allocation4], 0
    // Predicated region
    $region2: #{tpu_custom_call.1} parent=1 // pred_check
      _
    $region3: #{tpu_custom_call.1} parent=1 // pred_check_branch
      %24 = sbr.rel (0) target = $region5
    $region4: #{tpu_custom_call.1} parent=1 // pred_region
      %s26 = ssub.s32 256, 256
      %27 = vsyncadd [#allocation3], %s26
      %s28 = sshll.u32 [#allocation2], 4
      %s29 = int_to_ptr.vmem [resolvable:$true] %s28
      %34 = dma.hbm_to_vmem [thread:$0]  %s0, 256, %s29, [#allocation3], 128, 128, 8
    $region5: #{tpu_custom_call.1} parent=1 // pred_fallthru
      _
    // Predicated region
    $region6: #{tpu_custom_call.1} parent=1 // pred_check
      _
    $region7: #{tpu_custom_call.1} parent=1 // pred_check_branch
      %36 = sbr.rel (0) target = $region9
    $region8: #{tpu_custom_call.1} parent=1 // pred_region
      _
    $region9: #{tpu_custom_call.1} parent=1 // pred_fallthru
      _
    // Predicated region
    $region10: #{tpu_custom_call.1} parent=1 // pred_check
      _
    $region11: #{tpu_custom_call.1} parent=1 // pred_check_branch
      %38 = sbr.rel (0) target = $region13
    $region12: #{tpu_custom_call.1} parent=1 // pred_region
      %s40 = ssub.s32 4096, 4096
      %41 = vsyncadd [#allocation6], %s40
      %s42 = sshll.u32 [#allocation5], 4
      %s43 = int_to_ptr.vmem [resolvable:$true] %s42
      %48 = dma.hbm_to_vmem [thread:$0]  %s2, 4096, %s43, [#allocation6], 256, 256, 16
    $region13: #{tpu_custom_call.1} parent=1 // pred_fallthru
      _
    // Predicated region
    $region14: #{tpu_custom_call.1} parent=1 // pred_check
      _
    $region15: #{tpu_custom_call.1} parent=1 // pred_check_branch
      %50 = sbr.rel (0) target = $region17
    $region16: #{tpu_custom_call.1} parent=1 // pred_region
      _
    $region17: #{tpu_custom_call.1} parent=1 // pred_fallthru
      _
    // Predicated region
    $region18: #{tpu_custom_call.1} parent=1 // pred_check
      _
    $region19: #{tpu_custom_call.1} parent=1 // pred_check_branch
      %52 = sbr.rel (0) target = $region21
    $region20: #{tpu_custom_call.1} parent=1 // pred_region
      _
    $region21: #{tpu_custom_call.1} parent=1 // pred_fallthru
      _
    // Predicated region
    $region22: #{tpu_custom_call.1} parent=1 // pred_check
      _
    $region23: #{tpu_custom_call.1} parent=1 // pred_check_branch
      %54 = sbr.rel (0) target = $region25
    $region24: #{tpu_custom_call.1} parent=1 // pred_region
      %s56 = ssub.s32 384, 384
      %57 = vsyncadd [#allocation6], %s56
      %s58 = sshll.u32 [#allocation7], 4
      %s59 = int_to_ptr.vmem [resolvable:$true] %s58
      %64 = dma.hbm_to_vmem [thread:$0]  %s5, 384, %s59, [#allocation6], 128, 128, 8
    $region25: #{tpu_custom_call.1} parent=1 // pred_fallthru
      _
    // Predicated region
    $region26: #{tpu_custom_call.1} parent=1 // pred_check
      _
    $region27: #{tpu_custom_call.1} parent=1 // pred_check_branch
      %66 = sbr.rel (0) target = $region29
    $region28: #{tpu_custom_call.1} parent=1 // pred_region
      %s68 = ssub.s32 64, 64
      %69 = vsyncadd [#allocation9], %s68
      %s71 = sshll.u32 [#allocation8], 4
      %s72 = int_to_ptr.vmem [resolvable:$true] %s71
      %74 = dma.hbm_to_vmem [thread:$0]  %s6, 64, %s72, [#allocation9]
    $region29: #{tpu_custom_call.1} parent=1 // pred_fallthru
      _
    // Predicated region
    $region30: #{tpu_custom_call.1} parent=1 // pred_check
      _
    $region31: #{tpu_custom_call.1} parent=1 // pred_check_branch
      %76 = sbr.rel (0) target = $region33
    $region32: #{tpu_custom_call.1} parent=1 // pred_region
      _
    $region33: #{tpu_custom_call.1} parent=1 // pred_fallthru
      _
    // Predicated region
    $region34: #{tpu_custom_call.1} parent=1 // pred_check
      _
    $region35: #{tpu_custom_call.1} parent=1 // pred_check_branch
      %78 = sbr.rel (0) target = $region37
    $region36: #{tpu_custom_call.1} parent=1 // pred_region
      %s80 = ssub.s32 1024, 1024
      %81 = vsyncadd [#allocation9], %s80
      %s82 = sshll.u32 [#allocation10], 4
      %s83 = int_to_ptr.vmem [resolvable:$true] %s82
      %88 = dma.hbm_to_vmem [thread:$0]  %s8, 1024, %s83, [#allocation9], 64, 64, 4
    $region37: #{tpu_custom_call.1} parent=1 // pred_fallthru
      _
    // Predicated region
    $region38: #{tpu_custom_call.1} parent=1 // pred_check
      _
    $region39: #{tpu_custom_call.1} parent=1 // pred_check_branch
      %90 = sbr.rel (0) target = $region41
    $region40: #{tpu_custom_call.1} parent=1 // pred_region
      _
    $region41: #{tpu_custom_call.1} parent=1 // pred_fallthru
      _
    // Predicated region
    $region42: #{tpu_custom_call.1} parent=1 // pred_check
      _
    $region43: #{tpu_custom_call.1} parent=1 // pred_check_branch
      %92 = sbr.rel (0) target = $region45
    $region44: #{tpu_custom_call.1} parent=1 // pred_region
      %s94 = ssub.s32 1024, 1024
      %95 = vsyncadd [#allocation12], %s94
      %s96 = sshll.u32 [#allocation11], 4
      %s97 = int_to_ptr.vmem [resolvable:$true] %s96
      %102 = dma.hbm_to_vmem [thread:$0]  %s10, 1024, %s97, [#allocation12], 64, 64, 4
    $region45: #{tpu_custom_call.1} parent=1 // pred_fallthru
      _
    // Predicated region
    $region46: #{tpu_custom_call.1} parent=1 // pred_check
      _
    $region47: #{tpu_custom_call.1} parent=1 // pred_check_branch
      %104 = sbr.rel (0) target = $region49
    $region48: #{tpu_custom_call.1} parent=1 // pred_region
      %s106 = ssub.s32 1024, 1024
      %107 = vsyncadd [#allocation12], %s106
      %s108 = sshll.u32 [#allocation13], 4
      %s109 = int_to_ptr.vmem [resolvable:$true] %s108
      %114 = dma.hbm_to_vmem [thread:$0]  %s11, 1024, %s109, [#allocation12], 64, 64, 4
    $region49: #{tpu_custom_call.1} parent=1 // pred_fallthru
      _
    // Predicated region
    $region50: #{tpu_custom_call.1} parent=1 // pred_check
      _
    $region51: #{tpu_custom_call.1} parent=1 // pred_check_branch
      %116 = sbr.rel (0) target = $region53
    $region52: #{tpu_custom_call.1} parent=1 // pred_region
      _
    $region53: #{tpu_custom_call.1} parent=1 // pred_fallthru
      _
    // Predicated region
    $region54: #{tpu_custom_call.1} parent=1 // pred_check
      _
    $region55: #{tpu_custom_call.1} parent=1 // pred_check_branch
      %118 = sbr.rel (0) target = $region57
    $region56: #{tpu_custom_call.1} parent=1 // pred_region
      %119 = dma.done [#allocation3], 256
    $region57: #{tpu_custom_call.1} parent=1 // pred_fallthru
      _
    // Predicated region
    $region58: #{tpu_custom_call.1} parent=1 // pred_check
      _
    $region59: #{tpu_custom_call.1} parent=1 // pred_check_branch
      %121 = sbr.rel (0) target = $region61
    $region60: #{tpu_custom_call.1} parent=1 // pred_region
      %122 = dma.done [#allocation6], 4096
    $region61: #{tpu_custom_call.1} parent=1 // pred_fallthru
      _
    // Predicated region
    $region62: #{tpu_custom_call.1} parent=1 // pred_check
      _
    $region63: #{tpu_custom_call.1} parent=1 // pred_check_branch
      %124 = sbr.rel (0) target = $region65
    $region64: #{tpu_custom_call.1} parent=1 // pred_region
      %125 = dma.done [#allocation6], 384
    $region65: #{tpu_custom_call.1} parent=1 // pred_fallthru
      _
    // Predicated region
    $region66: #{tpu_custom_call.1} parent=1 // pred_check
      _
    $region67: #{tpu_custom_call.1} parent=1 // pred_check_branch
      %127 = sbr.rel (0) target = $region69
    $region68: #{tpu_custom_call.1} parent=1 // pred_region
      %128 = dma.done [#allocation9], 64
    $region69: #{tpu_custom_call.1} parent=1 // pred_fallthru
      _
    // Predicated region
    $region70: #{tpu_custom_call.1} parent=1 // pred_check
      _
    $region71: #{tpu_custom_call.1} parent=1 // pred_check_branch
      %130 = sbr.rel (0) target = $region73
    $region72: #{tpu_custom_call.1} parent=1 // pred_region
      %131 = dma.done [#allocation9], 1024
    $region73: #{tpu_custom_call.1} parent=1 // pred_fallthru
      _
    // Predicated region
    $region74: #{tpu_custom_call.1} parent=1 // pred_check
      _
    $region75: #{tpu_custom_call.1} parent=1 // pred_check_branch
      %133 = sbr.rel (0) target = $region77
    $region76: #{tpu_custom_call.1} parent=1 // pred_region
      %134 = dma.done [#allocation12], 1024
    $region77: #{tpu_custom_call.1} parent=1 // pred_fallthru
      _
    // Predicated region
    $region78: #{tpu_custom_call.1} parent=1 // pred_check
      _
    $region79: #{tpu_custom_call.1} parent=1 // pred_check_branch
      %136 = sbr.rel (0) target = $region81
    $region80: #{tpu_custom_call.1} parent=1 // pred_region
      %137 = dma.done [#allocation12], 1024
    $region81: #{tpu_custom_call.1} parent=1 // pred_fallthru
      _
    %v139 = vld [vmem:[#allocation2] sm:$0xff]
    %v140 = vld [vmem:[#allocation2 + $0x8] sm:$0xff]
    %v141 = vpack.c.bf16 %v140, %v139
    %v142 = vld [vmem:[%s1] sm:$0xff]
    %v143 = vld [vmem:[%s1 + $0x8] sm:$0xff]
    %v144 = vlaneseq
    %v145 = vand.u32 %v144, 127
    %vm146 = vcmp.lt.s32.totalorder %v145, 0
    %v147 = vsub.s32 0, %v145
    %v148 = vsel %vm146, %v147, %v145
    %v149 = vshrl.u32 %v148, 1
    %v150 = vand.u32 %v148, 1
    %v151 = vsub.s32 0, %v150
    %v152 = vsel %vm146, %v151, %v150
    %vm153 = vcmp.ne.s32.totalorder %v152, 0
    %vm154 = vcmp.lt.s32.totalorder %v152, 0
    %vm155 = vmand %vm154, %vm153
    %v156 = vadd.s32 %v152, 2
    %v157 = vsel %vm155, %v156, %v152
    %vm158 = vcmp.eq.s32.totalorder %v157, 0
    %160 = vset.pattern.permute.xlu0 0
    %161 = vperm.xlu0 %160, %v142
    %v162 = vpop.permute.xlu0 %161
    %165 = vset.pattern.permute.xlu0 0
    %166 = vperm.xlu0 %165, %v143
    %v167 = vpop.permute.xlu0 %166
    %169 = vset.pattern.permute.xlu0 1
    %170 = vperm.xlu0 %169, %v142
    %v171 = vpop.permute.xlu0 %170
    %173 = vset.pattern.permute.xlu0 1
    %174 = vperm.xlu0 %173, %v143
    %v175 = vpop.permute.xlu0 %174
    %v177 = vsel %vm158, %v162, %v171
    %v178 = vsel %vm158, %v167, %v175
    %v179 = vld [vmem:[#allocation5] sm:$0xff]
    %v180 = vld [vmem:[#allocation5 + $0x8] sm:$0xff]
    %v181 = vld [vmem:[#allocation5 + $0x10] sm:$0xff]
    %v182 = vld [vmem:[#allocation5 + $0x18] sm:$0xff]
    %v183 = vld [vmem:[#allocation5 + $0x20] sm:$0xff]
    %v184 = vld [vmem:[#allocation5 + $0x28] sm:$0xff]
    %v185 = vld [vmem:[#allocation5 + $0x30] sm:$0xff]
    %v186 = vld [vmem:[#allocation5 + $0x38] sm:$0xff]
    %v187 = vld [vmem:[#allocation5 + $0x40] sm:$0xff]
    %v188 = vld [vmem:[#allocation5 + $0x48] sm:$0xff]
    %v189 = vld [vmem:[#allocation5 + $0x50] sm:$0xff]
    %v190 = vld [vmem:[#allocation5 + $0x58] sm:$0xff]
    %v191 = vld [vmem:[#allocation5 + $0x60] sm:$0xff]
    %v192 = vld [vmem:[#allocation5 + $0x68] sm:$0xff]
    %v193 = vld [vmem:[#allocation5 + $0x70] sm:$0xff]
    %v194 = vld [vmem:[#allocation5 + $0x78] sm:$0xff]
    %v195 = vld [vmem:[#allocation5 + $0x80] sm:$0xff]
    %v196 = vld [vmem:[#allocation5 + $0x88] sm:$0xff]
    %v197 = vld [vmem:[#allocation5 + $0x90] sm:$0xff]
    %v198 = vld [vmem:[#allocation5 + $0x98] sm:$0xff]
    %v199 = vld [vmem:[#allocation5 + $0xa0] sm:$0xff]
    %v200 = vld [vmem:[#allocation5 + $0xa8] sm:$0xff]
    %v201 = vld [vmem:[#allocation5 + $0xb0] sm:$0xff]
    %v202 = vld [vmem:[#allocation5 + $0xb8] sm:$0xff]
    %v203 = vld [vmem:[#allocation5 + $0xc0] sm:$0xff]
    %v204 = vld [vmem:[#allocation5 + $0xc8] sm:$0xff]
    %v205 = vld [vmem:[#allocation5 + $0xd0] sm:$0xff]
    %v206 = vld [vmem:[#allocation5 + $0xd8] sm:$0xff]
    %v207 = vld [vmem:[#allocation5 + $0xe0] sm:$0xff]
    %v208 = vld [vmem:[#allocation5 + $0xe8] sm:$0xff]
    %v209 = vld [vmem:[#allocation5 + $0xf0] sm:$0xff]
    %v210 = vld [vmem:[#allocation5 + $0xf8] sm:$0xff]
    %v243 = vunpack.c.l.b16 %v179
    %v244 = vunpack.c.h.b16 %v179
    %v245 = vunpack.c.l.b16 %v180
    %v246 = vunpack.c.h.b16 %v180
    %v247 = vunpack.c.l.b16 %v181
    %v248 = vunpack.c.h.b16 %v181
    %v249 = vunpack.c.l.b16 %v182
    %v250 = vunpack.c.h.b16 %v182
    %v251 = vunpack.c.l.b16 %v183
    %v252 = vunpack.c.h.b16 %v183
    %v253 = vunpack.c.l.b16 %v184
    %v254 = vunpack.c.h.b16 %v184
    %v255 = vunpack.c.l.b16 %v185
    %v256 = vunpack.c.h.b16 %v185
    %v257 = vunpack.c.l.b16 %v186
    %v258 = vunpack.c.h.b16 %v186
    %v259 = vunpack.c.l.b16 %v187
    %v260 = vunpack.c.h.b16 %v187
    %v261 = vunpack.c.l.b16 %v188
    %v262 = vunpack.c.h.b16 %v188
    %v263 = vunpack.c.l.b16 %v189
    %v264 = vunpack.c.h.b16 %v189
    %v265 = vunpack.c.l.b16 %v190
    %v266 = vunpack.c.h.b16 %v190
    %v267 = vunpack.c.l.b16 %v191
    %v268 = vunpack.c.h.b16 %v191
    %v269 = vunpack.c.l.b16 %v192
    %v270 = vunpack.c.h.b16 %v192
    %v271 = vunpack.c.l.b16 %v193
    %v272 = vunpack.c.h.b16 %v193
    %v273 = vunpack.c.l.b16 %v194
    %v274 = vunpack.c.h.b16 %v194
    %v275 = vunpack.c.l.b16 %v195
    %v276 = vunpack.c.h.b16 %v195
    %v277 = vunpack.c.l.b16 %v196
    %v278 = vunpack.c.h.b16 %v196
    %v279 = vunpack.c.l.b16 %v197
    %v280 = vunpack.c.h.b16 %v197
    %v281 = vunpack.c.l.b16 %v198
    %v282 = vunpack.c.h.b16 %v198
    %v283 = vunpack.c.l.b16 %v199
    %v284 = vunpack.c.h.b16 %v199
    %v285 = vunpack.c.l.b16 %v200
    %v286 = vunpack.c.h.b16 %v200
    %v287 = vunpack.c.l.b16 %v201
    %v288 = vunpack.c.h.b16 %v201
    %v289 = vunpack.c.l.b16 %v202
    %v290 = vunpack.c.h.b16 %v202
    %v291 = vunpack.c.l.b16 %v203
    %v292 = vunpack.c.h.b16 %v203
    %v293 = vunpack.c.l.b16 %v204
    %v294 = vunpack.c.h.b16 %v204
    %v295 = vunpack.c.l.b16 %v205
    %v296 = vunpack.c.h.b16 %v205
    %v297 = vunpack.c.l.b16 %v206
    %v298 = vunpack.c.h.b16 %v206
    %v299 = vunpack.c.l.b16 %v207
    %v300 = vunpack.c.h.b16 %v207
    %v301 = vunpack.c.l.b16 %v208
    %v302 = vunpack.c.h.b16 %v208
    %v303 = vunpack.c.l.b16 %v209
    %v304 = vunpack.c.h.b16 %v209
    %v305 = vunpack.c.l.b16 %v210
    %v306 = vunpack.c.h.b16 %v210
    %v307 = vpack.c.b16 %v247, %v243
    %v308 = vpack.c.b16 %v248, %v244
    %v309 = vpack.c.b16 %v249, %v245
    %v310 = vpack.c.b16 %v250, %v246
    %v311 = vpack.c.b16 %v255, %v251
    %v312 = vpack.c.b16 %v256, %v252
    %v313 = vpack.c.b16 %v257, %v253
    %v314 = vpack.c.b16 %v258, %v254
    %v315 = vpack.c.b16 %v263, %v259
    %v316 = vpack.c.b16 %v264, %v260
    %v317 = vpack.c.b16 %v265, %v261
    %v318 = vpack.c.b16 %v266, %v262
    %v319 = vpack.c.b16 %v271, %v267
    %v320 = vpack.c.b16 %v272, %v268
    %v321 = vpack.c.b16 %v273, %v269
    %v322 = vpack.c.b16 %v274, %v270
    %v323 = vpack.c.b16 %v279, %v275
    %v324 = vpack.c.b16 %v280, %v276
    %v325 = vpack.c.b16 %v281, %v277
    %v326 = vpack.c.b16 %v282, %v278
    %v327 = vpack.c.b16 %v287, %v283
    %v328 = vpack.c.b16 %v288, %v284
    %v329 = vpack.c.b16 %v289, %v285
    %v330 = vpack.c.b16 %v290, %v286
    %v331 = vpack.c.b16 %v295, %v291
    %v332 = vpack.c.b16 %v296, %v292
    %v333 = vpack.c.b16 %v297, %v293
    %v334 = vpack.c.b16 %v298, %v294
    %v335 = vpack.c.b16 %v303, %v299
    %v336 = vpack.c.b16 %v304, %v300
    %v337 = vpack.c.b16 %v305, %v301
    %v338 = vpack.c.b16 %v306, %v302
    %371 = vmatprep.subr.bf16.mxu0 %v308
    %372 = vmatpush1.bf16.msra.mxu0 %v307
    %373 = vmatprep.subr.bf16.mxu0 %v312
    %374 = vmatpush1.bf16.msra.mxu0 %v311
    %375 = vmatprep.subr.bf16.mxu0 %v316
    %376 = vmatpush1.bf16.msra.mxu0 %v315
    %377 = vmatprep.subr.bf16.mxu0 %v320
    %378 = vmatpush1.bf16.msra.mxu0 %v319
    %379 = vmatprep.subr.bf16.mxu0 %v324
    %380 = vmatpush1.bf16.msra.mxu0 %v323
    %381 = vmatprep.subr.bf16.mxu0 %v328
    %382 = vmatpush1.bf16.msra.mxu0 %v327
    %383 = vmatprep.subr.bf16.mxu0 %v332
    %384 = vmatpush1.bf16.msra.mxu0 %v331
    %385 = vmatprep.subr.bf16.mxu0 %v336
    %386 = vmatpush1.bf16.msra.mxu0 %v335
    %387 = vmatprep.subr.bf16.mxu0 0
    %388 = vmatpush1.bf16.msra.mxu0 0
    %389 = vmatprep.subr.bf16.mxu0 0
    %390 = vmatpush1.bf16.msra.mxu0 0
    %391 = vmatprep.subr.bf16.mxu0 0
    %392 = vmatpush1.bf16.msra.mxu0 0
    %393 = vmatprep.subr.bf16.mxu0 0
    %394 = vmatpush1.bf16.msra.mxu0 0
    %395 = vmatprep.subr.bf16.mxu0 0
    %396 = vmatpush1.bf16.msra.mxu0 0
    %397 = vmatprep.subr.bf16.mxu0 0
    %398 = vmatpush1.bf16.msra.mxu0 0
    %399 = vmatprep.subr.bf16.mxu0 0
    %400 = vmatpush1.bf16.msra.mxu0 0
    %401 = vmatprep.subr.bf16.mxu0 0
    %402 = vmatpush1.bf16.msra.mxu0 0
    %403 = vmatprep.mubr.bf16.mxu0 0
    %404 = vmatmul.mubr.bf16.gmra.mrb[0].mxu0 %v141
    %v405 = vpop.f32.mrb[0].mxu0
    %v406 = vadd.f32 0.0, %v405
    %v407 = vpop.f32.mrb[0].mxu0
    %v408 = vadd.f32 0.0, %v407
    %v409 = vpop.f32.mrb[0].mxu0
    %v410 = vadd.f32 0.0, %v409
    %v411 = vpop.f32.mrb[0].mxu0
    %v412 = vadd.f32 0.0, %v411
    %413 = vdwg.mxu0
    %414 = vmatprep.subr.bf16.mxu0 %v310
    %415 = vmatpush1.bf16.msra.mxu0 %v309
    %416 = vmatprep.subr.bf16.mxu0 %v314
    %417 = vmatpush1.bf16.msra.mxu0 %v313
    %418 = vmatprep.subr.bf16.mxu0 %v318
    %419 = vmatpush1.bf16.msra.mxu0 %v317
    %420 = vmatprep.subr.bf16.mxu0 %v322
    %421 = vmatpush1.bf16.msra.mxu0 %v321
    %422 = vmatprep.subr.bf16.mxu0 %v326
    %423 = vmatpush1.bf16.msra.mxu0 %v325
    %424 = vmatprep.subr.bf16.mxu0 %v330
    %425 = vmatpush1.bf16.msra.mxu0 %v329
    %426 = vmatprep.subr.bf16.mxu0 %v334
    %427 = vmatpush1.bf16.msra.mxu0 %v333
    %428 = vmatprep.subr.bf16.mxu0 %v338
    %429 = vmatpush1.bf16.msra.mxu0 %v337
    %430 = vmatprep.subr.bf16.mxu0 0
    %431 = vmatpush1.bf16.msra.mxu0 0
    %432 = vmatprep.subr.bf16.mxu0 0
    %433 = vmatpush1.bf16.msra.mxu0 0
    %434 = vmatprep.subr.bf16.mxu0 0
    %435 = vmatpush1.bf16.msra.mxu0 0
    %436 = vmatprep.subr.bf16.mxu0 0
    %437 = vmatpush1.bf16.msra.mxu0 0
    %438 = vmatprep.subr.bf16.mxu0 0
    %439 = vmatpush1.bf16.msra.mxu0 0
    %440 = vmatprep.subr.bf16.mxu0 0
    %441 = vmatpush1.bf16.msra.mxu0 0
    %442 = vmatprep.subr.bf16.mxu0 0
    %443 = vmatpush1.bf16.msra.mxu0 0
    %444 = vmatprep.subr.bf16.mxu0 0
    %445 = vmatpush1.bf16.msra.mxu0 0
    %446 = vmatprep.mubr.bf16.mxu0 0
    %447 = vmatmul.mubr.bf16.gmra.mrb[0].mxu0 %v141
    %v448 = vpop.f32.mrb[0].mxu0
    %v449 = vadd.f32 0.0, %v448
    %v450 = vpop.f32.mrb[0].mxu0
    %v451 = vadd.f32 0.0, %v450
    %v452 = vpop.f32.mrb[0].mxu0
    %v453 = vadd.f32 0.0, %v452
    %v454 = vpop.f32.mrb[0].mxu0
    %v455 = vadd.f32 0.0, %v454
    %456 = vdwg.mxu0
    %v457 = vld [vmem:[%s9] sm:$0x1]
    %v458 = vld [vmem:[%s9 + $0x1] sm:$0x1]
    %v459 = vld [vmem:[%s9 + $0x2] sm:$0x1]
    %v460 = vld [vmem:[%s9 + $0x3] sm:$0x1]
    %v461 = vld [vmem:[%s9 + $0x4] sm:$0x1]
    %v462 = vld [vmem:[%s9 + $0x5] sm:$0x1]
    %v463 = vld [vmem:[%s9 + $0x6] sm:$0x1]
    %v464 = vld [vmem:[%s12] sm:$0x1]
    %v465 = vld [vmem:[%s12 + $0x1] sm:$0x1]
    %v466 = vld [vmem:[%s12 + $0x2] sm:$0x1]
    %v467 = vld [vmem:[%s12 + $0x3] sm:$0x1]
    %v468 = vld [vmem:[%s12 + $0x4] sm:$0x1]
    %v469 = vld [vmem:[%s12 + $0x5] sm:$0x1]
    %v470 = vld [vmem:[%s12 + $0x6] sm:$0x1]
    %v471 = vld [vmem:[%s12 + $0x7] sm:$0x1]
    %v472 = vld [vmem:[#allocation7] sm:$0x1]
    %v473 = vld [vmem:[#allocation7 + $0x1] sm:$0x1]
    %v474 = vld [vmem:[#allocation7 + $0x2] sm:$0x1]
    %v475 = vld [vmem:[#allocation7 + $0x3] sm:$0x1]
    %v476 = vld [vmem:[#allocation7 + $0x4] sm:$0x1]
    %v477 = vld [vmem:[#allocation7 + $0x5] sm:$0x1]
    %v478 = vlaneseq
    %v479 = vshrl.u32 %v478, 7
    %v480 = vsub.s32 0, %v479
    %v481 = vrot.slane %v472, %v480
    %v482 = vadd.f32 %v406, %v481
    %v483 = vadd.f32 %v410, %v481
    %484 = vadd.xlane.f32.xlu0 %v482
    %v485 = vpop.xlane.xlu0 %484
    %486 = vadd.xlane.f32.xlu0 %v483
    %v487 = vpop.xlane.xlu0 %486
    %v488 = vrcp.pop 128.0
    %v489 = vmul.f32 %v485, %v488
    %v490 = vmul.f32 %v487, %v488
    %v491 = vsub.f32 %v482, %v489
    %v492 = vsub.f32 %v483, %v490
    %v493 = vmul.f32 %v491, %v491
    %v494 = vmul.f32 %v492, %v492
    %495 = vadd.xlane.f32.xlu0 %v493
    %v496 = vpop.xlane.xlu0 %495
    %497 = vadd.xlane.f32.xlu0 %v494
    %v498 = vpop.xlane.xlu0 %497
    %v499 = vmul.f32 %v496, %v488
    %v500 = vmul.f32 %v498, %v488
    %v501 = vadd.f32 %v499, 1e-05
    %v502 = vadd.f32 %v500, 1e-05
    %v503 = vrsqrt.pop %v501
    %v504 = vrsqrt.pop %v502
    %v505 = vmul.f32 %v491, %v503
    %v506 = vmul.f32 %v492, %v504
    %v507 = vlaneseq
    %v508 = vshrl.u32 %v507, 7
    %v509 = vsub.s32 0, %v508
    %v510 = vrot.slane %v473, %v509
    %v511 = vmul.f32 %v505, %v510
    %v512 = vmul.f32 %v506, %v510
    %v513 = vlaneseq
    %v514 = vshrl.u32 %v513, 7
    %v515 = vsub.s32 0, %v514
    %v516 = vrot.slane %v474, %v515
    %v517 = vadd.f32 %v511, %v516
    %v518 = vadd.f32 %v512, %v516
    %v519 = vmax.f32 %v517, 0.0
    %v520 = vmax.f32 %v518, 0.0
    %v521 = vpack.c.bf16 %v520, %v519
    %v522 = vld [vmem:[%s3] sm:$0xf]
    %v523 = vld [vmem:[%s3 + $0x4] sm:$0xf]
    %v524 = vld [vmem:[%s3 + $0x8] sm:$0xf]
    %v525 = vld [vmem:[%s3 + $0xc] sm:$0xf]
    %v526 = vld [vmem:[%s3 + $0x10] sm:$0xf]
    %v527 = vld [vmem:[%s3 + $0x14] sm:$0xf]
    %v528 = vld [vmem:[%s3 + $0x18] sm:$0xf]
    %v529 = vld [vmem:[%s3 + $0x1c] sm:$0xf]
    %v530 = vld [vmem:[%s3 + $0x20] sm:$0xf]
    %v531 = vld [vmem:[%s3 + $0x24] sm:$0xf]
    %v532 = vld [vmem:[%s3 + $0x28] sm:$0xf]
    %v533 = vld [vmem:[%s3 + $0x2c] sm:$0xf]
    %v534 = vld [vmem:[%s3 + $0x30] sm:$0xf]
    %v535 = vld [vmem:[%s3 + $0x34] sm:$0xf]
    %v536 = vld [vmem:[%s3 + $0x38] sm:$0xf]
    %v537 = vld [vmem:[%s3 + $0x3c] sm:$0xf]
    %v538 = vlaneseq
    %v539 = vshrl.u32 %v538, 7
    %v540 = vsub.s32 0, %v539
    %v541 = vrot.slane %v475, %v540
    %v558 = vunpack.c.l.b16 %v522
    %v559 = vunpack.c.l.b16 %v523
    %v560 = vunpack.c.l.b16 %v524
    %v561 = vunpack.c.l.b16 %v525
    %v562 = vunpack.c.l.b16 %v526
    %v563 = vunpack.c.l.b16 %v527
    %v564 = vunpack.c.l.b16 %v528
    %v565 = vunpack.c.l.b16 %v529
    %v566 = vunpack.c.l.b16 %v530
    %v567 = vunpack.c.l.b16 %v531
    %v568 = vunpack.c.l.b16 %v532
    %v569 = vunpack.c.l.b16 %v533
    %v570 = vunpack.c.l.b16 %v534
    %v571 = vunpack.c.l.b16 %v535
    %v572 = vunpack.c.l.b16 %v536
    %v573 = vunpack.c.l.b16 %v537
    %v574 = vpack.c.b16 %v559, %v558
    %v575 = vpack.c.b16 %v561, %v560
    %v576 = vpack.c.b16 %v563, %v562
    %v577 = vpack.c.b16 %v565, %v564
    %v578 = vpack.c.b16 %v567, %v566
    %v579 = vpack.c.b16 %v569, %v568
    %v580 = vpack.c.b16 %v571, %v570
    %v581 = vpack.c.b16 %v573, %v572
    %590 = vmatprep.subr.bf16.mxu0 0
    %591 = vmatpush1.bf16.msra.mxu0 %v574
    %592 = vmatprep.subr.bf16.mxu0 0
    %593 = vmatpush1.bf16.msra.mxu0 %v575
    %594 = vmatprep.subr.bf16.mxu0 0
    %595 = vmatpush1.bf16.msra.mxu0 %v576
    %596 = vmatprep.subr.bf16.mxu0 0
    %597 = vmatpush1.bf16.msra.mxu0 %v577
    %598 = vmatprep.subr.bf16.mxu0 0
    %599 = vmatpush1.bf16.msra.mxu0 %v578
    %600 = vmatprep.subr.bf16.mxu0 0
    %601 = vmatpush1.bf16.msra.mxu0 %v579
    %602 = vmatprep.subr.bf16.mxu0 0
    %603 = vmatpush1.bf16.msra.mxu0 %v580
    %604 = vmatprep.subr.bf16.mxu0 0
    %605 = vmatpush1.bf16.msra.mxu0 %v581
    %606 = vmatprep.subr.bf16.mxu0 0
    %607 = vmatpush1.bf16.msra.mxu0 0
    %608 = vmatprep.subr.bf16.mxu0 0
    %609 = vmatpush1.bf16.msra.mxu0 0
    %610 = vmatprep.subr.bf16.mxu0 0
    %611 = vmatpush1.bf16.msra.mxu0 0
    %612 = vmatprep.subr.bf16.mxu0 0
    %613 = vmatpush1.bf16.msra.mxu0 0
    %614 = vmatprep.subr.bf16.mxu0 0
    %615 = vmatpush1.bf16.msra.mxu0 0
    %616 = vmatprep.subr.bf16.mxu0 0
    %617 = vmatpush1.bf16.msra.mxu0 0
    %618 = vmatprep.subr.bf16.mxu0 0
    %619 = vmatpush1.bf16.msra.mxu0 0
    %620 = vmatprep.subr.bf16.mxu0 0
    %621 = vmatpush1.bf16.msra.mxu0 0
    %622 = vmatprep.mubr.bf16.mxu0 0
    %623 = vmatmul.mubr.bf16.gmra.mrb[0].mxu0 %v521
    %v624 = vpop.f32.mrb[0].mxu0
    %v625 = vadd.f32 %v541, %v624
    %v626 = vpop.f32.mrb[0].mxu0
    %v627 = vpop.f32.mrb[0].mxu0
    %v628 = vadd.f32 %v541, %v627
    %v629 = vpop.f32.mrb[0].mxu0
    %630 = vdwg.mxu0
    %631 = vadd.xlane.f32.xlu0 %v625
    %v632 = vpop.xlane.xlu0 %631
    %633 = vadd.xlane.f32.xlu0 %v628
    %v634 = vpop.xlane.xlu0 %633
    %v635 = vmul.f32 %v632, %v488
    %v636 = vmul.f32 %v634, %v488
    %v637 = vsub.f32 %v625, %v635
    %v638 = vsub.f32 %v628, %v636
    %v639 = vmul.f32 %v637, %v637
    %v640 = vmul.f32 %v638, %v638
    %641 = vadd.xlane.f32.xlu0 %v639
    %v642 = vpop.xlane.xlu0 %641
    %643 = vadd.xlane.f32.xlu0 %v640
    %v644 = vpop.xlane.xlu0 %643
    %v645 = vmul.f32 %v642, %v488
    %v646 = vmul.f32 %v644, %v488
    %v647 = vadd.f32 %v645, 1e-05
    %v648 = vadd.f32 %v646, 1e-05
    %v649 = vrsqrt.pop %v647
    %v650 = vrsqrt.pop %v648
    %v651 = vmul.f32 %v637, %v649
    %v652 = vmul.f32 %v638, %v650
    %v653 = vlaneseq
    %v654 = vshrl.u32 %v653, 7
    %v655 = vsub.s32 0, %v654
    %v656 = vrot.slane %v476, %v655
    %v657 = vmul.f32 %v651, %v656
    %v658 = vmul.f32 %v652, %v656
    %v659 = vlaneseq
    %v660 = vshrl.u32 %v659, 7
    %v661 = vsub.s32 0, %v660
    %v662 = vrot.slane %v477, %v661
    %v663 = vadd.f32 %v657, %v662
    %v664 = vadd.f32 %v658, %v662
    %v665 = vadd.f32 %v663, %v139
    %v666 = vadd.f32 %v664, %v140
    %v667 = vmax.f32 %v665, 0.0
    %v668 = vmax.f32 %v666, 0.0
    %v669 = vpack.c.bf16 %v668, %v667
    %v670 = vld [vmem:[%s4] sm:$0xf]
    %v671 = vld [vmem:[%s4 + $0x4] sm:$0xf]
    %v672 = vld [vmem:[%s4 + $0x8] sm:$0xf]
    %v673 = vld [vmem:[%s4 + $0xc] sm:$0xf]
    %v674 = vld [vmem:[%s4 + $0x10] sm:$0xf]
    %v675 = vld [vmem:[%s4 + $0x14] sm:$0xf]
    %v676 = vld [vmem:[%s4 + $0x18] sm:$0xf]
    %v677 = vld [vmem:[%s4 + $0x1c] sm:$0xf]
    %v678 = vld [vmem:[%s4 + $0x20] sm:$0xf]
    %v679 = vld [vmem:[%s4 + $0x24] sm:$0xf]
    %v680 = vld [vmem:[%s4 + $0x28] sm:$0xf]
    %v681 = vld [vmem:[%s4 + $0x2c] sm:$0xf]
    %v682 = vld [vmem:[%s4 + $0x30] sm:$0xf]
    %v683 = vld [vmem:[%s4 + $0x34] sm:$0xf]
    %v684 = vld [vmem:[%s4 + $0x38] sm:$0xf]
    %v685 = vld [vmem:[%s4 + $0x3c] sm:$0xf]
    %v686 = vld [vmem:[#allocation8] sm:$0x1]
    %v687 = vlaneseq
    %v688 = vshrl.u32 %v687, 7
    %v689 = vsub.s32 0, %v688
    %v690 = vrot.slane %v686, %v689
    %v707 = vunpack.c.l.b16 %v670
    %v708 = vunpack.c.l.b16 %v671
    %v709 = vunpack.c.l.b16 %v672
    %v710 = vunpack.c.l.b16 %v673
    %v711 = vunpack.c.l.b16 %v674
    %v712 = vunpack.c.l.b16 %v675
    %v713 = vunpack.c.l.b16 %v676
    %v714 = vunpack.c.l.b16 %v677
    %v715 = vunpack.c.l.b16 %v678
    %v716 = vunpack.c.l.b16 %v679
    %v717 = vunpack.c.l.b16 %v680
    %v718 = vunpack.c.l.b16 %v681
    %v719 = vunpack.c.l.b16 %v682
    %v720 = vunpack.c.l.b16 %v683
    %v721 = vunpack.c.l.b16 %v684
    %v722 = vunpack.c.l.b16 %v685
    %v723 = vpack.c.b16 %v708, %v707
    %v724 = vpack.c.b16 %v710, %v709
    %v725 = vpack.c.b16 %v712, %v711
    %v726 = vpack.c.b16 %v714, %v713
    %v727 = vpack.c.b16 %v716, %v715
    %v728 = vpack.c.b16 %v718, %v717
    %v729 = vpack.c.b16 %v720, %v719
    %v730 = vpack.c.b16 %v722, %v721
    %739 = vmatprep.subr.bf16.mxu0 0
    %740 = vmatpush1.bf16.msra.mxu0 %v723
    %741 = vmatprep.subr.bf16.mxu0 0
    %742 = vmatpush1.bf16.msra.mxu0 %v724
    %743 = vmatprep.subr.bf16.mxu0 0
    %744 = vmatpush1.bf16.msra.mxu0 %v725
    %745 = vmatprep.subr.bf16.mxu0 0
    %746 = vmatpush1.bf16.msra.mxu0 %v726
    %747 = vmatprep.subr.bf16.mxu0 0
    %748 = vmatpush1.bf16.msra.mxu0 %v727
    %749 = vmatprep.subr.bf16.mxu0 0
    %750 = vmatpush1.bf16.msra.mxu0 %v728
    %751 = vmatprep.subr.bf16.mxu0 0
    %752 = vmatpush1.bf16.msra.mxu0 %v729
    %753 = vmatprep.subr.bf16.mxu0 0
    %754 = vmatpush1.bf16.msra.mxu0 %v730
    %755 = vmatprep.subr.bf16.mxu0 0
    %756 = vmatpush1.bf16.msra.mxu0 0
    %757 = vmatprep.subr.bf16.mxu0 0
    %758 = vmatpush1.bf16.msra.mxu0 0
    %759 = vmatprep.subr.bf16.mxu0 0
    %760 = vmatpush1.bf16.msra.mxu0 0
    %761 = vmatprep.subr.bf16.mxu0 0
    %762 = vmatpush1.bf16.msra.mxu0 0
    %763 = vmatprep.subr.bf16.mxu0 0
    %764 = vmatpush1.bf16.msra.mxu0 0
    %765 = vmatprep.subr.bf16.mxu0 0
    %766 = vmatpush1.bf16.msra.mxu0 0
    %767 = vmatprep.subr.bf16.mxu0 0
    %768 = vmatpush1.bf16.msra.mxu0 0
    %769 = vmatprep.subr.bf16.mxu0 0
    %770 = vmatpush1.bf16.msra.mxu0 0
    %771 = vmatprep.mubr.bf16.mxu0 0
    %772 = vmatmul.mubr.bf16.gmra.mrb[0].mxu0 %v669
    %v773 = vpop.f32.mrb[0].mxu0
    %v774 = vadd.f32 %v690, %v773
    %v775 = vpop.f32.mrb[0].mxu0
    %v776 = vpop.f32.mrb[0].mxu0
    %v777 = vadd.f32 %v690, %v776
    %v778 = vpop.f32.mrb[0].mxu0
    %779 = vdwg.mxu0
    %v780 = vadd.f32 %v774, %v177
    %v781 = vadd.f32 %v777, %v178
    %784 = vrot.lane.b32.xlu0 %v780, 118
    %v785 = vpop.permute.xlu0 %784
    %786 = vrot.lane.b32.xlu0 %v781, 118
    %v787 = vpop.permute.xlu0 %786
    %v790 = vsub.f32 %v142, %v785
    %v791 = vsub.f32 %v143, %v787
    %793 = vset.pattern.permute.xlu0 0
    %794 = vperm.xlu0 %793, %v790
    %v795 = vpop.permute.xlu0 %794
    %798 = vset.pattern.permute.xlu0 0
    %799 = vperm.xlu0 %798, %v791
    %v800 = vpop.permute.xlu0 %799
    %v802 = vlaneseq
    %v803 = vshrl.u32 %v802, 7
    %v804 = vsub.s32 0, %v803
    %v805 = vrot.slane %v457, %v804
    %v806 = vmul.f32 %v795, %v805
    %v807 = vmul.f32 %v800, %v805
    %808 = vset.pattern.permute.xlu0 1
    %809 = vperm.xlu0 %808, %v790
    %v810 = vpop.permute.xlu0 %809
    %812 = vset.pattern.permute.xlu0 1
    %813 = vperm.xlu0 %812, %v791
    %v814 = vpop.permute.xlu0 %813
    %v816 = vlaneseq
    %v817 = vshrl.u32 %v816, 7
    %v818 = vsub.s32 0, %v817
    %v819 = vrot.slane %v458, %v818
    %v820 = vmul.f32 %v810, %v819
    %v821 = vmul.f32 %v814, %v819
    %v822 = vadd.f32 %v806, %v820
    %v823 = vadd.f32 %v807, %v821
    %v824 = vlaneseq
    %v825 = vshrl.u32 %v824, 7
    %v826 = vsub.s32 0, %v825
    %v827 = vrot.slane %v459, %v826
    %v828 = vadd.f32 %v822, %v827
    %v829 = vadd.f32 %v823, %v827
    %v830 = vmax.f32 %v828, 0.0
    %v831 = vmax.f32 %v829, 0.0
    %v832 = vld [vmem:[#allocation7 + $0x6] sm:$0x1]
    %v833 = vld [vmem:[#allocation7 + $0x7] sm:$0x1]
    %v834 = vld [vmem:[#allocation7 + $0x8] sm:$0x1]
    %v835 = vld [vmem:[#allocation7 + $0x9] sm:$0x1]
    %v836 = vld [vmem:[#allocation7 + $0xa] sm:$0x1]
    %v837 = vld [vmem:[#allocation7 + $0xb] sm:$0x1]
    %v838 = vlaneseq
    %v839 = vshrl.u32 %v838, 7
    %v840 = vsub.s32 0, %v839
    %v841 = vrot.slane %v832, %v840
    %v842 = vadd.f32 %v408, %v841
    %v843 = vadd.f32 %v412, %v841
    %844 = vadd.xlane.f32.xlu0 %v842
    %v845 = vpop.xlane.xlu0 %844
    %846 = vadd.xlane.f32.xlu0 %v843
    %v847 = vpop.xlane.xlu0 %846
    %v848 = vmul.f32 %v845, %v488
    %v849 = vmul.f32 %v847, %v488
    %v850 = vsub.f32 %v842, %v848
    %v851 = vsub.f32 %v843, %v849
    %v852 = vmul.f32 %v850, %v850
    %v853 = vmul.f32 %v851, %v851
    %854 = vadd.xlane.f32.xlu0 %v852
    %v855 = vpop.xlane.xlu0 %854
    %856 = vadd.xlane.f32.xlu0 %v853
    %v857 = vpop.xlane.xlu0 %856
    %v858 = vmul.f32 %v855, %v488
    %v859 = vmul.f32 %v857, %v488
    %v860 = vadd.f32 %v858, 1e-05
    %v861 = vadd.f32 %v859, 1e-05
    %v862 = vrsqrt.pop %v860
    %v863 = vrsqrt.pop %v861
    %v864 = vmul.f32 %v850, %v862
    %v865 = vmul.f32 %v851, %v863
    %v866 = vlaneseq
    %v867 = vshrl.u32 %v866, 7
    %v868 = vsub.s32 0, %v867
    %v869 = vrot.slane %v833, %v868
    %v870 = vmul.f32 %v864, %v869
    %v871 = vmul.f32 %v865, %v869
    %v872 = vlaneseq
    %v873 = vshrl.u32 %v872, 7
    %v874 = vsub.s32 0, %v873
    %v875 = vrot.slane %v834, %v874
    %v876 = vadd.f32 %v870, %v875
    %v877 = vadd.f32 %v871, %v875
    %v878 = vmax.f32 %v876, 0.0
    %v879 = vmax.f32 %v877, 0.0
    %v880 = vpack.c.bf16 %v879, %v878
    %s881 = scalar_lea.vmem %s3, 64
    %v882 = vld [vmem:[%s881] sm:$0xf]
    %v883 = vld [vmem:[%s881 + $0x4] sm:$0xf]
    %v884 = vld [vmem:[%s881 + $0x8] sm:$0xf]
    %v885 = vld [vmem:[%s881 + $0xc] sm:$0xf]
    %v886 = vld [vmem:[%s881 + $0x10] sm:$0xf]
    %v887 = vld [vmem:[%s881 + $0x14] sm:$0xf]
    %v888 = vld [vmem:[%s881 + $0x18] sm:$0xf]
    %v889 = vld [vmem:[%s881 + $0x1c] sm:$0xf]
    %v890 = vld [vmem:[%s881 + $0x20] sm:$0xf]
    %v891 = vld [vmem:[%s881 + $0x24] sm:$0xf]
    %v892 = vld [vmem:[%s881 + $0x28] sm:$0xf]
    %v893 = vld [vmem:[%s881 + $0x2c] sm:$0xf]
    %v894 = vld [vmem:[%s881 + $0x30] sm:$0xf]
    %v895 = vld [vmem:[%s881 + $0x34] sm:$0xf]
    %v896 = vld [vmem:[%s881 + $0x38] sm:$0xf]
    %v897 = vld [vmem:[%s881 + $0x3c] sm:$0xf]
    %v898 = vlaneseq
    %v899 = vshrl.u32 %v898, 7
    %v900 = vsub.s32 0, %v899
    %v901 = vrot.slane %v835, %v900
    %v918 = vunpack.c.l.b16 %v882
    %v919 = vunpack.c.l.b16 %v883
    %v920 = vunpack.c.l.b16 %v884
    %v921 = vunpack.c.l.b16 %v885
    %v922 = vunpack.c.l.b16 %v886
    %v923 = vunpack.c.l.b16 %v887
    %v924 = vunpack.c.l.b16 %v888
    %v925 = vunpack.c.l.b16 %v889
    %v926 = vunpack.c.l.b16 %v890
    %v927 = vunpack.c.l.b16 %v891
    %v928 = vunpack.c.l.b16 %v892
    %v929 = vunpack.c.l.b16 %v893
    %v930 = vunpack.c.l.b16 %v894
    %v931 = vunpack.c.l.b16 %v895
    %v932 = vunpack.c.l.b16 %v896
    %v933 = vunpack.c.l.b16 %v897
    %v934 = vpack.c.b16 %v919, %v918
    %v935 = vpack.c.b16 %v921, %v920
    %v936 = vpack.c.b16 %v923, %v922
    %v937 = vpack.c.b16 %v925, %v924
    %v938 = vpack.c.b16 %v927, %v926
    %v939 = vpack.c.b16 %v929, %v928
    %v940 = vpack.c.b16 %v931, %v930
    %v941 = vpack.c.b16 %v933, %v932
    %950 = vmatprep.subr.bf16.mxu0 0
    %951 = vmatpush1.bf16.msra.mxu0 %v934
    %952 = vmatprep.subr.bf16.mxu0 0
    %953 = vmatpush1.bf16.msra.mxu0 %v935
    %954 = vmatprep.subr.bf16.mxu0 0
    %955 = vmatpush1.bf16.msra.mxu0 %v936
    %956 = vmatprep.subr.bf16.mxu0 0
    %957 = vmatpush1.bf16.msra.mxu0 %v937
    %958 = vmatprep.subr.bf16.mxu0 0
    %959 = vmatpush1.bf16.msra.mxu0 %v938
    %960 = vmatprep.subr.bf16.mxu0 0
    %961 = vmatpush1.bf16.msra.mxu0 %v939
    %962 = vmatprep.subr.bf16.mxu0 0
    %963 = vmatpush1.bf16.msra.mxu0 %v940
    %964 = vmatprep.subr.bf16.mxu0 0
    %965 = vmatpush1.bf16.msra.mxu0 %v941
    %966 = vmatprep.subr.bf16.mxu0 0
    %967 = vmatpush1.bf16.msra.mxu0 0
    %968 = vmatprep.subr.bf16.mxu0 0
    %969 = vmatpush1.bf16.msra.mxu0 0
    %970 = vmatprep.subr.bf16.mxu0 0
    %971 = vmatpush1.bf16.msra.mxu0 0
    %972 = vmatprep.subr.bf16.mxu0 0
    %973 = vmatpush1.bf16.msra.mxu0 0
    %974 = vmatprep.subr.bf16.mxu0 0
    %975 = vmatpush1.bf16.msra.mxu0 0
    %976 = vmatprep.subr.bf16.mxu0 0
    %977 = vmatpush1.bf16.msra.mxu0 0
    %978 = vmatprep.subr.bf16.mxu0 0
    %979 = vmatpush1.bf16.msra.mxu0 0
    %980 = vmatprep.subr.bf16.mxu0 0
    %981 = vmatpush1.bf16.msra.mxu0 0
    %982 = vmatprep.mubr.bf16.mxu0 0
    %983 = vmatmul.mubr.bf16.gmra.mrb[0].mxu0 %v880
    %v984 = vpop.f32.mrb[0].mxu0
    %v985 = vadd.f32 %v901, %v984
    %v986 = vpop.f32.mrb[0].mxu0
    %v987 = vpop.f32.mrb[0].mxu0
    %v988 = vadd.f32 %v901, %v987
    %v989 = vpop.f32.mrb[0].mxu0
    %990 = vdwg.mxu0
    %991 = vadd.xlane.f32.xlu0 %v985
    %v992 = vpop.xlane.xlu0 %991
    %993 = vadd.xlane.f32.xlu0 %v988
    %v994 = vpop.xlane.xlu0 %993
    %v995 = vmul.f32 %v992, %v488
    %v996 = vmul.f32 %v994, %v488
    %v997 = vsub.f32 %v985, %v995
    %v998 = vsub.f32 %v988, %v996
    %v999 = vmul.f32 %v997, %v997
    %v1000 = vmul.f32 %v998, %v998
    %1001 = vadd.xlane.f32.xlu0 %v999
    %v1002 = vpop.xlane.xlu0 %1001
    %1003 = vadd.xlane.f32.xlu0 %v1000
    %v1004 = vpop.xlane.xlu0 %1003
    %v1005 = vmul.f32 %v1002, %v488
    %v1006 = vmul.f32 %v1004, %v488
    %v1007 = vadd.f32 %v1005, 1e-05
    %v1008 = vadd.f32 %v1006, 1e-05
    %v1009 = vrsqrt.pop %v1007
    %v1010 = vrsqrt.pop %v1008
    %v1011 = vmul.f32 %v997, %v1009
    %v1012 = vmul.f32 %v998, %v1010
    %v1013 = vlaneseq
    %v1014 = vshrl.u32 %v1013, 7
    %v1015 = vsub.s32 0, %v1014
    %v1016 = vrot.slane %v836, %v1015
    %v1017 = vmul.f32 %v1011, %v1016
    %v1018 = vmul.f32 %v1012, %v1016
    %v1019 = vlaneseq
    %v1020 = vshrl.u32 %v1019, 7
    %v1021 = vsub.s32 0, %v1020
    %v1022 = vrot.slane %v837, %v1021
    %v1023 = vadd.f32 %v1017, %v1022
    %v1024 = vadd.f32 %v1018, %v1022
    %v1025 = vadd.f32 %v1023, %v139
    %v1026 = vadd.f32 %v1024, %v140
    %v1027 = vmax.f32 %v1025, 0.0
    %v1028 = vmax.f32 %v1026, 0.0
    %v1029 = vpack.c.bf16 %v1028, %v1027
    %s1030 = scalar_lea.vmem %s4, 64
    %v1031 = vld [vmem:[%s1030] sm:$0xf]
    %v1032 = vld [vmem:[%s1030 + $0x4] sm:$0xf]
    %v1033 = vld [vmem:[%s1030 + $0x8] sm:$0xf]
    %v1034 = vld [vmem:[%s1030 + $0xc] sm:$0xf]
    %v1035 = vld [vmem:[%s1030 + $0x10] sm:$0xf]
    %v1036 = vld [vmem:[%s1030 + $0x14] sm:$0xf]
    %v1037 = vld [vmem:[%s1030 + $0x18] sm:$0xf]
    %v1038 = vld [vmem:[%s1030 + $0x1c] sm:$0xf]
    %v1039 = vld [vmem:[%s1030 + $0x20] sm:$0xf]
    %v1040 = vld [vmem:[%s1030 + $0x24] sm:$0xf]
    %v1041 = vld [vmem:[%s1030 + $0x28] sm:$0xf]
    %v1042 = vld [vmem:[%s1030 + $0x2c] sm:$0xf]
    %v1043 = vld [vmem:[%s1030 + $0x30] sm:$0xf]
    %v1044 = vld [vmem:[%s1030 + $0x34] sm:$0xf]
    %v1045 = vld [vmem:[%s1030 + $0x38] sm:$0xf]
    %v1046 = vld [vmem:[%s1030 + $0x3c] sm:$0xf]
    %v1047 = vld [vmem:[#allocation8 + $0x1] sm:$0x1]
    %v1048 = vlaneseq
    %v1049 = vshrl.u32 %v1048, 7
    %v1050 = vsub.s32 0, %v1049
    %v1051 = vrot.slane %v1047, %v1050
    %v1068 = vunpack.c.l.b16 %v1031
    %v1069 = vunpack.c.l.b16 %v1032
    %v1070 = vunpack.c.l.b16 %v1033
    %v1071 = vunpack.c.l.b16 %v1034
    %v1072 = vunpack.c.l.b16 %v1035
    %v1073 = vunpack.c.l.b16 %v1036
    %v1074 = vunpack.c.l.b16 %v1037
    %v1075 = vunpack.c.l.b16 %v1038
    %v1076 = vunpack.c.l.b16 %v1039
    %v1077 = vunpack.c.l.b16 %v1040
    %v1078 = vunpack.c.l.b16 %v1041
    %v1079 = vunpack.c.l.b16 %v1042
    %v1080 = vunpack.c.l.b16 %v1043
    %v1081 = vunpack.c.l.b16 %v1044
    %v1082 = vunpack.c.l.b16 %v1045
    %v1083 = vunpack.c.l.b16 %v1046
    %v1084 = vpack.c.b16 %v1069, %v1068
    %v1085 = vpack.c.b16 %v1071, %v1070
    %v1086 = vpack.c.b16 %v1073, %v1072
    %v1087 = vpack.c.b16 %v1075, %v1074
    %v1088 = vpack.c.b16 %v1077, %v1076
    %v1089 = vpack.c.b16 %v1079, %v1078
    %v1090 = vpack.c.b16 %v1081, %v1080
    %v1091 = vpack.c.b16 %v1083, %v1082
    %1100 = vmatprep.subr.bf16.mxu0 0
    %1101 = vmatpush1.bf16.msra.mxu0 %v1084
    %1102 = vmatprep.subr.bf16.mxu0 0
    %1103 = vmatpush1.bf16.msra.mxu0 %v1085
    %1104 = vmatprep.subr.bf16.mxu0 0
    %1105 = vmatpush1.bf16.msra.mxu0 %v1086
    %1106 = vmatprep.subr.bf16.mxu0 0
    %1107 = vmatpush1.bf16.msra.mxu0 %v1087
    %1108 = vmatprep.subr.bf16.mxu0 0
    %1109 = vmatpush1.bf16.msra.mxu0 %v1088
    %1110 = vmatprep.subr.bf16.mxu0 0
    %1111 = vmatpush1.bf16.msra.mxu0 %v1089
    %1112 = vmatprep.subr.bf16.mxu0 0
    %1113 = vmatpush1.bf16.msra.mxu0 %v1090
    %1114 = vmatprep.subr.bf16.mxu0 0
    %1115 = vmatpush1.bf16.msra.mxu0 %v1091
    %1116 = vmatprep.subr.bf16.mxu0 0
    %1117 = vmatpush1.bf16.msra.mxu0 0
    %1118 = vmatprep.subr.bf16.mxu0 0
    %1119 = vmatpush1.bf16.msra.mxu0 0
    %1120 = vmatprep.subr.bf16.mxu0 0
    %1121 = vmatpush1.bf16.msra.mxu0 0
    %1122 = vmatprep.subr.bf16.mxu0 0
    %1123 = vmatpush1.bf16.msra.mxu0 0
    %1124 = vmatprep.subr.bf16.mxu0 0
    %1125 = vmatpush1.bf16.msra.mxu0 0
    %1126 = vmatprep.subr.bf16.mxu0 0
    %1127 = vmatpush1.bf16.msra.mxu0 0
    %1128 = vmatprep.subr.bf16.mxu0 0
    %1129 = vmatpush1.bf16.msra.mxu0 0
    %1130 = vmatprep.subr.bf16.mxu0 0
    %1131 = vmatpush1.bf16.msra.mxu0 0
    %1132 = vmatprep.mubr.bf16.mxu0 0
    %1133 = vmatmul.mubr.bf16.gmra.mrb[0].mxu0 %v1029
    %v1134 = vpop.f32.mrb[0].mxu0
    %v1135 = vadd.f32 %v1051, %v1134
    %v1136 = vpop.f32.mrb[0].mxu0
    %v1137 = vpop.f32.mrb[0].mxu0
    %v1138 = vadd.f32 %v1051, %v1137
    %v1139 = vpop.f32.mrb[0].mxu0
    %1140 = vdwg.mxu0
    %v1141 = vadd.f32 %v1135, %v177
    %v1142 = vadd.f32 %v1138, %v178
    %1145 = vrot.lane.b32.xlu0 %v1141, 118
    %v1146 = vpop.permute.xlu0 %1145
    %1147 = vrot.lane.b32.xlu0 %v1142, 118
    %v1148 = vpop.permute.xlu0 %1147
    %v1151 = vsub.f32 %v142, %v1146
    %v1152 = vsub.f32 %v143, %v1148
    %1154 = vset.pattern.permute.xlu0 0
    %1155 = vperm.xlu0 %1154, %v1151
    %v1156 = vpop.permute.xlu0 %1155
    %1159 = vset.pattern.permute.xlu0 0
    %1160 = vperm.xlu0 %1159, %v1152
    %v1161 = vpop.permute.xlu0 %1160
    %v1163 = vmul.f32 %v1156, %v805
    %v1164 = vmul.f32 %v1161, %v805
    %1165 = vset.pattern.permute.xlu0 1
    %1166 = vperm.xlu0 %1165, %v1151
    %v1167 = vpop.permute.xlu0 %1166
    %1169 = vset.pattern.permute.xlu0 1
    %1170 = vperm.xlu0 %1169, %v1152
    %v1171 = vpop.permute.xlu0 %1170
    %v1173 = vmul.f32 %v1167, %v819
    %v1174 = vmul.f32 %v1171, %v819
    %v1175 = vadd.f32 %v1163, %v1173
    %v1176 = vadd.f32 %v1164, %v1174
    %v1177 = vadd.f32 %v1175, %v827
    %v1178 = vadd.f32 %v1176, %v827
    %v1179 = vmax.f32 %v1177, 0.0
    %v1180 = vmax.f32 %v1178, 0.0
    %v1181 = vld [vmem:[#allocation7 + $0xc] sm:$0x1]
    %v1182 = vld [vmem:[#allocation7 + $0xd] sm:$0x1]
    %v1183 = vld [vmem:[#allocation7 + $0xe] sm:$0x1]
    %v1184 = vld [vmem:[#allocation7 + $0xf] sm:$0x1]
    %v1185 = vld [vmem:[#allocation7 + $0x10] sm:$0x1]
    %v1186 = vld [vmem:[#allocation7 + $0x11] sm:$0x1]
    %v1187 = vlaneseq
    %v1188 = vshrl.u32 %v1187, 7
    %v1189 = vsub.s32 0, %v1188
    %v1190 = vrot.slane %v1181, %v1189
    %v1191 = vadd.f32 %v449, %v1190
    %v1192 = vadd.f32 %v453, %v1190
    %1193 = vadd.xlane.f32.xlu0 %v1191
    %v1194 = vpop.xlane.xlu0 %1193
    %1195 = vadd.xlane.f32.xlu0 %v1192
    %v1196 = vpop.xlane.xlu0 %1195
    %v1197 = vmul.f32 %v1194, %v488
    %v1198 = vmul.f32 %v1196, %v488
    %v1199 = vsub.f32 %v1191, %v1197
    %v1200 = vsub.f32 %v1192, %v1198
    %v1201 = vmul.f32 %v1199, %v1199
    %v1202 = vmul.f32 %v1200, %v1200
    %1203 = vadd.xlane.f32.xlu0 %v1201
    %v1204 = vpop.xlane.xlu0 %1203
    %1205 = vadd.xlane.f32.xlu0 %v1202
    %v1206 = vpop.xlane.xlu0 %1205
    %v1207 = vmul.f32 %v1204, %v488
    %v1208 = vmul.f32 %v1206, %v488
    %v1209 = vadd.f32 %v1207, 1e-05
    %v1210 = vadd.f32 %v1208, 1e-05
    %v1211 = vrsqrt.pop %v1209
    %v1212 = vrsqrt.pop %v1210
    %v1213 = vmul.f32 %v1199, %v1211
    %v1214 = vmul.f32 %v1200, %v1212
    %v1215 = vlaneseq
    %v1216 = vshrl.u32 %v1215, 7
    %v1217 = vsub.s32 0, %v1216
    %v1218 = vrot.slane %v1182, %v1217
    %v1219 = vmul.f32 %v1213, %v1218
    %v1220 = vmul.f32 %v1214, %v1218
    %v1221 = vlaneseq
    %v1222 = vshrl.u32 %v1221, 7
    %v1223 = vsub.s32 0, %v1222
    %v1224 = vrot.slane %v1183, %v1223
    %v1225 = vadd.f32 %v1219, %v1224
    %v1226 = vadd.f32 %v1220, %v1224
    %v1227 = vmax.f32 %v1225, 0.0
    %v1228 = vmax.f32 %v1226, 0.0
    %v1229 = vpack.c.bf16 %v1228, %v1227
    %s1230 = scalar_lea.vmem %s3, 128
    %v1231 = vld [vmem:[%s1230] sm:$0xf]
    %v1232 = vld [vmem:[%s1230 + $0x4] sm:$0xf]
    %v1233 = vld [vmem:[%s1230 + $0x8] sm:$0xf]
    %v1234 = vld [vmem:[%s1230 + $0xc] sm:$0xf]
    %v1235 = vld [vmem:[%s1230 + $0x10] sm:$0xf]
    %v1236 = vld [vmem:[%s1230 + $0x14] sm:$0xf]
    %v1237 = vld [vmem:[%s1230 + $0x18] sm:$0xf]
    %v1238 = vld [vmem:[%s1230 + $0x1c] sm:$0xf]
    %v1239 = vld [vmem:[%s1230 + $0x20] sm:$0xf]
    %v1240 = vld [vmem:[%s1230 + $0x24] sm:$0xf]
    %v1241 = vld [vmem:[%s1230 + $0x28] sm:$0xf]
    %v1242 = vld [vmem:[%s1230 + $0x2c] sm:$0xf]
    %v1243 = vld [vmem:[%s1230 + $0x30] sm:$0xf]
    %v1244 = vld [vmem:[%s1230 + $0x34] sm:$0xf]
    %v1245 = vld [vmem:[%s1230 + $0x38] sm:$0xf]
    %v1246 = vld [vmem:[%s1230 + $0x3c] sm:$0xf]
    %v1247 = vlaneseq
    %v1248 = vshrl.u32 %v1247, 7
    %v1249 = vsub.s32 0, %v1248
    %v1250 = vrot.slane %v1184, %v1249
    %v1267 = vunpack.c.l.b16 %v1231
    %v1268 = vunpack.c.l.b16 %v1232
    %v1269 = vunpack.c.l.b16 %v1233
    %v1270 = vunpack.c.l.b16 %v1234
    %v1271 = vunpack.c.l.b16 %v1235
    %v1272 = vunpack.c.l.b16 %v1236
    %v1273 = vunpack.c.l.b16 %v1237
    %v1274 = vunpack.c.l.b16 %v1238
    %v1275 = vunpack.c.l.b16 %v1239
    %v1276 = vunpack.c.l.b16 %v1240
    %v1277 = vunpack.c.l.b16 %v1241
    %v1278 = vunpack.c.l.b16 %v1242
    %v1279 = vunpack.c.l.b16 %v1243
    %v1280 = vunpack.c.l.b16 %v1244
    %v1281 = vunpack.c.l.b16 %v1245
    %v1282 = vunpack.c.l.b16 %v1246
    %v1283 = vpack.c.b16 %v1268, %v1267
    %v1284 = vpack.c.b16 %v1270, %v1269
    %v1285 = vpack.c.b16 %v1272, %v1271
    %v1286 = vpack.c.b16 %v1274, %v1273
    %v1287 = vpack.c.b16 %v1276, %v1275
    %v1288 = vpack.c.b16 %v1278, %v1277
    %v1289 = vpack.c.b16 %v1280, %v1279
    %v1290 = vpack.c.b16 %v1282, %v1281
    %1299 = vmatprep.subr.bf16.mxu0 0
    %1300 = vmatpush1.bf16.msra.mxu0 %v1283
    %1301 = vmatprep.subr.bf16.mxu0 0
    %1302 = vmatpush1.bf16.msra.mxu0 %v1284
    %1303 = vmatprep.subr.bf16.mxu0 0
    %1304 = vmatpush1.bf16.msra.mxu0 %v1285
    %1305 = vmatprep.subr.bf16.mxu0 0
    %1306 = vmatpush1.bf16.msra.mxu0 %v1286
    %1307 = vmatprep.subr.bf16.mxu0 0
    %1308 = vmatpush1.bf16.msra.mxu0 %v1287
    %1309 = vmatprep.subr.bf16.mxu0 0
    %1310 = vmatpush1.bf16.msra.mxu0 %v1288
    %1311 = vmatprep.subr.bf16.mxu0 0
    %1312 = vmatpush1.bf16.msra.mxu0 %v1289
    %1313 = vmatprep.subr.bf16.mxu0 0
    %1314 = vmatpush1.bf16.msra.mxu0 %v1290
    %1315 = vmatprep.subr.bf16.mxu0 0
    %1316 = vmatpush1.bf16.msra.mxu0 0
    %1317 = vmatprep.subr.bf16.mxu0 0
    %1318 = vmatpush1.bf16.msra.mxu0 0
    %1319 = vmatprep.subr.bf16.mxu0 0
    %1320 = vmatpush1.bf16.msra.mxu0 0
    %1321 = vmatprep.subr.bf16.mxu0 0
    %1322 = vmatpush1.bf16.msra.mxu0 0
    %1323 = vmatprep.subr.bf16.mxu0 0
    %1324 = vmatpush1.bf16.msra.mxu0 0
    %1325 = vmatprep.subr.bf16.mxu0 0
    %1326 = vmatpush1.bf16.msra.mxu0 0
    %1327 = vmatprep.subr.bf16.mxu0 0
    %1328 = vmatpush1.bf16.msra.mxu0 0
    %1329 = vmatprep.subr.bf16.mxu0 0
    %1330 = vmatpush1.bf16.msra.mxu0 0
    %1331 = vmatprep.mubr.bf16.mxu0 0
    %1332 = vmatmul.mubr.bf16.gmra.mrb[0].mxu0 %v1229
    %v1333 = vpop.f32.mrb[0].mxu0
    %v1334 = vadd.f32 %v1250, %v1333
    %v1335 = vpop.f32.mrb[0].mxu0
    %v1336 = vpop.f32.mrb[0].mxu0
    %v1337 = vadd.f32 %v1250, %v1336
    %v1338 = vpop.f32.mrb[0].mxu0
    %1339 = vdwg.mxu0
    %1340 = vadd.xlane.f32.xlu0 %v1334
    %v1341 = vpop.xlane.xlu0 %1340
    %1342 = vadd.xlane.f32.xlu0 %v1337
    %v1343 = vpop.xlane.xlu0 %1342
    %v1344 = vmul.f32 %v1341, %v488
    %v1345 = vmul.f32 %v1343, %v488
    %v1346 = vsub.f32 %v1334, %v1344
    %v1347 = vsub.f32 %v1337, %v1345
    %v1348 = vmul.f32 %v1346, %v1346
    %v1349 = vmul.f32 %v1347, %v1347
    %1350 = vadd.xlane.f32.xlu0 %v1348
    %v1351 = vpop.xlane.xlu0 %1350
    %1352 = vadd.xlane.f32.xlu0 %v1349
    %v1353 = vpop.xlane.xlu0 %1352
    %v1354 = vmul.f32 %v1351, %v488
    %v1355 = vmul.f32 %v1353, %v488
    %v1356 = vadd.f32 %v1354, 1e-05
    %v1357 = vadd.f32 %v1355, 1e-05
    %v1358 = vrsqrt.pop %v1356
    %v1359 = vrsqrt.pop %v1357
    %v1360 = vmul.f32 %v1346, %v1358
    %v1361 = vmul.f32 %v1347, %v1359
    %v1362 = vlaneseq
    %v1363 = vshrl.u32 %v1362, 7
    %v1364 = vsub.s32 0, %v1363
    %v1365 = vrot.slane %v1185, %v1364
    %v1366 = vmul.f32 %v1360, %v1365
    %v1367 = vmul.f32 %v1361, %v1365
    %v1368 = vlaneseq
    %v1369 = vshrl.u32 %v1368, 7
    %v1370 = vsub.s32 0, %v1369
    %v1371 = vrot.slane %v1186, %v1370
    %v1372 = vadd.f32 %v1366, %v1371
    %v1373 = vadd.f32 %v1367, %v1371
    %v1374 = vadd.f32 %v1372, %v139
    %v1375 = vadd.f32 %v1373, %v140
    %v1376 = vmax.f32 %v1374, 0.0
    %v1377 = vmax.f32 %v1375, 0.0
    %v1378 = vpack.c.bf16 %v1377, %v1376
    %s1379 = scalar_lea.vmem %s4, 128
    %v1380 = vld [vmem:[%s1379] sm:$0xf]
    %v1381 = vld [vmem:[%s1379 + $0x4] sm:$0xf]
    %v1382 = vld [vmem:[%s1379 + $0x8] sm:$0xf]
    %v1383 = vld [vmem:[%s1379 + $0xc] sm:$0xf]
    %v1384 = vld [vmem:[%s1379 + $0x10] sm:$0xf]
    %v1385 = vld [vmem:[%s1379 + $0x14] sm:$0xf]
    %v1386 = vld [vmem:[%s1379 + $0x18] sm:$0xf]
    %v1387 = vld [vmem:[%s1379 + $0x1c] sm:$0xf]
    %v1388 = vld [vmem:[%s1379 + $0x20] sm:$0xf]
    %v1389 = vld [vmem:[%s1379 + $0x24] sm:$0xf]
    %v1390 = vld [vmem:[%s1379 + $0x28] sm:$0xf]
    %v1391 = vld [vmem:[%s1379 + $0x2c] sm:$0xf]
    %v1392 = vld [vmem:[%s1379 + $0x30] sm:$0xf]
    %v1393 = vld [vmem:[%s1379 + $0x34] sm:$0xf]
    %v1394 = vld [vmem:[%s1379 + $0x38] sm:$0xf]
    %v1395 = vld [vmem:[%s1379 + $0x3c] sm:$0xf]
    %v1396 = vld [vmem:[#allocation8 + $0x2] sm:$0x1]
    %v1397 = vlaneseq
    %v1398 = vshrl.u32 %v1397, 7
    %v1399 = vsub.s32 0, %v1398
    %v1400 = vrot.slane %v1396, %v1399
    %v1417 = vunpack.c.l.b16 %v1380
    %v1418 = vunpack.c.l.b16 %v1381
    %v1419 = vunpack.c.l.b16 %v1382
    %v1420 = vunpack.c.l.b16 %v1383
    %v1421 = vunpack.c.l.b16 %v1384
    %v1422 = vunpack.c.l.b16 %v1385
    %v1423 = vunpack.c.l.b16 %v1386
    %v1424 = vunpack.c.l.b16 %v1387
    %v1425 = vunpack.c.l.b16 %v1388
    %v1426 = vunpack.c.l.b16 %v1389
    %v1427 = vunpack.c.l.b16 %v1390
    %v1428 = vunpack.c.l.b16 %v1391
    %v1429 = vunpack.c.l.b16 %v1392
    %v1430 = vunpack.c.l.b16 %v1393
    %v1431 = vunpack.c.l.b16 %v1394
    %v1432 = vunpack.c.l.b16 %v1395
    %v1433 = vpack.c.b16 %v1418, %v1417
    %v1434 = vpack.c.b16 %v1420, %v1419
    %v1435 = vpack.c.b16 %v1422, %v1421
    %v1436 = vpack.c.b16 %v1424, %v1423
    %v1437 = vpack.c.b16 %v1426, %v1425
    %v1438 = vpack.c.b16 %v1428, %v1427
    %v1439 = vpack.c.b16 %v1430, %v1429
    %v1440 = vpack.c.b16 %v1432, %v1431
    %1449 = vmatprep.subr.bf16.mxu0 0
    %1450 = vmatpush1.bf16.msra.mxu0 %v1433
    %1451 = vmatprep.subr.bf16.mxu0 0
    %1452 = vmatpush1.bf16.msra.mxu0 %v1434
    %1453 = vmatprep.subr.bf16.mxu0 0
    %1454 = vmatpush1.bf16.msra.mxu0 %v1435
    %1455 = vmatprep.subr.bf16.mxu0 0
    %1456 = vmatpush1.bf16.msra.mxu0 %v1436
    %1457 = vmatprep.subr.bf16.mxu0 0
    %1458 = vmatpush1.bf16.msra.mxu0 %v1437
    %1459 = vmatprep.subr.bf16.mxu0 0
    %1460 = vmatpush1.bf16.msra.mxu0 %v1438
    %1461 = vmatprep.subr.bf16.mxu0 0
    %1462 = vmatpush1.bf16.msra.mxu0 %v1439
    %1463 = vmatprep.subr.bf16.mxu0 0
    %1464 = vmatpush1.bf16.msra.mxu0 %v1440
    %1465 = vmatprep.subr.bf16.mxu0 0
    %1466 = vmatpush1.bf16.msra.mxu0 0
    %1467 = vmatprep.subr.bf16.mxu0 0
    %1468 = vmatpush1.bf16.msra.mxu0 0
    %1469 = vmatprep.subr.bf16.mxu0 0
    %1470 = vmatpush1.bf16.msra.mxu0 0
    %1471 = vmatprep.subr.bf16.mxu0 0
    %1472 = vmatpush1.bf16.msra.mxu0 0
    %1473 = vmatprep.subr.bf16.mxu0 0
    %1474 = vmatpush1.bf16.msra.mxu0 0
    %1475 = vmatprep.subr.bf16.mxu0 0
    %1476 = vmatpush1.bf16.msra.mxu0 0
    %1477 = vmatprep.subr.bf16.mxu0 0
    %1478 = vmatpush1.bf16.msra.mxu0 0
    %1479 = vmatprep.subr.bf16.mxu0 0
    %1480 = vmatpush1.bf16.msra.mxu0 0
    %1481 = vmatprep.mubr.bf16.mxu0 0
    %1482 = vmatmul.mubr.bf16.gmra.mrb[0].mxu0 %v1378
    %v1483 = vpop.f32.mrb[0].mxu0
    %v1484 = vadd.f32 %v1400, %v1483
    %v1485 = vpop.f32.mrb[0].mxu0
    %v1486 = vpop.f32.mrb[0].mxu0
    %v1487 = vadd.f32 %v1400, %v1486
    %v1488 = vpop.f32.mrb[0].mxu0
    %1489 = vdwg.mxu0
    %v1490 = vadd.f32 %v1484, %v177
    %v1491 = vadd.f32 %v1487, %v178
    %1494 = vrot.lane.b32.xlu0 %v1490, 118
    %v1495 = vpop.permute.xlu0 %1494
    %1496 = vrot.lane.b32.xlu0 %v1491, 118
    %v1497 = vpop.permute.xlu0 %1496
    %v1500 = vsub.f32 %v142, %v1495
    %v1501 = vsub.f32 %v143, %v1497
    %1503 = vset.pattern.permute.xlu0 0
    %1504 = vperm.xlu0 %1503, %v1500
    %v1505 = vpop.permute.xlu0 %1504
    %1508 = vset.pattern.permute.xlu0 0
    %1509 = vperm.xlu0 %1508, %v1501
    %v1510 = vpop.permute.xlu0 %1509
    %v1512 = vmul.f32 %v1505, %v805
    %v1513 = vmul.f32 %v1510, %v805
    %1514 = vset.pattern.permute.xlu0 1
    %1515 = vperm.xlu0 %1514, %v1500
    %v1516 = vpop.permute.xlu0 %1515
    %1518 = vset.pattern.permute.xlu0 1
    %1519 = vperm.xlu0 %1518, %v1501
    %v1520 = vpop.permute.xlu0 %1519
    %v1522 = vmul.f32 %v1516, %v819
    %v1523 = vmul.f32 %v1520, %v819
    %v1524 = vadd.f32 %v1512, %v1522
    %v1525 = vadd.f32 %v1513, %v1523
    %v1526 = vadd.f32 %v1524, %v827
    %v1527 = vadd.f32 %v1525, %v827
    %v1528 = vmax.f32 %v1526, 0.0
    %v1529 = vmax.f32 %v1527, 0.0
    %v1530 = vpack.c.bf16 %v831, %v830
    %v1531 = vpack.c.bf16 %v1180, %v1179
    %v1532 = vpack.c.bf16 %v1529, %v1528
    %v1533 = vld [vmem:[%s7] sm:$0xf]
    %v1534 = vld [vmem:[%s7 + $0x4] sm:$0xf]
    %v1535 = vld [vmem:[%s7 + $0x8] sm:$0xf]
    %v1536 = vld [vmem:[%s7 + $0xc] sm:$0xf]
    %v1537 = vld [vmem:[%s7 + $0x10] sm:$0xf]
    %v1538 = vld [vmem:[%s7 + $0x14] sm:$0xf]
    %v1539 = vld [vmem:[%s7 + $0x18] sm:$0xf]
    %v1540 = vld [vmem:[%s7 + $0x1c] sm:$0xf]
    %v1541 = vld [vmem:[%s7 + $0x20] sm:$0xf]
    %v1542 = vld [vmem:[%s7 + $0x24] sm:$0xf]
    %v1543 = vld [vmem:[%s7 + $0x28] sm:$0xf]
    %v1544 = vld [vmem:[%s7 + $0x2c] sm:$0xf]
    %v1545 = vld [vmem:[%s7 + $0x30] sm:$0xf]
    %v1546 = vld [vmem:[%s7 + $0x34] sm:$0xf]
    %v1547 = vld [vmem:[%s7 + $0x38] sm:$0xf]
    %v1548 = vld [vmem:[%s7 + $0x3c] sm:$0xf]
    %v1565 = vunpack.c.l.b16 %v1533
    %v1566 = vunpack.c.l.b16 %v1534
    %v1567 = vunpack.c.l.b16 %v1535
    %v1568 = vunpack.c.l.b16 %v1536
    %v1569 = vunpack.c.l.b16 %v1537
    %v1570 = vunpack.c.l.b16 %v1538
    %v1571 = vunpack.c.l.b16 %v1539
    %v1572 = vunpack.c.l.b16 %v1540
    %v1573 = vunpack.c.l.b16 %v1541
    %v1574 = vunpack.c.l.b16 %v1542
    %v1575 = vunpack.c.l.b16 %v1543
    %v1576 = vunpack.c.l.b16 %v1544
    %v1577 = vunpack.c.l.b16 %v1545
    %v1578 = vunpack.c.l.b16 %v1546
    %v1579 = vunpack.c.l.b16 %v1547
    %v1580 = vunpack.c.l.b16 %v1548
    %v1581 = vpack.c.b16 %v1566, %v1565
    %v1582 = vpack.c.b16 %v1568, %v1567
    %v1583 = vpack.c.b16 %v1570, %v1569
    %v1584 = vpack.c.b16 %v1572, %v1571
    %v1585 = vpack.c.b16 %v1574, %v1573
    %v1586 = vpack.c.b16 %v1576, %v1575
    %v1587 = vpack.c.b16 %v1578, %v1577
    %v1588 = vpack.c.b16 %v1580, %v1579
    %1597 = vmatprep.subr.bf16.mxu0 0
    %1598 = vmatpush1.bf16.msra.mxu0 %v1581
    %1599 = vmatprep.subr.bf16.mxu0 0
    %1600 = vmatpush1.bf16.msra.mxu0 %v1582
    %1601 = vmatprep.subr.bf16.mxu0 0
    %1602 = vmatpush1.bf16.msra.mxu0 %v1583
    %1603 = vmatprep.subr.bf16.mxu0 0
    %1604 = vmatpush1.bf16.msra.mxu0 %v1584
    %1605 = vmatprep.subr.bf16.mxu0 0
    %1606 = vmatpush1.bf16.msra.mxu0 %v1585
    %1607 = vmatprep.subr.bf16.mxu0 0
    %1608 = vmatpush1.bf16.msra.mxu0 %v1586
    %1609 = vmatprep.subr.bf16.mxu0 0
    %1610 = vmatpush1.bf16.msra.mxu0 %v1587
    %1611 = vmatprep.subr.bf16.mxu0 0
    %1612 = vmatpush1.bf16.msra.mxu0 %v1588
    %1613 = vmatprep.subr.bf16.mxu0 0
    %1614 = vmatpush1.bf16.msra.mxu0 0
    %1615 = vmatprep.subr.bf16.mxu0 0
    %1616 = vmatpush1.bf16.msra.mxu0 0
    %1617 = vmatprep.subr.bf16.mxu0 0
    %1618 = vmatpush1.bf16.msra.mxu0 0
    %1619 = vmatprep.subr.bf16.mxu0 0
    %1620 = vmatpush1.bf16.msra.mxu0 0
    %1621 = vmatprep.subr.bf16.mxu0 0
    %1622 = vmatpush1.bf16.msra.mxu0 0
    %1623 = vmatprep.subr.bf16.mxu0 0
    %1624 = vmatpush1.bf16.msra.mxu0 0
    %1625 = vmatprep.subr.bf16.mxu0 0
    %1626 = vmatpush1.bf16.msra.mxu0 0
    %1627 = vmatprep.subr.bf16.mxu0 0
    %1628 = vmatpush1.bf16.msra.mxu0 0
    %1629 = vmatprep.mubr.bf16.mxu0 0
    %1630 = vmatmul.mubr.bf16.gmra.mrb[0].mxu0 %v1530
    %v1631 = vpop.f32.mrb[0].mxu0
    %v1632 = vadd.f32 0.0, %v1631
    %v1633 = vpop.f32.mrb[0].mxu0
    %v1634 = vpop.f32.mrb[0].mxu0
    %v1635 = vadd.f32 0.0, %v1634
    %v1636 = vpop.f32.mrb[0].mxu0
    %1637 = vmatprep.mubr.bf16.mxu0 0
    %1638 = vmatmul.mubr.bf16.gmra.mrb[0].mxu0 %v1531
    %v1639 = vpop.f32.mrb[0].mxu0
    %v1640 = vadd.f32 0.0, %v1639
    %v1641 = vpop.f32.mrb[0].mxu0
    %v1642 = vpop.f32.mrb[0].mxu0
    %v1643 = vadd.f32 0.0, %v1642
    %v1644 = vpop.f32.mrb[0].mxu0
    %1645 = vmatprep.mubr.bf16.mxu0 0
    %1646 = vmatmul.mubr.bf16.gmra.mrb[0].mxu0 %v1532
    %v1647 = vpop.f32.mrb[0].mxu0
    %v1648 = vadd.f32 0.0, %v1647
    %v1649 = vpop.f32.mrb[0].mxu0
    %v1650 = vpop.f32.mrb[0].mxu0
    %v1651 = vadd.f32 0.0, %v1650
    %v1652 = vpop.f32.mrb[0].mxu0
    %1653 = vdwg.mxu0
    %1654 = vadd.xlane.f32.xlu0 %v1632
    %v1655 = vpop.xlane.xlu0 %1654
    %1656 = vadd.xlane.f32.xlu0 %v1635
    %v1657 = vpop.xlane.xlu0 %1656
    %1658 = vadd.xlane.f32.xlu0 %v1640
    %v1659 = vpop.xlane.xlu0 %1658
    %1660 = vadd.xlane.f32.xlu0 %v1643
    %v1661 = vpop.xlane.xlu0 %1660
    %1662 = vadd.xlane.f32.xlu0 %v1648
    %v1663 = vpop.xlane.xlu0 %1662
    %1664 = vadd.xlane.f32.xlu0 %v1651
    %v1665 = vpop.xlane.xlu0 %1664
    %v1666 = vmul.f32 %v1655, %v488
    %v1667 = vmul.f32 %v1657, %v488
    %v1668 = vmul.f32 %v1659, %v488
    %v1669 = vmul.f32 %v1661, %v488
    %v1670 = vmul.f32 %v1663, %v488
    %v1671 = vmul.f32 %v1665, %v488
    %v1672 = vsub.f32 %v1632, %v1666
    %v1673 = vsub.f32 %v1635, %v1667
    %v1674 = vsub.f32 %v1640, %v1668
    %v1675 = vsub.f32 %v1643, %v1669
    %v1676 = vsub.f32 %v1648, %v1670
    %v1677 = vsub.f32 %v1651, %v1671
    %v1678 = vmul.f32 %v1672, %v1672
    %v1679 = vmul.f32 %v1673, %v1673
    %v1680 = vmul.f32 %v1674, %v1674
    %v1681 = vmul.f32 %v1675, %v1675
    %v1682 = vmul.f32 %v1676, %v1676
    %v1683 = vmul.f32 %v1677, %v1677
    %1684 = vadd.xlane.f32.xlu0 %v1678
    %v1685 = vpop.xlane.xlu0 %1684
    %1686 = vadd.xlane.f32.xlu0 %v1679
    %v1687 = vpop.xlane.xlu0 %1686
    %1688 = vadd.xlane.f32.xlu0 %v1680
    %v1689 = vpop.xlane.xlu0 %1688
    %1690 = vadd.xlane.f32.xlu0 %v1681
    %v1691 = vpop.xlane.xlu0 %1690
    %1692 = vadd.xlane.f32.xlu0 %v1682
    %v1693 = vpop.xlane.xlu0 %1692
    %1694 = vadd.xlane.f32.xlu0 %v1683
    %v1695 = vpop.xlane.xlu0 %1694
    %v1696 = vmul.f32 %v1685, %v488
    %v1697 = vmul.f32 %v1687, %v488
    %v1698 = vmul.f32 %v1689, %v488
    %v1699 = vmul.f32 %v1691, %v488
    %v1700 = vmul.f32 %v1693, %v488
    %v1701 = vmul.f32 %v1695, %v488
    %v1702 = vadd.f32 %v1696, 1e-05
    %v1703 = vadd.f32 %v1697, 1e-05
    %v1704 = vadd.f32 %v1698, 1e-05
    %v1705 = vadd.f32 %v1699, 1e-05
    %v1706 = vadd.f32 %v1700, 1e-05
    %v1707 = vadd.f32 %v1701, 1e-05
    %v1708 = vrsqrt.pop %v1702
    %v1709 = vrsqrt.pop %v1703
    %v1710 = vrsqrt.pop %v1704
    %v1711 = vrsqrt.pop %v1705
    %v1712 = vrsqrt.pop %v1706
    %v1713 = vrsqrt.pop %v1707
    %v1714 = vmul.f32 %v1672, %v1708
    %v1715 = vmul.f32 %v1673, %v1709
    %v1716 = vmul.f32 %v1674, %v1710
    %v1717 = vmul.f32 %v1675, %v1711
    %v1718 = vmul.f32 %v1676, %v1712
    %v1719 = vmul.f32 %v1677, %v1713
    %v1720 = vlaneseq
    %v1721 = vshrl.u32 %v1720, 7
    %v1722 = vsub.s32 0, %v1721
    %v1723 = vrot.slane %v460, %v1722
    %v1724 = vmul.f32 %v1714, %v1723
    %v1725 = vmul.f32 %v1715, %v1723
    %v1726 = vmul.f32 %v1716, %v1723
    %v1727 = vmul.f32 %v1717, %v1723
    %v1728 = vmul.f32 %v1718, %v1723
    %v1729 = vmul.f32 %v1719, %v1723
    %v1730 = vlaneseq
    %v1731 = vshrl.u32 %v1730, 7
    %v1732 = vsub.s32 0, %v1731
    %v1733 = vrot.slane %v461, %v1732
    %v1734 = vadd.f32 %v1724, %v1733
    %v1735 = vadd.f32 %v1725, %v1733
    %v1736 = vadd.f32 %v1726, %v1733
    %v1737 = vadd.f32 %v1727, %v1733
    %v1738 = vadd.f32 %v1728, %v1733
    %v1739 = vadd.f32 %v1729, %v1733
    %v1740 = vmax.f32 %v1734, 0.0
    %v1741 = vmax.f32 %v1735, 0.0
    %v1742 = vmax.f32 %v1736, 0.0
    %v1743 = vmax.f32 %v1737, 0.0
    %v1744 = vmax.f32 %v1738, 0.0
    %v1745 = vmax.f32 %v1739, 0.0
    %v1746 = vpack.c.bf16 %v1741, %v1740
    %v1747 = vpack.c.bf16 %v1743, %v1742
    %v1748 = vpack.c.bf16 %v1745, %v1744
    %v1749 = vld [vmem:[#allocation10] sm:$0xf]
    %v1750 = vld [vmem:[#allocation10 + $0x4] sm:$0xf]
    %v1751 = vld [vmem:[#allocation10 + $0x8] sm:$0xf]
    %v1752 = vld [vmem:[#allocation10 + $0xc] sm:$0xf]
    %v1753 = vld [vmem:[#allocation10 + $0x10] sm:$0xf]
    %v1754 = vld [vmem:[#allocation10 + $0x14] sm:$0xf]
    %v1755 = vld [vmem:[#allocation10 + $0x18] sm:$0xf]
    %v1756 = vld [vmem:[#allocation10 + $0x1c] sm:$0xf]
    %v1757 = vld [vmem:[#allocation10 + $0x20] sm:$0xf]
    %v1758 = vld [vmem:[#allocation10 + $0x24] sm:$0xf]
    %v1759 = vld [vmem:[#allocation10 + $0x28] sm:$0xf]
    %v1760 = vld [vmem:[#allocation10 + $0x2c] sm:$0xf]
    %v1761 = vld [vmem:[#allocation10 + $0x30] sm:$0xf]
    %v1762 = vld [vmem:[#allocation10 + $0x34] sm:$0xf]
    %v1763 = vld [vmem:[#allocation10 + $0x38] sm:$0xf]
    %v1764 = vld [vmem:[#allocation10 + $0x3c] sm:$0xf]
    %v1781 = vunpack.c.l.b16 %v1749
    %v1782 = vunpack.c.l.b16 %v1750
    %v1783 = vunpack.c.l.b16 %v1751
    %v1784 = vunpack.c.l.b16 %v1752
    %v1785 = vunpack.c.l.b16 %v1753
    %v1786 = vunpack.c.l.b16 %v1754
    %v1787 = vunpack.c.l.b16 %v1755
    %v1788 = vunpack.c.l.b16 %v1756
    %v1789 = vunpack.c.l.b16 %v1757
    %v1790 = vunpack.c.l.b16 %v1758
    %v1791 = vunpack.c.l.b16 %v1759
    %v1792 = vunpack.c.l.b16 %v1760
    %v1793 = vunpack.c.l.b16 %v1761
    %v1794 = vunpack.c.l.b16 %v1762
    %v1795 = vunpack.c.l.b16 %v1763
    %v1796 = vunpack.c.l.b16 %v1764
    %v1797 = vpack.c.b16 %v1782, %v1781
    %v1798 = vpack.c.b16 %v1784, %v1783
    %v1799 = vpack.c.b16 %v1786, %v1785
    %v1800 = vpack.c.b16 %v1788, %v1787
    %v1801 = vpack.c.b16 %v1790, %v1789
    %v1802 = vpack.c.b16 %v1792, %v1791
    %v1803 = vpack.c.b16 %v1794, %v1793
    %v1804 = vpack.c.b16 %v1796, %v1795
    %1813 = vmatprep.subr.bf16.mxu0 0
    %1814 = vmatpush1.bf16.msra.mxu0 %v1797
    %1815 = vmatprep.subr.bf16.mxu0 0
    %1816 = vmatpush1.bf16.msra.mxu0 %v1798
    %1817 = vmatprep.subr.bf16.mxu0 0
    %1818 = vmatpush1.bf16.msra.mxu0 %v1799
    %1819 = vmatprep.subr.bf16.mxu0 0
    %1820 = vmatpush1.bf16.msra.mxu0 %v1800
    %1821 = vmatprep.subr.bf16.mxu0 0
    %1822 = vmatpush1.bf16.msra.mxu0 %v1801
    %1823 = vmatprep.subr.bf16.mxu0 0
    %1824 = vmatpush1.bf16.msra.mxu0 %v1802
    %1825 = vmatprep.subr.bf16.mxu0 0
    %1826 = vmatpush1.bf16.msra.mxu0 %v1803
    %1827 = vmatprep.subr.bf16.mxu0 0
    %1828 = vmatpush1.bf16.msra.mxu0 %v1804
    %1829 = vmatprep.subr.bf16.mxu0 0
    %1830 = vmatpush1.bf16.msra.mxu0 0
    %1831 = vmatprep.subr.bf16.mxu0 0
    %1832 = vmatpush1.bf16.msra.mxu0 0
    %1833 = vmatprep.subr.bf16.mxu0 0
    %1834 = vmatpush1.bf16.msra.mxu0 0
    %1835 = vmatprep.subr.bf16.mxu0 0
    %1836 = vmatpush1.bf16.msra.mxu0 0
    %1837 = vmatprep.subr.bf16.mxu0 0
    %1838 = vmatpush1.bf16.msra.mxu0 0
    %1839 = vmatprep.subr.bf16.mxu0 0
    %1840 = vmatpush1.bf16.msra.mxu0 0
    %1841 = vmatprep.subr.bf16.mxu0 0
    %1842 = vmatpush1.bf16.msra.mxu0 0
    %1843 = vmatprep.subr.bf16.mxu0 0
    %1844 = vmatpush1.bf16.msra.mxu0 0
    %1845 = vmatprep.mubr.bf16.mxu0 0
    %1846 = vmatmul.mubr.bf16.gmra.mrb[0].mxu0 %v1746
    %v1847 = vpop.f32.mrb[0].mxu0
    %v1848 = vadd.f32 %v451, %v1847
    %v1849 = vpop.f32.mrb[0].mxu0
    %v1850 = vpop.f32.mrb[0].mxu0
    %v1851 = vadd.f32 %v455, %v1850
    %v1852 = vpop.f32.mrb[0].mxu0
    %1853 = vmatprep.mubr.bf16.mxu0 0
    %1854 = vmatmul.mubr.bf16.gmra.mrb[0].mxu0 %v1747
    %v1855 = vpop.f32.mrb[0].mxu0
    %v1856 = vadd.f32 %v451, %v1855
    %v1857 = vpop.f32.mrb[0].mxu0
    %v1858 = vpop.f32.mrb[0].mxu0
    %v1859 = vadd.f32 %v455, %v1858
    %v1860 = vpop.f32.mrb[0].mxu0
    %1861 = vmatprep.mubr.bf16.mxu0 0
    %1862 = vmatmul.mubr.bf16.gmra.mrb[0].mxu0 %v1748
    %v1863 = vpop.f32.mrb[0].mxu0
    %v1864 = vadd.f32 %v451, %v1863
    %v1865 = vpop.f32.mrb[0].mxu0
    %v1866 = vpop.f32.mrb[0].mxu0
    %v1867 = vadd.f32 %v455, %v1866
    %v1868 = vpop.f32.mrb[0].mxu0
    %1869 = vdwg.mxu0
    %1870 = vadd.xlane.f32.xlu0 %v1848
    %v1871 = vpop.xlane.xlu0 %1870
    %1872 = vadd.xlane.f32.xlu0 %v1851
    %v1873 = vpop.xlane.xlu0 %1872
    %1874 = vadd.xlane.f32.xlu0 %v1856
    %v1875 = vpop.xlane.xlu0 %1874
    %1876 = vadd.xlane.f32.xlu0 %v1859
    %v1877 = vpop.xlane.xlu0 %1876
    %1878 = vadd.xlane.f32.xlu0 %v1864
    %v1879 = vpop.xlane.xlu0 %1878
    %1880 = vadd.xlane.f32.xlu0 %v1867
    %v1881 = vpop.xlane.xlu0 %1880
    %v1882 = vmul.f32 %v1871, %v488
    %v1883 = vmul.f32 %v1873, %v488
    %v1884 = vmul.f32 %v1875, %v488
    %v1885 = vmul.f32 %v1877, %v488
    %v1886 = vmul.f32 %v1879, %v488
    %v1887 = vmul.f32 %v1881, %v488
    %v1888 = vsub.f32 %v1848, %v1882
    %v1889 = vsub.f32 %v1851, %v1883
    %v1890 = vsub.f32 %v1856, %v1884
    %v1891 = vsub.f32 %v1859, %v1885
    %v1892 = vsub.f32 %v1864, %v1886
    %v1893 = vsub.f32 %v1867, %v1887
    %v1894 = vmul.f32 %v1888, %v1888
    %v1895 = vmul.f32 %v1889, %v1889
    %v1896 = vmul.f32 %v1890, %v1890
    %v1897 = vmul.f32 %v1891, %v1891
    %v1898 = vmul.f32 %v1892, %v1892
    %v1899 = vmul.f32 %v1893, %v1893
    %1900 = vadd.xlane.f32.xlu0 %v1894
    %v1901 = vpop.xlane.xlu0 %1900
    %1902 = vadd.xlane.f32.xlu0 %v1895
    %v1903 = vpop.xlane.xlu0 %1902
    %1904 = vadd.xlane.f32.xlu0 %v1896
    %v1905 = vpop.xlane.xlu0 %1904
    %1906 = vadd.xlane.f32.xlu0 %v1897
    %v1907 = vpop.xlane.xlu0 %1906
    %1908 = vadd.xlane.f32.xlu0 %v1898
    %v1909 = vpop.xlane.xlu0 %1908
    %1910 = vadd.xlane.f32.xlu0 %v1899
    %v1911 = vpop.xlane.xlu0 %1910
    %v1912 = vmul.f32 %v1901, %v488
    %v1913 = vmul.f32 %v1903, %v488
    %v1914 = vmul.f32 %v1905, %v488
    %v1915 = vmul.f32 %v1907, %v488
    %v1916 = vmul.f32 %v1909, %v488
    %v1917 = vmul.f32 %v1911, %v488
    %v1918 = vadd.f32 %v1912, 1e-05
    %v1919 = vadd.f32 %v1913, 1e-05
    %v1920 = vadd.f32 %v1914, 1e-05
    %v1921 = vadd.f32 %v1915, 1e-05
    %v1922 = vadd.f32 %v1916, 1e-05
    %v1923 = vadd.f32 %v1917, 1e-05
    %v1924 = vrsqrt.pop %v1918
    %v1925 = vrsqrt.pop %v1919
    %v1926 = vrsqrt.pop %v1920
    %v1927 = vrsqrt.pop %v1921
    %v1928 = vrsqrt.pop %v1922
    %v1929 = vrsqrt.pop %v1923
    %v1930 = vmul.f32 %v1888, %v1924
    %v1931 = vmul.f32 %v1889, %v1925
    %v1932 = vmul.f32 %v1890, %v1926
    %v1933 = vmul.f32 %v1891, %v1927
    %v1934 = vmul.f32 %v1892, %v1928
    %v1935 = vmul.f32 %v1893, %v1929
    %v1936 = vlaneseq
    %v1937 = vshrl.u32 %v1936, 7
    %v1938 = vsub.s32 0, %v1937
    %v1939 = vrot.slane %v462, %v1938
    %v1940 = vmul.f32 %v1930, %v1939
    %v1941 = vmul.f32 %v1931, %v1939
    %v1942 = vmul.f32 %v1932, %v1939
    %v1943 = vmul.f32 %v1933, %v1939
    %v1944 = vmul.f32 %v1934, %v1939
    %v1945 = vmul.f32 %v1935, %v1939
    %v1946 = vlaneseq
    %v1947 = vshrl.u32 %v1946, 7
    %v1948 = vsub.s32 0, %v1947
    %v1949 = vrot.slane %v463, %v1948
    %v1950 = vadd.f32 %v1940, %v1949
    %v1951 = vadd.f32 %v1941, %v1949
    %v1952 = vadd.f32 %v1942, %v1949
    %v1953 = vadd.f32 %v1943, %v1949
    %v1954 = vadd.f32 %v1944, %v1949
    %v1955 = vadd.f32 %v1945, %v1949
    %v1956 = vmax.f32 %v1950, 0.0
    %v1957 = vmax.f32 %v1951, 0.0
    %v1958 = vmax.f32 %v1952, 0.0
    %v1959 = vmax.f32 %v1953, 0.0
    %v1960 = vmax.f32 %v1954, 0.0
    %v1961 = vmax.f32 %v1955, 0.0
    %v1962 = vpack.c.bf16 %v1957, %v1956
    %v1963 = vpack.c.bf16 %v1959, %v1958
    %v1964 = vpack.c.bf16 %v1961, %v1960
    %v1965 = vld [vmem:[#allocation11] sm:$0xf]
    %v1966 = vld [vmem:[#allocation11 + $0x4] sm:$0xf]
    %v1967 = vld [vmem:[#allocation11 + $0x8] sm:$0xf]
    %v1968 = vld [vmem:[#allocation11 + $0xc] sm:$0xf]
    %v1969 = vld [vmem:[#allocation11 + $0x10] sm:$0xf]
    %v1970 = vld [vmem:[#allocation11 + $0x14] sm:$0xf]
    %v1971 = vld [vmem:[#allocation11 + $0x18] sm:$0xf]
    %v1972 = vld [vmem:[#allocation11 + $0x1c] sm:$0xf]
    %v1973 = vld [vmem:[#allocation11 + $0x20] sm:$0xf]
    %v1974 = vld [vmem:[#allocation11 + $0x24] sm:$0xf]
    %v1975 = vld [vmem:[#allocation11 + $0x28] sm:$0xf]
    %v1976 = vld [vmem:[#allocation11 + $0x2c] sm:$0xf]
    %v1977 = vld [vmem:[#allocation11 + $0x30] sm:$0xf]
    %v1978 = vld [vmem:[#allocation11 + $0x34] sm:$0xf]
    %v1979 = vld [vmem:[#allocation11 + $0x38] sm:$0xf]
    %v1980 = vld [vmem:[#allocation11 + $0x3c] sm:$0xf]
    %v1981 = vlaneseq
    %v1982 = vshrl.u32 %v1981, 7
    %v1983 = vsub.s32 0, %v1982
    %v1984 = vrot.slane %v464, %v1983
    %v2001 = vunpack.c.l.b16 %v1965
    %v2002 = vunpack.c.l.b16 %v1966
    %v2003 = vunpack.c.l.b16 %v1967
    %v2004 = vunpack.c.l.b16 %v1968
    %v2005 = vunpack.c.l.b16 %v1969
    %v2006 = vunpack.c.l.b16 %v1970
    %v2007 = vunpack.c.l.b16 %v1971
    %v2008 = vunpack.c.l.b16 %v1972
    %v2009 = vunpack.c.l.b16 %v1973
    %v2010 = vunpack.c.l.b16 %v1974
    %v2011 = vunpack.c.l.b16 %v1975
    %v2012 = vunpack.c.l.b16 %v1976
    %v2013 = vunpack.c.l.b16 %v1977
    %v2014 = vunpack.c.l.b16 %v1978
    %v2015 = vunpack.c.l.b16 %v1979
    %v2016 = vunpack.c.l.b16 %v1980
    %v2017 = vpack.c.b16 %v2002, %v2001
    %v2018 = vpack.c.b16 %v2004, %v2003
    %v2019 = vpack.c.b16 %v2006, %v2005
    %v2020 = vpack.c.b16 %v2008, %v2007
    %v2021 = vpack.c.b16 %v2010, %v2009
    %v2022 = vpack.c.b16 %v2012, %v2011
    %v2023 = vpack.c.b16 %v2014, %v2013
    %v2024 = vpack.c.b16 %v2016, %v2015
    %2033 = vmatprep.subr.bf16.mxu0 0
    %2034 = vmatpush1.bf16.msra.mxu0 %v2017
    %2035 = vmatprep.subr.bf16.mxu0 0
    %2036 = vmatpush1.bf16.msra.mxu0 %v2018
    %2037 = vmatprep.subr.bf16.mxu0 0
    %2038 = vmatpush1.bf16.msra.mxu0 %v2019
    %2039 = vmatprep.subr.bf16.mxu0 0
    %2040 = vmatpush1.bf16.msra.mxu0 %v2020
    %2041 = vmatprep.subr.bf16.mxu0 0
    %2042 = vmatpush1.bf16.msra.mxu0 %v2021
    %2043 = vmatprep.subr.bf16.mxu0 0
    %2044 = vmatpush1.bf16.msra.mxu0 %v2022
    %2045 = vmatprep.subr.bf16.mxu0 0
    %2046 = vmatpush1.bf16.msra.mxu0 %v2023
    %2047 = vmatprep.subr.bf16.mxu0 0
    %2048 = vmatpush1.bf16.msra.mxu0 %v2024
    %2049 = vmatprep.subr.bf16.mxu0 0
    %2050 = vmatpush1.bf16.msra.mxu0 0
    %2051 = vmatprep.subr.bf16.mxu0 0
    %2052 = vmatpush1.bf16.msra.mxu0 0
    %2053 = vmatprep.subr.bf16.mxu0 0
    %2054 = vmatpush1.bf16.msra.mxu0 0
    %2055 = vmatprep.subr.bf16.mxu0 0
    %2056 = vmatpush1.bf16.msra.mxu0 0
    %2057 = vmatprep.subr.bf16.mxu0 0
    %2058 = vmatpush1.bf16.msra.mxu0 0
    %2059 = vmatprep.subr.bf16.mxu0 0
    %2060 = vmatpush1.bf16.msra.mxu0 0
    %2061 = vmatprep.subr.bf16.mxu0 0
    %2062 = vmatpush1.bf16.msra.mxu0 0
    %2063 = vmatprep.subr.bf16.mxu0 0
    %2064 = vmatpush1.bf16.msra.mxu0 0
    %2065 = vmatprep.mubr.bf16.mxu0 0
    %2066 = vmatmul.mubr.bf16.gmra.mrb[0].mxu0 %v1962
    %v2067 = vpop.f32.mrb[0].mxu0
    %v2068 = vadd.f32 %v1984, %v2067
    %v2069 = vpop.f32.mrb[0].mxu0
    %v2070 = vpop.f32.mrb[0].mxu0
    %v2071 = vadd.f32 %v1984, %v2070
    %v2072 = vpop.f32.mrb[0].mxu0
    %2073 = vmatprep.mubr.bf16.mxu0 0
    %2074 = vmatmul.mubr.bf16.gmra.mrb[0].mxu0 %v1963
    %v2075 = vpop.f32.mrb[0].mxu0
    %v2076 = vadd.f32 %v1984, %v2075
    %v2077 = vpop.f32.mrb[0].mxu0
    %v2078 = vpop.f32.mrb[0].mxu0
    %v2079 = vadd.f32 %v1984, %v2078
    %v2080 = vpop.f32.mrb[0].mxu0
    %2081 = vmatprep.mubr.bf16.mxu0 0
    %2082 = vmatmul.mubr.bf16.gmra.mrb[0].mxu0 %v1964
    %v2083 = vpop.f32.mrb[0].mxu0
    %v2084 = vadd.f32 %v1984, %v2083
    %v2085 = vpop.f32.mrb[0].mxu0
    %v2086 = vpop.f32.mrb[0].mxu0
    %v2087 = vadd.f32 %v1984, %v2086
    %v2088 = vpop.f32.mrb[0].mxu0
    %2089 = vdwg.mxu0
    %2090 = vadd.xlane.f32.xlu0 %v2068
    %v2091 = vpop.xlane.xlu0 %2090
    %2092 = vadd.xlane.f32.xlu0 %v2071
    %v2093 = vpop.xlane.xlu0 %2092
    %2094 = vadd.xlane.f32.xlu0 %v2076
    %v2095 = vpop.xlane.xlu0 %2094
    %2096 = vadd.xlane.f32.xlu0 %v2079
    %v2097 = vpop.xlane.xlu0 %2096
    %2098 = vadd.xlane.f32.xlu0 %v2084
    %v2099 = vpop.xlane.xlu0 %2098
    %2100 = vadd.xlane.f32.xlu0 %v2087
    %v2101 = vpop.xlane.xlu0 %2100
    %v2102 = vmul.f32 %v2091, %v488
    %v2103 = vmul.f32 %v2093, %v488
    %v2104 = vmul.f32 %v2095, %v488
    %v2105 = vmul.f32 %v2097, %v488
    %v2106 = vmul.f32 %v2099, %v488
    %v2107 = vmul.f32 %v2101, %v488
    %v2108 = vsub.f32 %v2068, %v2102
    %v2109 = vsub.f32 %v2071, %v2103
    %v2110 = vsub.f32 %v2076, %v2104
    %v2111 = vsub.f32 %v2079, %v2105
    %v2112 = vsub.f32 %v2084, %v2106
    %v2113 = vsub.f32 %v2087, %v2107
    %v2114 = vmul.f32 %v2108, %v2108
    %v2115 = vmul.f32 %v2109, %v2109
    %v2116 = vmul.f32 %v2110, %v2110
    %v2117 = vmul.f32 %v2111, %v2111
    %v2118 = vmul.f32 %v2112, %v2112
    %v2119 = vmul.f32 %v2113, %v2113
    %2120 = vadd.xlane.f32.xlu0 %v2114
    %v2121 = vpop.xlane.xlu0 %2120
    %2122 = vadd.xlane.f32.xlu0 %v2115
    %v2123 = vpop.xlane.xlu0 %2122
    %2124 = vadd.xlane.f32.xlu0 %v2116
    %v2125 = vpop.xlane.xlu0 %2124
    %2126 = vadd.xlane.f32.xlu0 %v2117
    %v2127 = vpop.xlane.xlu0 %2126
    %2128 = vadd.xlane.f32.xlu0 %v2118
    %v2129 = vpop.xlane.xlu0 %2128
    %2130 = vadd.xlane.f32.xlu0 %v2119
    %v2131 = vpop.xlane.xlu0 %2130
    %v2132 = vmul.f32 %v2121, %v488
    %v2133 = vmul.f32 %v2123, %v488
    %v2134 = vmul.f32 %v2125, %v488
    %v2135 = vmul.f32 %v2127, %v488
    %v2136 = vmul.f32 %v2129, %v488
    %v2137 = vmul.f32 %v2131, %v488
    %v2138 = vadd.f32 %v2132, 1e-05
    %v2139 = vadd.f32 %v2133, 1e-05
    %v2140 = vadd.f32 %v2134, 1e-05
    %v2141 = vadd.f32 %v2135, 1e-05
    %v2142 = vadd.f32 %v2136, 1e-05
    %v2143 = vadd.f32 %v2137, 1e-05
    %v2144 = vrsqrt.pop %v2138
    %v2145 = vrsqrt.pop %v2139
    %v2146 = vrsqrt.pop %v2140
    %v2147 = vrsqrt.pop %v2141
    %v2148 = vrsqrt.pop %v2142
    %v2149 = vrsqrt.pop %v2143
    %v2150 = vmul.f32 %v2108, %v2144
    %v2151 = vmul.f32 %v2109, %v2145
    %v2152 = vmul.f32 %v2110, %v2146
    %v2153 = vmul.f32 %v2111, %v2147
    %v2154 = vmul.f32 %v2112, %v2148
    %v2155 = vmul.f32 %v2113, %v2149
    %v2156 = vlaneseq
    %v2157 = vshrl.u32 %v2156, 7
    %v2158 = vsub.s32 0, %v2157
    %v2159 = vrot.slane %v465, %v2158
    %v2160 = vmul.f32 %v2150, %v2159
    %v2161 = vmul.f32 %v2151, %v2159
    %v2162 = vmul.f32 %v2152, %v2159
    %v2163 = vmul.f32 %v2153, %v2159
    %v2164 = vmul.f32 %v2154, %v2159
    %v2165 = vmul.f32 %v2155, %v2159
    %v2166 = vlaneseq
    %v2167 = vshrl.u32 %v2166, 7
    %v2168 = vsub.s32 0, %v2167
    %v2169 = vrot.slane %v466, %v2168
    %v2170 = vadd.f32 %v2160, %v2169
    %v2171 = vadd.f32 %v2161, %v2169
    %v2172 = vadd.f32 %v2162, %v2169
    %v2173 = vadd.f32 %v2163, %v2169
    %v2174 = vadd.f32 %v2164, %v2169
    %v2175 = vadd.f32 %v2165, %v2169
    %v2176 = vmax.f32 %v2170, 0.0
    %v2177 = vmax.f32 %v2171, 0.0
    %v2178 = vmax.f32 %v2172, 0.0
    %v2179 = vmax.f32 %v2173, 0.0
    %v2180 = vmax.f32 %v2174, 0.0
    %v2181 = vmax.f32 %v2175, 0.0
    %v2182 = vpack.c.bf16 %v2177, %v2176
    %v2183 = vpack.c.bf16 %v2179, %v2178
    %v2184 = vpack.c.bf16 %v2181, %v2180
    %v2185 = vld [vmem:[#allocation13] sm:$0xf]
    %v2186 = vld [vmem:[#allocation13 + $0x4] sm:$0xf]
    %v2187 = vld [vmem:[#allocation13 + $0x8] sm:$0xf]
    %v2188 = vld [vmem:[#allocation13 + $0xc] sm:$0xf]
    %v2189 = vld [vmem:[#allocation13 + $0x10] sm:$0xf]
    %v2190 = vld [vmem:[#allocation13 + $0x14] sm:$0xf]
    %v2191 = vld [vmem:[#allocation13 + $0x18] sm:$0xf]
    %v2192 = vld [vmem:[#allocation13 + $0x1c] sm:$0xf]
    %v2193 = vld [vmem:[#allocation13 + $0x20] sm:$0xf]
    %v2194 = vld [vmem:[#allocation13 + $0x24] sm:$0xf]
    %v2195 = vld [vmem:[#allocation13 + $0x28] sm:$0xf]
    %v2196 = vld [vmem:[#allocation13 + $0x2c] sm:$0xf]
    %v2197 = vld [vmem:[#allocation13 + $0x30] sm:$0xf]
    %v2198 = vld [vmem:[#allocation13 + $0x34] sm:$0xf]
    %v2199 = vld [vmem:[#allocation13 + $0x38] sm:$0xf]
    %v2200 = vld [vmem:[#allocation13 + $0x3c] sm:$0xf]
    %v2201 = vlaneseq
    %v2202 = vshrl.u32 %v2201, 7
    %v2203 = vsub.s32 0, %v2202
    %v2204 = vrot.slane %v467, %v2203
    %v2221 = vunpack.c.l.b16 %v2185
    %v2222 = vunpack.c.l.b16 %v2186
    %v2223 = vunpack.c.l.b16 %v2187
    %v2224 = vunpack.c.l.b16 %v2188
    %v2225 = vunpack.c.l.b16 %v2189
    %v2226 = vunpack.c.l.b16 %v2190
    %v2227 = vunpack.c.l.b16 %v2191
    %v2228 = vunpack.c.l.b16 %v2192
    %v2229 = vunpack.c.l.b16 %v2193
    %v2230 = vunpack.c.l.b16 %v2194
    %v2231 = vunpack.c.l.b16 %v2195
    %v2232 = vunpack.c.l.b16 %v2196
    %v2233 = vunpack.c.l.b16 %v2197
    %v2234 = vunpack.c.l.b16 %v2198
    %v2235 = vunpack.c.l.b16 %v2199
    %v2236 = vunpack.c.l.b16 %v2200
    %v2237 = vpack.c.b16 %v2222, %v2221
    %v2238 = vpack.c.b16 %v2224, %v2223
    %v2239 = vpack.c.b16 %v2226, %v2225
    %v2240 = vpack.c.b16 %v2228, %v2227
    %v2241 = vpack.c.b16 %v2230, %v2229
    %v2242 = vpack.c.b16 %v2232, %v2231
    %v2243 = vpack.c.b16 %v2234, %v2233
    %v2244 = vpack.c.b16 %v2236, %v2235
    %2253 = vmatprep.subr.bf16.mxu0 0
    %2254 = vmatpush1.bf16.msra.mxu0 %v2237
    %2255 = vmatprep.subr.bf16.mxu0 0
    %2256 = vmatpush1.bf16.msra.mxu0 %v2238
    %2257 = vmatprep.subr.bf16.mxu0 0
    %2258 = vmatpush1.bf16.msra.mxu0 %v2239
    %2259 = vmatprep.subr.bf16.mxu0 0
    %2260 = vmatpush1.bf16.msra.mxu0 %v2240
    %2261 = vmatprep.subr.bf16.mxu0 0
    %2262 = vmatpush1.bf16.msra.mxu0 %v2241
    %2263 = vmatprep.subr.bf16.mxu0 0
    %2264 = vmatpush1.bf16.msra.mxu0 %v2242
    %2265 = vmatprep.subr.bf16.mxu0 0
    %2266 = vmatpush1.bf16.msra.mxu0 %v2243
    %2267 = vmatprep.subr.bf16.mxu0 0
    %2268 = vmatpush1.bf16.msra.mxu0 %v2244
    %2269 = vmatprep.subr.bf16.mxu0 0
    %2270 = vmatpush1.bf16.msra.mxu0 0
    %2271 = vmatprep.subr.bf16.mxu0 0
    %2272 = vmatpush1.bf16.msra.mxu0 0
    %2273 = vmatprep.subr.bf16.mxu0 0
    %2274 = vmatpush1.bf16.msra.mxu0 0
    %2275 = vmatprep.subr.bf16.mxu0 0
    %2276 = vmatpush1.bf16.msra.mxu0 0
    %2277 = vmatprep.subr.bf16.mxu0 0
    %2278 = vmatpush1.bf16.msra.mxu0 0
    %2279 = vmatprep.subr.bf16.mxu0 0
    %2280 = vmatpush1.bf16.msra.mxu0 0
    %2281 = vmatprep.subr.bf16.mxu0 0
    %2282 = vmatpush1.bf16.msra.mxu0 0
    %2283 = vmatprep.subr.bf16.mxu0 0
    %2284 = vmatpush1.bf16.msra.mxu0 0
    %2285 = vmatprep.mubr.bf16.mxu0 0
    %2286 = vmatmul.mubr.bf16.gmra.mrb[0].mxu0 %v2182
    %v2287 = vpop.f32.mrb[0].mxu0
    %v2288 = vadd.f32 %v2204, %v2287
    %v2289 = vpop.f32.mrb[0].mxu0
    %v2290 = vpop.f32.mrb[0].mxu0
    %v2291 = vadd.f32 %v2204, %v2290
    %v2292 = vpop.f32.mrb[0].mxu0
    %2293 = vmatprep.mubr.bf16.mxu0 0
    %2294 = vmatmul.mubr.bf16.gmra.mrb[0].mxu0 %v2183
    %v2295 = vpop.f32.mrb[0].mxu0
    %v2296 = vadd.f32 %v2204, %v2295
    %v2297 = vpop.f32.mrb[0].mxu0
    %v2298 = vpop.f32.mrb[0].mxu0
    %v2299 = vadd.f32 %v2204, %v2298
    %v2300 = vpop.f32.mrb[0].mxu0
    %2301 = vmatprep.mubr.bf16.mxu0 0
    %2302 = vmatmul.mubr.bf16.gmra.mrb[0].mxu0 %v2184
    %v2303 = vpop.f32.mrb[0].mxu0
    %v2304 = vadd.f32 %v2204, %v2303
    %v2305 = vpop.f32.mrb[0].mxu0
    %v2306 = vpop.f32.mrb[0].mxu0
    %v2307 = vadd.f32 %v2204, %v2306
    %v2308 = vpop.f32.mrb[0].mxu0
    %2309 = vdwg.mxu0
    %2310 = vadd.xlane.f32.xlu0 %v2288
    %v2311 = vpop.xlane.xlu0 %2310
    %2312 = vadd.xlane.f32.xlu0 %v2291
    %v2313 = vpop.xlane.xlu0 %2312
    %2314 = vadd.xlane.f32.xlu0 %v2296
    %v2315 = vpop.xlane.xlu0 %2314
    %2316 = vadd.xlane.f32.xlu0 %v2299
    %v2317 = vpop.xlane.xlu0 %2316
    %2318 = vadd.xlane.f32.xlu0 %v2304
    %v2319 = vpop.xlane.xlu0 %2318
    %2320 = vadd.xlane.f32.xlu0 %v2307
    %v2321 = vpop.xlane.xlu0 %2320
    %v2322 = vmul.f32 %v2311, %v488
    %v2323 = vmul.f32 %v2313, %v488
    %v2324 = vmul.f32 %v2315, %v488
    %v2325 = vmul.f32 %v2317, %v488
    %v2326 = vmul.f32 %v2319, %v488
    %v2327 = vmul.f32 %v2321, %v488
    %v2328 = vsub.f32 %v2288, %v2322
    %v2329 = vsub.f32 %v2291, %v2323
    %v2330 = vsub.f32 %v2296, %v2324
    %v2331 = vsub.f32 %v2299, %v2325
    %v2332 = vsub.f32 %v2304, %v2326
    %v2333 = vsub.f32 %v2307, %v2327
    %v2334 = vmul.f32 %v2328, %v2328
    %v2335 = vmul.f32 %v2329, %v2329
    %v2336 = vmul.f32 %v2330, %v2330
    %v2337 = vmul.f32 %v2331, %v2331
    %v2338 = vmul.f32 %v2332, %v2332
    %v2339 = vmul.f32 %v2333, %v2333
    %2340 = vadd.xlane.f32.xlu0 %v2334
    %v2341 = vpop.xlane.xlu0 %2340
    %2342 = vadd.xlane.f32.xlu0 %v2335
    %v2343 = vpop.xlane.xlu0 %2342
    %2344 = vadd.xlane.f32.xlu0 %v2336
    %v2345 = vpop.xlane.xlu0 %2344
    %2346 = vadd.xlane.f32.xlu0 %v2337
    %v2347 = vpop.xlane.xlu0 %2346
    %2348 = vadd.xlane.f32.xlu0 %v2338
    %v2349 = vpop.xlane.xlu0 %2348
    %2350 = vadd.xlane.f32.xlu0 %v2339
    %v2351 = vpop.xlane.xlu0 %2350
    %v2352 = vmul.f32 %v2341, %v488
    %v2353 = vmul.f32 %v2343, %v488
    %v2354 = vmul.f32 %v2345, %v488
    %v2355 = vmul.f32 %v2347, %v488
    %v2356 = vmul.f32 %v2349, %v488
    %v2357 = vmul.f32 %v2351, %v488
    %v2358 = vadd.f32 %v2352, 1e-05
    %v2359 = vadd.f32 %v2353, 1e-05
    %v2360 = vadd.f32 %v2354, 1e-05
    %v2361 = vadd.f32 %v2355, 1e-05
    %v2362 = vadd.f32 %v2356, 1e-05
    %v2363 = vadd.f32 %v2357, 1e-05
    %v2364 = vrsqrt.pop %v2358
    %v2365 = vrsqrt.pop %v2359
    %v2366 = vrsqrt.pop %v2360
    %v2367 = vrsqrt.pop %v2361
    %v2368 = vrsqrt.pop %v2362
    %v2369 = vrsqrt.pop %v2363
    %v2370 = vmul.f32 %v2328, %v2364
    %v2371 = vmul.f32 %v2329, %v2365
    %v2372 = vmul.f32 %v2330, %v2366
    %v2373 = vmul.f32 %v2331, %v2367
    %v2374 = vmul.f32 %v2332, %v2368
    %v2375 = vmul.f32 %v2333, %v2369
    %v2376 = vlaneseq
    %v2377 = vshrl.u32 %v2376, 7
    %v2378 = vsub.s32 0, %v2377
    %v2379 = vrot.slane %v468, %v2378
    %v2380 = vmul.f32 %v2370, %v2379
    %v2381 = vmul.f32 %v2371, %v2379
    %v2382 = vmul.f32 %v2372, %v2379
    %v2383 = vmul.f32 %v2373, %v2379
    %v2384 = vmul.f32 %v2374, %v2379
    %v2385 = vmul.f32 %v2375, %v2379
    %v2386 = vlaneseq
    %v2387 = vshrl.u32 %v2386, 7
    %v2388 = vsub.s32 0, %v2387
    %v2389 = vrot.slane %v469, %v2388
    %v2390 = vadd.f32 %v2380, %v2389
    %v2391 = vadd.f32 %v2381, %v2389
    %v2392 = vadd.f32 %v2382, %v2389
    %v2393 = vadd.f32 %v2383, %v2389
    %v2394 = vadd.f32 %v2384, %v2389
    %v2395 = vadd.f32 %v2385, %v2389
    %v2396 = vadd.f32 %v2390, %v1956
    %v2397 = vadd.f32 %v2391, %v1957
    %v2398 = vadd.f32 %v2392, %v1958
    %v2399 = vadd.f32 %v2393, %v1959
    %v2400 = vadd.f32 %v2394, %v1960
    %v2401 = vadd.f32 %v2395, %v1961
    %v2402 = vmax.f32 %v2396, 0.0
    %v2403 = vmax.f32 %v2397, 0.0
    %v2404 = vmax.f32 %v2398, 0.0
    %v2405 = vmax.f32 %v2399, 0.0
    %v2406 = vmax.f32 %v2400, 0.0
    %v2407 = vmax.f32 %v2401, 0.0
    %v2408 = vlaneseq
    %v2409 = vshrl.u32 %v2408, 7
    %v2410 = vsub.s32 0, %v2409
    %v2411 = vrot.slane %v470, %v2410
    %v2412 = vmul.f32 %v2402, %v2411
    %v2413 = vmul.f32 %v2403, %v2411
    %v2414 = vmul.f32 %v2404, %v2411
    %v2415 = vmul.f32 %v2405, %v2411
    %v2416 = vmul.f32 %v2406, %v2411
    %v2417 = vmul.f32 %v2407, %v2411
    %2418 = vadd.xlane.f32.xlu0 %v2412
    %v2419 = vpop.xlane.xlu0 %2418
    %2420 = vadd.xlane.f32.xlu0 %v2413
    %v2421 = vpop.xlane.xlu0 %2420
    %2422 = vadd.xlane.f32.xlu0 %v2414
    %v2423 = vpop.xlane.xlu0 %2422
    %2424 = vadd.xlane.f32.xlu0 %v2415
    %v2425 = vpop.xlane.xlu0 %2424
    %2426 = vadd.xlane.f32.xlu0 %v2416
    %v2427 = vpop.xlane.xlu0 %2426
    %2428 = vadd.xlane.f32.xlu0 %v2417
    %v2429 = vpop.xlane.xlu0 %2428
    %v2430 = vlaneseq
    %v2431 = vshrl.u32 %v2430, 7
    %v2432 = vsub.s32 0, %v2431
    %v2433 = vrot.slane %v471, %v2432
    %v2434 = vadd.f32 %v2419, %v2433
    %v2435 = vadd.f32 %v2421, %v2433
    %v2436 = vadd.f32 %v2423, %v2433
    %v2437 = vadd.f32 %v2425, %v2433
    %v2438 = vadd.f32 %v2427, %v2433
    %v2439 = vadd.f32 %v2429, %v2433
    %vm2440 = vcmp.gt.f32.partialorder %v2436, %v2434
    %vm2441 = vcmp.gt.f32.partialorder %v2437, %v2435
    %v2442 = vsel %vm2440, %v2436, %v2434
    %v2443 = vsel %vm2441, %v2437, %v2435
    %v2444 = vsel %vm2440, %v2434, %v2436
    %v2445 = vsel %vm2441, %v2435, %v2437
    %v2446 = vsel %vm2440, 1, 0
    %v2447 = vsel %vm2441, 1, 0
    %2448 = vset.pattern.permute.xlu0 0
    %2449 = vperm.xlu0 %2448, %v2446
    %v2450 = vpop.permute.xlu0 %2449
    %2451 = vset.pattern.permute.xlu0 0
    %2452 = vperm.xlu0 %2451, %v2447
    %v2453 = vpop.permute.xlu0 %2452
    %vm2454 = vcmp.eq.s32.totalorder %v2450, 1
    %vm2455 = vcmp.eq.s32.totalorder %v2453, 1
    %v2456 = vsel %vm2454, %v1141, %v780
    %v2457 = vsel %vm2455, %v1142, %v781
    %v2458 = vsel %vm2454, %v780, %v1141
    %v2459 = vsel %vm2455, %v781, %v1142
    %vm2460 = vcmp.gt.f32.partialorder %v2438, %v2444
    %vm2461 = vcmp.gt.f32.partialorder %v2439, %v2445
    %v2462 = vsel %vm2460, %v2438, %v2444
    %v2463 = vsel %vm2461, %v2439, %v2445
    %v2464 = vsel %vm2460, %v2444, %v2438
    %v2465 = vsel %vm2461, %v2445, %v2439
    %v2466 = vsel %vm2460, 1, 0
    %v2467 = vsel %vm2461, 1, 0
    %2468 = vset.pattern.permute.xlu0 0
    %2469 = vperm.xlu0 %2468, %v2466
    %v2470 = vpop.permute.xlu0 %2469
    %2471 = vset.pattern.permute.xlu0 0
    %2472 = vperm.xlu0 %2471, %v2467
    %v2473 = vpop.permute.xlu0 %2472
    %vm2474 = vcmp.eq.s32.totalorder %v2470, 1
    %vm2475 = vcmp.eq.s32.totalorder %v2473, 1
    %v2476 = vsel %vm2474, %v1490, %v2458
    %v2477 = vsel %vm2475, %v1491, %v2459
    %v2478 = vsel %vm2474, %v2458, %v1490
    %v2479 = vsel %vm2475, %v2459, %v1491
    %vm2480 = vcmp.gt.f32.partialorder %v2462, %v2442
    %vm2481 = vcmp.gt.f32.partialorder %v2463, %v2443
    %v2482 = vsel %vm2480, %v2462, %v2442
    %v2483 = vsel %vm2481, %v2463, %v2443
    %v2484 = vsel %vm2480, %v2442, %v2462
    %v2485 = vsel %vm2481, %v2443, %v2463
    %v2486 = vsel %vm2480, 1, 0
    %v2487 = vsel %vm2481, 1, 0
    %2488 = vset.pattern.permute.xlu0 0
    %2489 = vperm.xlu0 %2488, %v2486
    %v2490 = vpop.permute.xlu0 %2489
    %2491 = vset.pattern.permute.xlu0 0
    %2492 = vperm.xlu0 %2491, %v2487
    %v2493 = vpop.permute.xlu0 %2492
    %vm2494 = vcmp.eq.s32.totalorder %v2490, 1
    %vm2495 = vcmp.eq.s32.totalorder %v2493, 1
    %v2496 = vsel %vm2494, %v2476, %v2456
    %v2497 = vsel %vm2495, %v2477, %v2457
    %v2498 = vsel %vm2494, %v2456, %v2476
    %v2499 = vsel %vm2495, %v2457, %v2477
    %2502 = vrot.lane.b32.xlu0 %v2498, 12
    %v2503 = vpop.permute.xlu0 %2502
    %2504 = vrot.lane.b32.xlu0 %v2499, 12
    %v2505 = vpop.permute.xlu0 %2504
    %2510 = vrot.lane.b32.xlu0 %v2478, 24
    %v2511 = vpop.permute.xlu0 %2510
    %2512 = vrot.lane.b32.xlu0 %v2479, 24
    %v2513 = vpop.permute.xlu0 %2512
    %2518 = vrot.lane.b32.xlu0 %v2482, 36
    %v2519 = vpop.permute.xlu0 %2518
    %2520 = vrot.lane.b32.xlu0 %v2483, 36
    %v2521 = vpop.permute.xlu0 %2520
    %2526 = vrot.lane.b32.xlu0 %v2484, 37
    %v2527 = vpop.permute.xlu0 %2526
    %2528 = vrot.lane.b32.xlu0 %v2485, 37
    %v2529 = vpop.permute.xlu0 %2528
    %2534 = vrot.lane.b32.xlu0 %v2464, 38
    %v2535 = vpop.permute.xlu0 %2534
    %2536 = vrot.lane.b32.xlu0 %v2465, 38
    %v2537 = vpop.permute.xlu0 %2536
    %vm2540 = vcmask 97280
    %v2541 = vsel %vm2540, %v2496, %v2503
    %v2542 = vsel %vm2540, %v2497, %v2505
    %vm2543 = vcmask 195584
    %v2544 = vsel %vm2543, %v2541, %v2511
    %v2545 = vsel %vm2543, %v2542, %v2513
    %vm2546 = vcmask 293888
    %v2547 = vsel %vm2546, %v2544, %v2519
    %v2548 = vsel %vm2546, %v2545, %v2521
    %vm2549 = vcmask 302080
    %v2550 = vsel %vm2549, %v2547, %v2527
    %v2551 = vsel %vm2549, %v2548, %v2529
    %vm2552 = vcmask 310272
    %v2553 = vsel %vm2552, %v2550, %v2535
    %v2554 = vsel %vm2552, %v2551, %v2537
    %vm2555 = vcmask 318464
    %v2556 = vsel %vm2555, %v2553, 0.0
    %v2557 = vsel %vm2555, %v2554, 0.0
    %2558 = vst [vmem:[#allocation14] sm:$0xff] %v2556
    %2559 = vst [vmem:[#allocation14 + $0x8] sm:$0xff] %v2557
    // Predicated region
    $region82: #{tpu_custom_call.1} parent=1 // pred_check
      _
    $region83: #{tpu_custom_call.1} parent=1 // pred_check_branch
      %2561 = sbr.rel (0) target = $region85
    $region84: #{tpu_custom_call.1} parent=1 // pred_region
      %s2563 = ssub.s32 256, 256
      %2564 = vsyncadd [#allocation4], %s2563
      %s2565 = sshll.u32 [#allocation14], 4
      %s2566 = int_to_ptr.vmem [resolvable:$true] %s2565
      %2571 = dma.vmem_to_hbm [thread:$0]  %s2566, 256, %s13, [#allocation4], 128, 128, 8
    $region85: #{tpu_custom_call.1} parent=1 // pred_fallthru
      _
    // Predicated region
    $region86: #{tpu_custom_call.1} parent=1 // pred_check
      _
    $region87: #{tpu_custom_call.1} parent=1 // pred_check_branch
      %2573 = sbr.rel (0) target = $region89
    $region88: #{tpu_custom_call.1} parent=1 // pred_region
      %2574 = dma.done [#allocation4], 256
    $region89: #{tpu_custom_call.1} parent=1 // pred_fallthru
      _
    %2575 = vsyncpa [#allocation3], 1
    %2576 = vsyncpa [#allocation6], 1
    %2577 = vsyncpa [#allocation9], 1
    %2578 = vsyncpa [#allocation12], 1
    %2579 = vsyncpa [#allocation4], 1

</llo_original>
